<compile_context>
chip_gen: v5e
topology: v5e:2x2
jax: 0.10.0
libtpu: 0.0.40
codegen_flags: <defaults>
</compile_context>

<pallas_src>
import math
import numpy as np
import jax
import jax.numpy as jnp
from jax.experimental import pallas as pl
from jax.experimental.pallas import tpu as pltpu

# ----------------------------- model config ---------------------------------
VOCAB_SIZE      = 10
TRANSITION_DIM  = 5
OBSERVATION_DIM = 3
ACTION_DIM      = 1
SEQ_LEN         = 8
EMBEDDING_DIM   = 32
NUM_LAYERS      = 4
NUM_HEADS       = 4
MLP_MULT        = 4
LN_EPS          = 1e-5
VPAD            = 128            # lane-dense padded vocab dim for the head / output store
NTOK            = 64             # padded token-embedding rows (vocab*transition = 50 -> 64)
NVP             = NTOK + SEQ_LEN # combined (token + position) one-hot width = 72


# ------------------------------- kernel -------------------------------------
def _ln_raw(v):
    # affine (weight/bias) is folded into the following matmul at pack time;
    # one-pass E[x^2]-mu^2 statistics, kept in f32.
    mu = jnp.mean(v, axis=-1, keepdims=True)
    mu2 = jnp.mean(v * v, axis=-1, keepdims=True)
    var = mu2 - mu * mu
    return (v - mu) * jax.lax.rsqrt(var + LN_EPS)


def _make_kernel(bc, t):
    """Kernel for one batch-chunk of `bc` sequences of length `t` (R = bc*t rows)."""
    D = EMBEDDING_DIM
    H = NUM_HEADS
    R = bc * t
    HR = H * R
    bf16 = jnp.bfloat16

    def kernel(idx_ref, table_ref, wqkv_ref, bqkv_ref, wo_ref, w1_ref, b1_ref, w2_ref,
               lvec_ref, headw_ref, headb_ref, hsel_ref, madd_ref, gmat_ref, out_ref):
        # ---- fused embedding: token-offset + token/pos gather as ONE one-hot matmul ----
        # row r of the folded (bc*t, D) slab is sequence position j = r % t.
        pos = jax.lax.broadcasted_iota(jnp.int32, (R, 1), 0) % t          # (R, 1)
        tok_idx = idx_ref[...] + (pos % TRANSITION_DIM) * VOCAB_SIZE       # offset token id
        col = jax.lax.broadcasted_iota(jnp.int32, (R, NVP), 1)
        onehot = jnp.where((col == tok_idx) | (col == NTOK + pos), 1.0, 0.0).astype(bf16)
        x = jnp.dot(onehot, table_ref[...], preferred_element_type=jnp.float32)  # (R, D) f32

        hsel = hsel_ref[...]          # (HR, D) f32  head-column selector (0/1)
        madd = madd_ref[...]          # (HR, R) f32  additive mask (0 / -1e30)
        gmat = gmat_ref[...]          # (R, HR) bf16 head-gather selector

        for l in range(NUM_LAYERS):                           # static unroll (4 layers)
            lv = lvec_ref[l]                                  # (2, D): [b_o, b_2]
            b_o, b_2 = lv[0:1], lv[1:2]

            # ---- attention (pre-LN; LN1 affine + 1/sqrt(hd) folded into wqkv/bqkv) ----
            y = _ln_raw(x)
            qkv = jnp.dot(y.astype(bf16), wqkv_ref[l],
                          preferred_element_type=jnp.float32) + bqkv_ref[l]   # (R, 3D) f32
            q = qkv[:, 0 * D:1 * D]
            k = qkv[:, 1 * D:2 * D]
            v = qkv[:, 2 * D:3 * D]

            # packed block-diagonal attention: all heads & batch in two MXU pushes
            qe = jnp.concatenate([q] * H, axis=0) * hsel                      # (HR, D) f32
            s = jax.lax.dot_general(qe.astype(bf16), k.astype(bf16),
                                    (((1,), (1,)), ((), ())),
                                    preferred_element_type=jnp.float32)       # (HR, R) f32
            s = s + madd                                                      # causal+batch mask
            s = s - jnp.max(s, axis=-1, keepdims=True)
            p = jnp.exp(s)
            p = p * pl.reciprocal(jnp.sum(p, axis=-1, keepdims=True), approx=True)
            av = jnp.dot(p.astype(bf16), v.astype(bf16),
                         preferred_element_type=jnp.float32) * hsel           # (HR, D) f32
            # head reduction on the (idle) MXU instead of sublane-slice adds
            attn = jnp.dot(gmat, av.astype(bf16),
                           preferred_element_type=jnp.float32)                # (R, D) f32
            x = x + jnp.dot(attn.astype(bf16), wo_ref[l],
                            preferred_element_type=jnp.float32) + b_o

            # ---- MLP (pre-LN; LN2 affine folded into w1/b1) ----
            y2 = _ln_raw(x)
            h1 = jnp.dot(y2.astype(bf16), w1_ref[l],
                         preferred_element_type=jnp.float32) + b1_ref[l]
            # TODO(synk): PyTorch nn.GELU default is exact erf; tanh approx used here.
            h1 = jax.nn.gelu(h1, approximate=True)
            x = x + jnp.dot(h1.astype(bf16), w2_ref[l],
                            preferred_element_type=jnp.float32) + b_2

        # ---- final norm (affine folded into head) + lane-padded vocab head ----
        xn = _ln_raw(x)
        logits = jnp.dot(xn.astype(bf16), headw_ref[...],
                         preferred_element_type=jnp.float32) + headb_ref[...]   # (R, VPAD)
        out_ref[...] = logits.astype(out_ref.dtype)

    return kernel


# ------------------------------- packing -------------------------------------
def pack_params(p):
    """Fold LN affines / attention scale into weights and pack into lane-dense bf16 slabs."""
    D, V = EMBEDDING_DIM, VOCAB_SIZE
    hd = D // NUM_HEADS
    scale = 1.0 / math.sqrt(hd)
    bf16 = jnp.bfloat16

    # fused QKV with the softmax scale folded into the Q columns
    w_qkv0 = jnp.concatenate([p["wq"] * scale, p["wk"], p["wv"]], axis=-1)   # (L, D, 3D)
    b_qkv0 = jnp.concatenate([p["bq"] * scale, p["bk"], p["bv"]], axis=-1)   # (L, 1, 3D)
    # fold LN1 affine:  (y*w + b) @ W + B  ==  y @ (diag(w) W) + (b @ W + B)
    wqkv = w_qkv0 * jnp.swapaxes(p["ln1_w"], 1, 2)                           # (L, D, 3D)
    bqkv = b_qkv0 + jnp.einsum("lij,ljk->lik", p["ln1_b"], w_qkv0)           # (L, 1, 3D)
    # fold LN2 affine into the MLP input projection
    w1 = p["w1"] * jnp.swapaxes(p["ln2_w"], 1, 2)                            # (L, D, 4D)
    b1 = p["b1"] + jnp.einsum("lij,ljk->lik", p["ln2_b"], p["w1"])           # (L, 1, 4D)
    # fold final LayerNorm into the vocab head
    headw = p["head_w"] * p["norm_w"].T                                      # (D, V)
    headb = p["head_b"] + p["norm_b"] @ p["head_w"]                          # (1, V)

    # combined (token + position) embedding table, padded to 72 rows
    tok_pad = jnp.pad(p["tok_emb"], ((0, NTOK - V * TRANSITION_DIM), (0, 0)))
    table = jnp.concatenate([tok_pad, p["pos_emb"][0]], axis=0)              # (72, D)

    return {
        "table": table.astype(bf16),
        "wqkv":  wqkv.astype(bf16),
        "bqkv":  bqkv.astype(jnp.float32),
        "wo":    p["wo"].astype(bf16),
        "w1":    w1.astype(bf16),
        "b1":    b1.astype(jnp.float32),
        "w2":    p["w2"].astype(bf16),
        "lvec":  jnp.concatenate([p["bo"], p["b2"]], axis=1).astype(jnp.float32),  # (L, 2, D)
        "headw": jnp.pad(headw, ((0, 0), (0, VPAD - V))).astype(bf16),             # (D, VPAD)
        "headb": jnp.pad(headb, ((0, 0), (0, VPAD - V))).astype(jnp.float32),      # (1, VPAD)
    }


def _attention_constants(bc, t):
    """Precompute head selector, additive mask and head-gather matrix (numpy, wrapper-side)."""
    D, H = EMBEDDING_DIM, NUM_HEADS
    hd = D // H
    R = bc * t
    HR = H * R
    u = np.arange(HR)[:, None]
    d = np.arange(D)[None, :]
    head_sel = ((u // R) == (d // hd)).astype(np.float32)                    # (HR, D)
    c = np.arange(R)[None, :]
    r = u % R
    ok = ((r // t) == (c // t)) & ((c % t) <= (r % t))                       # same batch & causal
    mask_add = np.where(ok, 0.0, -1e30).astype(np.float32)                   # (HR, R)
    rr = np.arange(R)[:, None]
    uu = np.arange(HR)[None, :]
    gather = ((uu % R) == rr).astype(np.float32)                             # (R, HR) sum-over-heads
    return head_sel, mask_add, gather


def _full_spec(shape):
    rank = len(shape)
    return pl.BlockSpec(shape, lambda i, _r=rank: (0,) * _r)


# ------------------------------- wrapper -------------------------------------
def trajectory_forward(tokens, packed, *, batch_chunks=1):
    """Equivalent of TrajectoryModel.forward(tokens, state=None) in eval mode.

    batch_chunks=1 folds the whole batch into one kernel step (best at small batch on
    all generations).  On v7x only raise batch_chunks once rows-per-chunk (bc*t) >= ~128
    so each TensorCore gets enough work to amortize the per-step overhead; keep
    bc*t <= ~256 so the (H*bc*t, bc*t) score buffer stays small.
    """
    b, t = tokens.shape
    assert t <= SEQ_LEN, "Cannot forward, model sequence length is exhausted."
    assert b % batch_chunks == 0
    bc = b // batch_chunks
    R = bc * t
    # (8,128) sublane rule: with batch_chunks>1 the (R, *) blocks are not full arrays.
    assert batch_chunks == 1 or R % 8 == 0, "bc*t must be a multiple of 8 when batch_chunks > 1"

    idx = tokens.astype(jnp.int32).reshape(b * t, 1)        # token offsetting happens in-kernel

    hsel_np, madd_np, gmat_np = _attention_constants(bc, t)
    hsel = jnp.asarray(hsel_np)
    madd = jnp.asarray(madd_np)
    gmat = jnp.asarray(gmat_np, dtype=jnp.bfloat16)

    names = ["table", "wqkv", "bqkv", "wo", "w1", "b1", "w2", "lvec", "headw", "headb"]
    params = [packed[n] for n in names]
    consts = [hsel, madd, gmat]

    in_specs = [pl.BlockSpec((R, 1), lambda i: (i, 0))]
    in_specs += [_full_spec(a.shape) for a in params + consts]

    out = pl.pallas_call(
        _make_kernel(bc, t),
        out_shape=jax.ShapeDtypeStruct((b * t, VPAD), jnp.float32),
        grid=(batch_chunks,),
        in_specs=in_specs,
        out_specs=pl.BlockSpec((R, VPAD), lambda i: (i, 0)),
        compiler_params=pltpu.CompilerParams(dimension_semantics=("parallel",)),
    )(idx, *params, *consts)

    logits = out.reshape(b, t, VPAD)[:, :, :VOCAB_SIZE]
    new_state = [None for _ in range(NUM_LAYERS)]
    return logits, new_state


# --------------------------- deterministic init ------------------------------
def init_params(key):
    D, V, L = EMBEDDING_DIM, VOCAB_SIZE, NUM_LAYERS
    Hm = MLP_MULT * D
    ks = jax.random.split(key, 16)
    std = 0.02
    return {
        "tok_emb": std * jax.random.normal(ks[0], (V * TRANSITION_DIM, D), jnp.float32),
        "pos_emb": std * jax.random.normal(ks[1], (1, SEQ_LEN, D), jnp.float32),
        "ln1_w": jnp.ones((L, 1, D), jnp.float32),
        "ln1_b": jnp.zeros((L, 1, D), jnp.float32),
        "wq": std * jax.random.normal(ks[2], (L, D, D), jnp.float32),
        "wk": std * jax.random.normal(ks[3], (L, D, D), jnp.float32),
        "wv": std * jax.random.normal(ks[4], (L, D, D), jnp.float32),
        "wo": std * jax.random.normal(ks[5], (L, D, D), jnp.float32),
        "bq": jnp.zeros((L, 1, D), jnp.float32),
        "bk": jnp.zeros((L, 1, D), jnp.float32),
        "bv": jnp.zeros((L, 1, D), jnp.float32),
        "bo": jnp.zeros((L, 1, D), jnp.float32),
        "ln2_w": jnp.ones((L, 1, D), jnp.float32),
        "ln2_b": jnp.zeros((L, 1, D), jnp.float32),
        "w1": std * jax.random.normal(ks[6], (L, D, Hm), jnp.float32),
        "b1": jnp.zeros((L, 1, Hm), jnp.float32),
        "w2": std * jax.random.normal(ks[7], (L, Hm, D), jnp.float32),
        "b2": jnp.zeros((L, 1, D), jnp.float32),
        "norm_w": jnp.ones((1, D), jnp.float32),
        "norm_b": jnp.zeros((1, D), jnp.float32),
        "head_w": std * jax.random.normal(ks[8], (D, V), jnp.float32),
        "head_b": jnp.zeros((1, V), jnp.float32),
    }


# ------------------------- pure-JAX reference (check) -------------------------
def trajectory_forward_ref(tokens, p):
    b, t = tokens.shape
    n_states = int(np.ceil(t / TRANSITION_DIM))
    offsets = jnp.tile(jnp.arange(TRANSITION_DIM, dtype=tokens.dtype) * VOCAB_SIZE,
                       n_states)
    offset_idx = tokens + offsets[:t][None, :]
    x = jnp.take(p["tok_emb"], offset_idx, axis=0) + p["pos_emb"][:, :t, :]

    def ln(v, w, b_):
        mu = jnp.mean(v, axis=-1, keepdims=True)
        var = jnp.mean((v - mu) ** 2, axis=-1, keepdims=True)
        return (v - mu) * jax.lax.rsqrt(var + LN_EPS) * w + b_

    hd = EMBEDDING_DIM // NUM_HEADS
    causal = jnp.tril(jnp.ones((t, t), bool))
    for l in range(NUM_LAYERS):
        y = ln(x, p["ln1_w"][l], p["ln1_b"][l])
        q = (y @ p["wq"][l] + p["bq"][l]).reshape(b, t, NUM_HEADS, hd).transpose(0, 2, 1, 3)
        k = (y @ p["wk"][l] + p["bk"][l]).reshape(b, t, NUM_HEADS, hd).transpose(0, 2, 1, 3)
        v = (y @ p["wv"][l] + p["bv"][l]).reshape(b, t, NUM_HEADS, hd).transpose(0, 2, 1, 3)
        s = jnp.einsum("bhqd,bhkd->bhqk", q, k) / math.sqrt(hd)
        s = jnp.where(causal, s, -1e30)
        a = jax.nn.softmax(s, axis=-1)
        o = jnp.einsum("bhqk,bhkd->bhqd", a, v).transpose(0, 2, 1, 3).reshape(b, t, EMBEDDING_DIM)
        x = x + o @ p["wo"][l] + p["bo"][l]
        y2 = ln(x, p["ln2_w"][l], p["ln2_b"][l])
        h1 = jax.nn.gelu(y2 @ p["w1"][l] + p["b1"][l], approximate=True)
        x = x + h1 @ p["w2"][l] + p["b2"][l]
    x = ln(x, p["norm_w"], p["norm_b"])
    return x @ p["head_w"] + p["head_b"]


# ---------------------------------- main -------------------------------------
if __name__ == "__main__":
    key = jax.random.PRNGKey(0)
    pkey, tkey = jax.random.split(key)
    params = init_params(pkey)
    packed = pack_params(params)

    batch, t = 2, SEQ_LEN
    tokens = jax.random.randint(tkey, (batch, t), 0, VOCAB_SIZE, dtype=jnp.int32)

    logits, new_state = trajectory_forward(tokens, packed)
    logits = jax.block_until_ready(logits)

    assert logits.shape == (batch, t, VOCAB_SIZE), logits.shape
    assert bool(jnp.all(jnp.isfinite(logits)))

    # correctness vs pure-JAX f32 reference (tolerance covers bf16 MXU operands
    # and the approximate EUP reciprocal in the softmax denominator)
    ref = trajectory_forward_ref(tokens, params)
    max_err = float(jnp.max(jnp.abs(logits - ref)))
    assert max_err < 5e-2, f"max abs err {max_err}"

    print("KERNEL_OK")
</pallas_src>

<mosaic_0001>
module attributes {stable_mosaic.version = 11 : i64} {
  func.func @kernel(%arg0: i32, %arg1: memref<16x1xi32, #tpu.memory_space<vmem>>, %arg2: memref<72x32xbf16, #tpu.memory_space<vmem>>, %arg3: memref<4x32x96xbf16, #tpu.memory_space<vmem>>, %arg4: memref<4x1x96xf32, #tpu.memory_space<vmem>>, %arg5: memref<4x32x32xbf16, #tpu.memory_space<vmem>>, %arg6: memref<4x32x128xbf16, #tpu.memory_space<vmem>>, %arg7: memref<4x1x128xf32, #tpu.memory_space<vmem>>, %arg8: memref<4x128x32xbf16, #tpu.memory_space<vmem>>, %arg9: memref<4x2x32xf32, #tpu.memory_space<vmem>>, %arg10: memref<32x128xbf16, #tpu.memory_space<vmem>>, %arg11: memref<1x128xf32, #tpu.memory_space<vmem>>, %arg12: memref<64x32xf32, #tpu.memory_space<vmem>>, %arg13: memref<64x16xf32, #tpu.memory_space<vmem>>, %arg14: memref<16x64xbf16, #tpu.memory_space<vmem>>, %arg15: memref<16x128xf32, #tpu.memory_space<vmem>>) attributes {dimension_semantics = [#tpu.dimension_semantics<parallel>], iteration_bounds = array<i64: 1>, scalar_prefetch = 0 : i64, scratch_operands = 0 : i64, tpu.core_type = #tpu.core_type<tc>, window_params = [{transform_indices = @transform_0, window_bounds = array<i64: 16, 1>}, {pipeline_mode = #tpu.pipeline_mode<synchronous>, transform_indices = @transform_1, window_bounds = array<i64: 72, 32>}, {pipeline_mode = #tpu.pipeline_mode<synchronous>, transform_indices = @transform_2, window_bounds = array<i64: 4, 32, 96>}, {pipeline_mode = #tpu.pipeline_mode<synchronous>, transform_indices = @transform_3, window_bounds = array<i64: 4, 1, 96>}, {pipeline_mode = #tpu.pipeline_mode<synchronous>, transform_indices = @transform_4, window_bounds = array<i64: 4, 32, 32>}, {pipeline_mode = #tpu.pipeline_mode<synchronous>, transform_indices = @transform_5, window_bounds = array<i64: 4, 32, 128>}, {pipeline_mode = #tpu.pipeline_mode<synchronous>, transform_indices = @transform_6, window_bounds = array<i64: 4, 1, 128>}, {pipeline_mode = #tpu.pipeline_mode<synchronous>, transform_indices = @transform_7, window_bounds = array<i64: 4, 128, 32>}, {pipeline_mode = #tpu.pipeline_mode<synchronous>, transform_indices = @transform_8, window_bounds = array<i64: 4, 2, 32>}, {pipeline_mode = #tpu.pipeline_mode<synchronous>, transform_indices = @transform_9, window_bounds = array<i64: 32, 128>}, {pipeline_mode = #tpu.pipeline_mode<synchronous>, transform_indices = @transform_10, window_bounds = array<i64: 1, 128>}, {pipeline_mode = #tpu.pipeline_mode<synchronous>, transform_indices = @transform_11, window_bounds = array<i64: 64, 32>}, {pipeline_mode = #tpu.pipeline_mode<synchronous>, transform_indices = @transform_12, window_bounds = array<i64: 64, 16>}, {pipeline_mode = #tpu.pipeline_mode<synchronous>, transform_indices = @transform_13, window_bounds = array<i64: 16, 64>}, {transform_indices = @transform_14, window_bounds = array<i64: 16, 128>}]} {
    %0 = tpu.iota {dimensions = array<i32: 0>} : vector<16x1xi32>
    %c8_i32 = arith.constant 8 : i32
    %c0_i32 = arith.constant 0 : i32
    %1 = arith.cmpi eq, %c8_i32, %c0_i32 : i32
    %c1_i32 = arith.constant 1 : i32
    %2 = arith.select %1, %c1_i32, %c8_i32 : i32
    %3 = vector.broadcast %2 : i32 to vector<16x1xi32>
    %4 = arith.remsi %0, %3 : vector<16x1xi32>
    %c0_i32_0 = arith.constant 0 : i32
    %5 = vector.broadcast %c0_i32_0 : i32 to vector<16x1xi32>
    %6 = arith.cmpi ne, %4, %5 : vector<16x1xi32>
    %c0_i32_1 = arith.constant 0 : i32
    %7 = vector.broadcast %c0_i32_1 : i32 to vector<16x1xi32>
    %8 = arith.cmpi slt, %4, %7 : vector<16x1xi32>
    %c0_i32_2 = arith.constant 0 : i32
    %9 = arith.cmpi slt, %2, %c0_i32_2 : i32
    %10 = vector.broadcast %9 : i1 to vector<16x1xi1>
    %11 = vector.broadcast %10 : vector<16x1xi1> to vector<16x1xi1>
    %12 = arith.xori %8, %11 : vector<16x1xi1>
    %13 = arith.andi %12, %6 : vector<16x1xi1>
    %14 = vector.broadcast %2 : i32 to vector<16x1xi32>
    %15 = arith.addi %4, %14 : vector<16x1xi32>
    %16 = arith.select %13, %15, %4 : vector<16x1xi1>, vector<16x1xi32>
    %c0 = arith.constant 0 : index
    %c0_3 = arith.constant 0 : index
    %17 = vector.load %arg1[%c0, %c0_3] : memref<16x1xi32, #tpu.memory_space<vmem>>, vector<16x1xi32>
    %c5_i32 = arith.constant 5 : i32
    %c0_i32_4 = arith.constant 0 : i32
    %18 = arith.cmpi eq, %c5_i32, %c0_i32_4 : i32
    %c1_i32_5 = arith.constant 1 : i32
    %19 = arith.select %18, %c1_i32_5, %c5_i32 : i32
    %20 = vector.broadcast %19 : i32 to vector<16x1xi32>
    %21 = arith.remsi %16, %20 : vector<16x1xi32>
    %c0_i32_6 = arith.constant 0 : i32
    %22 = vector.broadcast %c0_i32_6 : i32 to vector<16x1xi32>
    %23 = arith.cmpi ne, %21, %22 : vector<16x1xi32>
    %c0_i32_7 = arith.constant 0 : i32
    %24 = vector.broadcast %c0_i32_7 : i32 to vector<16x1xi32>
    %25 = arith.cmpi slt, %21, %24 : vector<16x1xi32>
    %c0_i32_8 = arith.constant 0 : i32
    %26 = arith.cmpi slt, %19, %c0_i32_8 : i32
    %27 = vector.broadcast %26 : i1 to vector<16x1xi1>
    %28 = vector.broadcast %27 : vector<16x1xi1> to vector<16x1xi1>
    %29 = arith.xori %25, %28 : vector<16x1xi1>
    %30 = arith.andi %29, %23 : vector<16x1xi1>
    %31 = vector.broadcast %19 : i32 to vector<16x1xi32>
    %32 = arith.addi %21, %31 : vector<16x1xi32>
    %33 = arith.select %30, %32, %21 : vector<16x1xi1>, vector<16x1xi32>
    %c10_i32 = arith.constant 10 : i32
    %34 = vector.broadcast %c10_i32 : i32 to vector<16x1xi32>
    %35 = arith.muli %33, %34 : vector<16x1xi32>
    %36 = arith.addi %17, %35 : vector<16x1xi32>
    %37 = tpu.iota {dimensions = array<i32: 1>} : vector<16x72xi32>
    %38 = vector.broadcast %36 : vector<16x1xi32> to vector<16x72xi32>
    %39 = arith.cmpi eq, %37, %38 : vector<16x72xi32>
    %c64_i32 = arith.constant 64 : i32
    %40 = vector.broadcast %c64_i32 : i32 to vector<16x1xi32>
    %41 = arith.addi %40, %16 : vector<16x1xi32>
    %42 = vector.broadcast %41 : vector<16x1xi32> to vector<16x72xi32>
    %43 = arith.cmpi eq, %37, %42 : vector<16x72xi32>
    %44 = arith.ori %39, %43 : vector<16x72xi1>
    %cst = arith.constant 1.000000e+00 : f32
    %cst_9 = arith.constant 0.000000e+00 : f32
    %45 = vector.broadcast %cst : f32 to vector<16x72xf32>
    %46 = vector.broadcast %cst_9 : f32 to vector<16x72xf32>
    %47 = arith.select %44, %45, %46 : vector<16x72xi1>, vector<16x72xf32>
    %48 = arith.truncf %47 : vector<16x72xf32> to vector<16x72xbf16>
    %c0_10 = arith.constant 0 : index
    %c0_11 = arith.constant 0 : index
    %49 = vector.load %arg2[%c0_10, %c0_11] : memref<72x32xbf16, #tpu.memory_space<vmem>>, vector<72x32xbf16>
    %cst_12 = arith.constant dense<0.000000e+00> : vector<16x32xf32>
    %50 = tpu.matmul %48, %49, %cst_12 {dimension_numbers = #tpu.dot_dimension_numbers<[1], [0], [0], [1], [0, 0, 1, 1], [], []>} : vector<16x72xbf16>, vector<72x32xbf16>, vector<16x32xf32> -> vector<16x32xf32>
    %c0_13 = arith.constant 0 : index
    %c0_14 = arith.constant 0 : index
    %51 = vector.load %arg12[%c0_13, %c0_14] : memref<64x32xf32, #tpu.memory_space<vmem>>, vector<64x32xf32>
    %c0_15 = arith.constant 0 : index
    %c0_16 = arith.constant 0 : index
    %52 = vector.load %arg13[%c0_15, %c0_16] : memref<64x16xf32, #tpu.memory_space<vmem>>, vector<64x16xf32>
    %c0_17 = arith.constant 0 : index
    %c0_18 = arith.constant 0 : index
    %53 = vector.load %arg14[%c0_17, %c0_18] : memref<16x64xbf16, #tpu.memory_space<vmem>>, vector<16x64xbf16>
    %c0_19 = arith.constant 0 : index
    %c0_20 = arith.constant 0 : index
    %c0_21 = arith.constant 0 : index
    %54 = vector.load %arg9[%c0_19, %c0_20, %c0_21] : memref<4x2x32xf32, #tpu.memory_space<vmem>>, vector<1x2x32xf32>
    %55 = vector.shape_cast %54 : vector<1x2x32xf32> to vector<2x32xf32>
    %56 = vector.extract_strided_slice %55 {offsets = [0, 0], sizes = [1, 32], strides = [1, 1]} : vector<2x32xf32> to vector<1x32xf32>
    %57 = vector.extract_strided_slice %55 {offsets = [1, 0], sizes = [1, 32], strides = [1, 1]} : vector<2x32xf32> to vector<1x32xf32>
    %cst_22 = arith.constant dense<0.000000e+00> : vector<16xf32>
    %58 = vector.multi_reduction <add>, %50, %cst_22 [1] : vector<16x32xf32> to vector<16xf32>
    %59 = vector.shape_cast %58 : vector<16xf32> to vector<16x1xf32>
    %cst_23 = arith.constant 3.200000e+01 : f32
    %60 = vector.broadcast %cst_23 : f32 to vector<16x1xf32>
    %61 = arith.divf %59, %60 : vector<16x1xf32>
    %62 = arith.mulf %50, %50 : vector<16x32xf32>
    %cst_24 = arith.constant dense<0.000000e+00> : vector<16xf32>
    %63 = vector.multi_reduction <add>, %62, %cst_24 [1] : vector<16x32xf32> to vector<16xf32>
    %64 = vector.shape_cast %63 : vector<16xf32> to vector<16x1xf32>
    %cst_25 = arith.constant 3.200000e+01 : f32
    %65 = vector.broadcast %cst_25 : f32 to vector<16x1xf32>
    %66 = arith.divf %64, %65 : vector<16x1xf32>
    %67 = arith.mulf %61, %61 : vector<16x1xf32>
    %68 = arith.subf %66, %67 : vector<16x1xf32>
    %69 = vector.broadcast %61 : vector<16x1xf32> to vector<16x32xf32>
    %70 = arith.subf %50, %69 : vector<16x32xf32>
    %cst_26 = arith.constant 9.99999974E-6 : f32
    %71 = vector.broadcast %cst_26 : f32 to vector<16x1xf32>
    %72 = arith.addf %68, %71 : vector<16x1xf32>
    %73 = math.rsqrt %72 : vector<16x1xf32>
    %74 = vector.broadcast %73 : vector<16x1xf32> to vector<16x32xf32>
    %75 = arith.mulf %70, %74 : vector<16x32xf32>
    %76 = arith.truncf %75 : vector<16x32xf32> to vector<16x32xbf16>
    %c0_27 = arith.constant 0 : index
    %c0_28 = arith.constant 0 : index
    %c0_29 = arith.constant 0 : index
    %77 = vector.load %arg3[%c0_27, %c0_28, %c0_29] : memref<4x32x96xbf16, #tpu.memory_space<vmem>>, vector<1x32x96xbf16>
    %78 = vector.shape_cast %77 : vector<1x32x96xbf16> to vector<32x96xbf16>
    %cst_30 = arith.constant dense<0.000000e+00> : vector<16x96xf32>
    %79 = tpu.matmul %76, %78, %cst_30 {dimension_numbers = #tpu.dot_dimension_numbers<[1], [0], [0], [1], [0, 0, 1, 1], [], []>} : vector<16x32xbf16>, vector<32x96xbf16>, vector<16x96xf32> -> vector<16x96xf32>
    %c0_31 = arith.constant 0 : index
    %c0_32 = arith.constant 0 : index
    %c0_33 = arith.constant 0 : index
    %80 = vector.load %arg4[%c0_31, %c0_32, %c0_33] : memref<4x1x96xf32, #tpu.memory_space<vmem>>, vector<1x1x96xf32>
    %81 = vector.shape_cast %80 : vector<1x1x96xf32> to vector<1x96xf32>
    %82 = vector.broadcast %81 : vector<1x96xf32> to vector<16x96xf32>
    %83 = arith.addf %79, %82 : vector<16x96xf32>
    %84 = vector.extract_strided_slice %83 {offsets = [0, 0], sizes = [16, 32], strides = [1, 1]} : vector<16x96xf32> to vector<16x32xf32>
    %85 = vector.extract_strided_slice %83 {offsets = [0, 32], sizes = [16, 32], strides = [1, 1]} : vector<16x96xf32> to vector<16x32xf32>
    %86 = vector.extract_strided_slice %83 {offsets = [0, 64], sizes = [16, 32], strides = [1, 1]} : vector<16x96xf32> to vector<16x32xf32>
    %87 = tpu.concatenate %84, %84, %84, %84 in 0 : vector<16x32xf32>, vector<16x32xf32>, vector<16x32xf32>, vector<16x32xf32> -> vector<64x32xf32>
    %88 = arith.mulf %87, %51 : vector<64x32xf32>
    %89 = arith.truncf %88 : vector<64x32xf32> to vector<64x32xbf16>
    %90 = arith.truncf %85 : vector<16x32xf32> to vector<16x32xbf16>
    %cst_34 = arith.constant dense<0.000000e+00> : vector<64x16xf32>
    %91 = tpu.matmul %89, %90, %cst_34 {dimension_numbers = #tpu.dot_dimension_numbers<[1], [1], [0], [0], [0, 0, 1, 0], [], []>} : vector<64x32xbf16>, vector<16x32xbf16>, vector<64x16xf32> -> vector<64x16xf32>
    %92 = arith.addf %91, %52 : vector<64x16xf32>
    %cst_35 = arith.constant dense<0xFF800000> : vector<64xf32>
    %93 = vector.multi_reduction <maximumf>, %92, %cst_35 [1] : vector<64x16xf32> to vector<64xf32>
    %94 = vector.shape_cast %93 : vector<64xf32> to vector<64x1xf32>
    %95 = vector.broadcast %94 : vector<64x1xf32> to vector<64x16xf32>
    %96 = arith.subf %92, %95 : vector<64x16xf32>
    %97 = math.exp %96 : vector<64x16xf32>
    %cst_36 = arith.constant dense<0.000000e+00> : vector<64xf32>
    %98 = vector.multi_reduction <add>, %97, %cst_36 [1] : vector<64x16xf32> to vector<64xf32>
    %99 = vector.shape_cast %98 : vector<64xf32> to vector<64x1xf32>
    %100 = tpu.reciprocal %99 {approx = true} : vector<64x1xf32> -> vector<64x1xf32>
    %101 = vector.broadcast %100 : vector<64x1xf32> to vector<64x16xf32>
    %102 = arith.mulf %97, %101 : vector<64x16xf32>
    %103 = arith.truncf %102 : vector<64x16xf32> to vector<64x16xbf16>
    %104 = arith.truncf %86 : vector<16x32xf32> to vector<16x32xbf16>
    %cst_37 = arith.constant dense<0.000000e+00> : vector<64x32xf32>
    %105 = tpu.matmul %103, %104, %cst_37 {dimension_numbers = #tpu.dot_dimension_numbers<[1], [0], [0], [1], [0, 0, 1, 1], [], []>} : vector<64x16xbf16>, vector<16x32xbf16>, vector<64x32xf32> -> vector<64x32xf32>
    %106 = arith.mulf %105, %51 : vector<64x32xf32>
    %107 = arith.truncf %106 : vector<64x32xf32> to vector<64x32xbf16>
    %cst_38 = arith.constant dense<0.000000e+00> : vector<16x32xf32>
    %108 = tpu.matmul %53, %107, %cst_38 {dimension_numbers = #tpu.dot_dimension_numbers<[1], [0], [0], [1], [0, 0, 1, 1], [], []>} : vector<16x64xbf16>, vector<64x32xbf16>, vector<16x32xf32> -> vector<16x32xf32>
    %109 = arith.truncf %108 : vector<16x32xf32> to vector<16x32xbf16>
    %c0_39 = arith.constant 0 : index
    %c0_40 = arith.constant 0 : index
    %c0_41 = arith.constant 0 : index
    %110 = vector.load %arg5[%c0_39, %c0_40, %c0_41] : memref<4x32x32xbf16, #tpu.memory_space<vmem>>, vector<1x32x32xbf16>
    %111 = vector.shape_cast %110 : vector<1x32x32xbf16> to vector<32x32xbf16>
    %cst_42 = arith.constant dense<0.000000e+00> : vector<16x32xf32>
    %112 = tpu.matmul %109, %111, %cst_42 {dimension_numbers = #tpu.dot_dimension_numbers<[1], [0], [0], [1], [0, 0, 1, 1], [], []>} : vector<16x32xbf16>, vector<32x32xbf16>, vector<16x32xf32> -> vector<16x32xf32>
    %113 = arith.addf %50, %112 : vector<16x32xf32>
    %114 = vector.broadcast %56 : vector<1x32xf32> to vector<16x32xf32>
    %115 = arith.addf %113, %114 : vector<16x32xf32>
    %cst_43 = arith.constant dense<0.000000e+00> : vector<16xf32>
    %116 = vector.multi_reduction <add>, %115, %cst_43 [1] : vector<16x32xf32> to vector<16xf32>
    %117 = vector.shape_cast %116 : vector<16xf32> to vector<16x1xf32>
    %cst_44 = arith.constant 3.200000e+01 : f32
    %118 = vector.broadcast %cst_44 : f32 to vector<16x1xf32>
    %119 = arith.divf %117, %118 : vector<16x1xf32>
    %120 = arith.mulf %115, %115 : vector<16x32xf32>
    %cst_45 = arith.constant dense<0.000000e+00> : vector<16xf32>
    %121 = vector.multi_reduction <add>, %120, %cst_45 [1] : vector<16x32xf32> to vector<16xf32>
    %122 = vector.shape_cast %121 : vector<16xf32> to vector<16x1xf32>
    %cst_46 = arith.constant 3.200000e+01 : f32
    %123 = vector.broadcast %cst_46 : f32 to vector<16x1xf32>
    %124 = arith.divf %122, %123 : vector<16x1xf32>
    %125 = arith.mulf %119, %119 : vector<16x1xf32>
    %126 = arith.subf %124, %125 : vector<16x1xf32>
    %127 = vector.broadcast %119 : vector<16x1xf32> to vector<16x32xf32>
    %128 = arith.subf %115, %127 : vector<16x32xf32>
    %cst_47 = arith.constant 9.99999974E-6 : f32
    %129 = vector.broadcast %cst_47 : f32 to vector<16x1xf32>
    %130 = arith.addf %126, %129 : vector<16x1xf32>
    %131 = math.rsqrt %130 : vector<16x1xf32>
    %132 = vector.broadcast %131 : vector<16x1xf32> to vector<16x32xf32>
    %133 = arith.mulf %128, %132 : vector<16x32xf32>
    %134 = arith.truncf %133 : vector<16x32xf32> to vector<16x32xbf16>
    %c0_48 = arith.constant 0 : index
    %c0_49 = arith.constant 0 : index
    %c0_50 = arith.constant 0 : index
    %135 = vector.load %arg6[%c0_48, %c0_49, %c0_50] : memref<4x32x128xbf16, #tpu.memory_space<vmem>>, vector<1x32x128xbf16>
    %136 = vector.shape_cast %135 : vector<1x32x128xbf16> to vector<32x128xbf16>
    %cst_51 = arith.constant dense<0.000000e+00> : vector<16x128xf32>
    %137 = tpu.matmul %134, %136, %cst_51 {dimension_numbers = #tpu.dot_dimension_numbers<[1], [0], [0], [1], [0, 0, 1, 1], [], []>} : vector<16x32xbf16>, vector<32x128xbf16>, vector<16x128xf32> -> vector<16x128xf32>
    %c0_52 = arith.constant 0 : index
    %c0_53 = arith.constant 0 : index
    %c0_54 = arith.constant 0 : index
    %138 = vector.load %arg7[%c0_52, %c0_53, %c0_54] : memref<4x1x128xf32, #tpu.memory_space<vmem>>, vector<1x1x128xf32>
    %139 = vector.shape_cast %138 : vector<1x1x128xf32> to vector<1x128xf32>
    %140 = vector.broadcast %139 : vector<1x128xf32> to vector<16x128xf32>
    %141 = arith.addf %137, %140 : vector<16x128xf32>
    %142 = arith.mulf %141, %141 : vector<16x128xf32>
    %143 = arith.mulf %141, %142 : vector<16x128xf32>
    %cst_55 = arith.constant 4.471500e-02 : f32
    %144 = vector.broadcast %cst_55 : f32 to vector<16x128xf32>
    %145 = arith.mulf %144, %143 : vector<16x128xf32>
    %146 = arith.addf %141, %145 : vector<16x128xf32>
    %cst_56 = arith.constant 0.797884583 : f32
    %147 = vector.broadcast %cst_56 : f32 to vector<16x128xf32>
    %148 = arith.mulf %147, %146 : vector<16x128xf32>
    %149 = math.tanh %148 : vector<16x128xf32>
    %cst_57 = arith.constant 1.000000e+00 : f32
    %150 = vector.broadcast %cst_57 : f32 to vector<16x128xf32>
    %151 = arith.addf %150, %149 : vector<16x128xf32>
    %cst_58 = arith.constant 5.000000e-01 : f32
    %152 = vector.broadcast %cst_58 : f32 to vector<16x128xf32>
    %153 = arith.mulf %152, %151 : vector<16x128xf32>
    %154 = arith.mulf %141, %153 : vector<16x128xf32>
    %155 = arith.truncf %154 : vector<16x128xf32> to vector<16x128xbf16>
    %c0_59 = arith.constant 0 : index
    %c0_60 = arith.constant 0 : index
    %c0_61 = arith.constant 0 : index
    %156 = vector.load %arg8[%c0_59, %c0_60, %c0_61] : memref<4x128x32xbf16, #tpu.memory_space<vmem>>, vector<1x128x32xbf16>
    %157 = vector.shape_cast %156 : vector<1x128x32xbf16> to vector<128x32xbf16>
    %cst_62 = arith.constant dense<0.000000e+00> : vector<16x32xf32>
    %158 = tpu.matmul %155, %157, %cst_62 {dimension_numbers = #tpu.dot_dimension_numbers<[1], [0], [0], [1], [0, 0, 1, 1], [], []>} : vector<16x128xbf16>, vector<128x32xbf16>, vector<16x32xf32> -> vector<16x32xf32>
    %159 = arith.addf %115, %158 : vector<16x32xf32>
    %160 = vector.broadcast %57 : vector<1x32xf32> to vector<16x32xf32>
    %161 = arith.addf %159, %160 : vector<16x32xf32>
    %c1 = arith.constant 1 : index
    %c0_63 = arith.constant 0 : index
    %c0_64 = arith.constant 0 : index
    %162 = vector.load %arg9[%c1, %c0_63, %c0_64] : memref<4x2x32xf32, #tpu.memory_space<vmem>>, vector<1x2x32xf32>
    %163 = vector.shape_cast %162 : vector<1x2x32xf32> to vector<2x32xf32>
    %164 = vector.extract_strided_slice %163 {offsets = [0, 0], sizes = [1, 32], strides = [1, 1]} : vector<2x32xf32> to vector<1x32xf32>
    %165 = vector.extract_strided_slice %163 {offsets = [1, 0], sizes = [1, 32], strides = [1, 1]} : vector<2x32xf32> to vector<1x32xf32>
    %cst_65 = arith.constant dense<0.000000e+00> : vector<16xf32>
    %166 = vector.multi_reduction <add>, %161, %cst_65 [1] : vector<16x32xf32> to vector<16xf32>
    %167 = vector.shape_cast %166 : vector<16xf32> to vector<16x1xf32>
    %cst_66 = arith.constant 3.200000e+01 : f32
    %168 = vector.broadcast %cst_66 : f32 to vector<16x1xf32>
    %169 = arith.divf %167, %168 : vector<16x1xf32>
    %170 = arith.mulf %161, %161 : vector<16x32xf32>
    %cst_67 = arith.constant dense<0.000000e+00> : vector<16xf32>
    %171 = vector.multi_reduction <add>, %170, %cst_67 [1] : vector<16x32xf32> to vector<16xf32>
    %172 = vector.shape_cast %171 : vector<16xf32> to vector<16x1xf32>
    %cst_68 = arith.constant 3.200000e+01 : f32
    %173 = vector.broadcast %cst_68 : f32 to vector<16x1xf32>
    %174 = arith.divf %172, %173 : vector<16x1xf32>
    %175 = arith.mulf %169, %169 : vector<16x1xf32>
    %176 = arith.subf %174, %175 : vector<16x1xf32>
    %177 = vector.broadcast %169 : vector<16x1xf32> to vector<16x32xf32>
    %178 = arith.subf %161, %177 : vector<16x32xf32>
    %cst_69 = arith.constant 9.99999974E-6 : f32
    %179 = vector.broadcast %cst_69 : f32 to vector<16x1xf32>
    %180 = arith.addf %176, %179 : vector<16x1xf32>
    %181 = math.rsqrt %180 : vector<16x1xf32>
    %182 = vector.broadcast %181 : vector<16x1xf32> to vector<16x32xf32>
    %183 = arith.mulf %178, %182 : vector<16x32xf32>
    %184 = arith.truncf %183 : vector<16x32xf32> to vector<16x32xbf16>
    %c1_70 = arith.constant 1 : index
    %c0_71 = arith.constant 0 : index
    %c0_72 = arith.constant 0 : index
    %185 = vector.load %arg3[%c1_70, %c0_71, %c0_72] : memref<4x32x96xbf16, #tpu.memory_space<vmem>>, vector<1x32x96xbf16>
    %186 = vector.shape_cast %185 : vector<1x32x96xbf16> to vector<32x96xbf16>
    %cst_73 = arith.constant dense<0.000000e+00> : vector<16x96xf32>
    %187 = tpu.matmul %184, %186, %cst_73 {dimension_numbers = #tpu.dot_dimension_numbers<[1], [0], [0], [1], [0, 0, 1, 1], [], []>} : vector<16x32xbf16>, vector<32x96xbf16>, vector<16x96xf32> -> vector<16x96xf32>
    %c1_74 = arith.constant 1 : index
    %c0_75 = arith.constant 0 : index
    %c0_76 = arith.constant 0 : index
    %188 = vector.load %arg4[%c1_74, %c0_75, %c0_76] : memref<4x1x96xf32, #tpu.memory_space<vmem>>, vector<1x1x96xf32>
    %189 = vector.shape_cast %188 : vector<1x1x96xf32> to vector<1x96xf32>
    %190 = vector.broadcast %189 : vector<1x96xf32> to vector<16x96xf32>
    %191 = arith.addf %187, %190 : vector<16x96xf32>
    %192 = vector.extract_strided_slice %191 {offsets = [0, 0], sizes = [16, 32], strides = [1, 1]} : vector<16x96xf32> to vector<16x32xf32>
    %193 = vector.extract_strided_slice %191 {offsets = [0, 32], sizes = [16, 32], strides = [1, 1]} : vector<16x96xf32> to vector<16x32xf32>
    %194 = vector.extract_strided_slice %191 {offsets = [0, 64], sizes = [16, 32], strides = [1, 1]} : vector<16x96xf32> to vector<16x32xf32>
    %195 = tpu.concatenate %192, %192, %192, %192 in 0 : vector<16x32xf32>, vector<16x32xf32>, vector<16x32xf32>, vector<16x32xf32> -> vector<64x32xf32>
    %196 = arith.mulf %195, %51 : vector<64x32xf32>
    %197 = arith.truncf %196 : vector<64x32xf32> to vector<64x32xbf16>
    %198 = arith.truncf %193 : vector<16x32xf32> to vector<16x32xbf16>
    %cst_77 = arith.constant dense<0.000000e+00> : vector<64x16xf32>
    %199 = tpu.matmul %197, %198, %cst_77 {dimension_numbers = #tpu.dot_dimension_numbers<[1], [1], [0], [0], [0, 0, 1, 0], [], []>} : vector<64x32xbf16>, vector<16x32xbf16>, vector<64x16xf32> -> vector<64x16xf32>
    %200 = arith.addf %199, %52 : vector<64x16xf32>
    %cst_78 = arith.constant dense<0xFF800000> : vector<64xf32>
    %201 = vector.multi_reduction <maximumf>, %200, %cst_78 [1] : vector<64x16xf32> to vector<64xf32>
    %202 = vector.shape_cast %201 : vector<64xf32> to vector<64x1xf32>
    %203 = vector.broadcast %202 : vector<64x1xf32> to vector<64x16xf32>
    %204 = arith.subf %200, %203 : vector<64x16xf32>
    %205 = math.exp %204 : vector<64x16xf32>
    %cst_79 = arith.constant dense<0.000000e+00> : vector<64xf32>
    %206 = vector.multi_reduction <add>, %205, %cst_79 [1] : vector<64x16xf32> to vector<64xf32>
    %207 = vector.shape_cast %206 : vector<64xf32> to vector<64x1xf32>
    %208 = tpu.reciprocal %207 {approx = true} : vector<64x1xf32> -> vector<64x1xf32>
    %209 = vector.broadcast %208 : vector<64x1xf32> to vector<64x16xf32>
    %210 = arith.mulf %205, %209 : vector<64x16xf32>
    %211 = arith.truncf %210 : vector<64x16xf32> to vector<64x16xbf16>
    %212 = arith.truncf %194 : vector<16x32xf32> to vector<16x32xbf16>
    %cst_80 = arith.constant dense<0.000000e+00> : vector<64x32xf32>
    %213 = tpu.matmul %211, %212, %cst_80 {dimension_numbers = #tpu.dot_dimension_numbers<[1], [0], [0], [1], [0, 0, 1, 1], [], []>} : vector<64x16xbf16>, vector<16x32xbf16>, vector<64x32xf32> -> vector<64x32xf32>
    %214 = arith.mulf %213, %51 : vector<64x32xf32>
    %215 = arith.truncf %214 : vector<64x32xf32> to vector<64x32xbf16>
    %cst_81 = arith.constant dense<0.000000e+00> : vector<16x32xf32>
    %216 = tpu.matmul %53, %215, %cst_81 {dimension_numbers = #tpu.dot_dimension_numbers<[1], [0], [0], [1], [0, 0, 1, 1], [], []>} : vector<16x64xbf16>, vector<64x32xbf16>, vector<16x32xf32> -> vector<16x32xf32>
    %217 = arith.truncf %216 : vector<16x32xf32> to vector<16x32xbf16>
    %c1_82 = arith.constant 1 : index
    %c0_83 = arith.constant 0 : index
    %c0_84 = arith.constant 0 : index
    %218 = vector.load %arg5[%c1_82, %c0_83, %c0_84] : memref<4x32x32xbf16, #tpu.memory_space<vmem>>, vector<1x32x32xbf16>
    %219 = vector.shape_cast %218 : vector<1x32x32xbf16> to vector<32x32xbf16>
    %cst_85 = arith.constant dense<0.000000e+00> : vector<16x32xf32>
    %220 = tpu.matmul %217, %219, %cst_85 {dimension_numbers = #tpu.dot_dimension_numbers<[1], [0], [0], [1], [0, 0, 1, 1], [], []>} : vector<16x32xbf16>, vector<32x32xbf16>, vector<16x32xf32> -> vector<16x32xf32>
    %221 = arith.addf %161, %220 : vector<16x32xf32>
    %222 = vector.broadcast %164 : vector<1x32xf32> to vector<16x32xf32>
    %223 = arith.addf %221, %222 : vector<16x32xf32>
    %cst_86 = arith.constant dense<0.000000e+00> : vector<16xf32>
    %224 = vector.multi_reduction <add>, %223, %cst_86 [1] : vector<16x32xf32> to vector<16xf32>
    %225 = vector.shape_cast %224 : vector<16xf32> to vector<16x1xf32>
    %cst_87 = arith.constant 3.200000e+01 : f32
    %226 = vector.broadcast %cst_87 : f32 to vector<16x1xf32>
    %227 = arith.divf %225, %226 : vector<16x1xf32>
    %228 = arith.mulf %223, %223 : vector<16x32xf32>
    %cst_88 = arith.constant dense<0.000000e+00> : vector<16xf32>
    %229 = vector.multi_reduction <add>, %228, %cst_88 [1] : vector<16x32xf32> to vector<16xf32>
    %230 = vector.shape_cast %229 : vector<16xf32> to vector<16x1xf32>
    %cst_89 = arith.constant 3.200000e+01 : f32
    %231 = vector.broadcast %cst_89 : f32 to vector<16x1xf32>
    %232 = arith.divf %230, %231 : vector<16x1xf32>
    %233 = arith.mulf %227, %227 : vector<16x1xf32>
    %234 = arith.subf %232, %233 : vector<16x1xf32>
    %235 = vector.broadcast %227 : vector<16x1xf32> to vector<16x32xf32>
    %236 = arith.subf %223, %235 : vector<16x32xf32>
    %cst_90 = arith.constant 9.99999974E-6 : f32
    %237 = vector.broadcast %cst_90 : f32 to vector<16x1xf32>
    %238 = arith.addf %234, %237 : vector<16x1xf32>
    %239 = math.rsqrt %238 : vector<16x1xf32>
    %240 = vector.broadcast %239 : vector<16x1xf32> to vector<16x32xf32>
    %241 = arith.mulf %236, %240 : vector<16x32xf32>
    %242 = arith.truncf %241 : vector<16x32xf32> to vector<16x32xbf16>
    %c1_91 = arith.constant 1 : index
    %c0_92 = arith.constant 0 : index
    %c0_93 = arith.constant 0 : index
    %243 = vector.load %arg6[%c1_91, %c0_92, %c0_93] : memref<4x32x128xbf16, #tpu.memory_space<vmem>>, vector<1x32x128xbf16>
    %244 = vector.shape_cast %243 : vector<1x32x128xbf16> to vector<32x128xbf16>
    %cst_94 = arith.constant dense<0.000000e+00> : vector<16x128xf32>
    %245 = tpu.matmul %242, %244, %cst_94 {dimension_numbers = #tpu.dot_dimension_numbers<[1], [0], [0], [1], [0, 0, 1, 1], [], []>} : vector<16x32xbf16>, vector<32x128xbf16>, vector<16x128xf32> -> vector<16x128xf32>
    %c1_95 = arith.constant 1 : index
    %c0_96 = arith.constant 0 : index
    %c0_97 = arith.constant 0 : index
    %246 = vector.load %arg7[%c1_95, %c0_96, %c0_97] : memref<4x1x128xf32, #tpu.memory_space<vmem>>, vector<1x1x128xf32>
    %247 = vector.shape_cast %246 : vector<1x1x128xf32> to vector<1x128xf32>
    %248 = vector.broadcast %247 : vector<1x128xf32> to vector<16x128xf32>
    %249 = arith.addf %245, %248 : vector<16x128xf32>
    %250 = arith.mulf %249, %249 : vector<16x128xf32>
    %251 = arith.mulf %249, %250 : vector<16x128xf32>
    %cst_98 = arith.constant 4.471500e-02 : f32
    %252 = vector.broadcast %cst_98 : f32 to vector<16x128xf32>
    %253 = arith.mulf %252, %251 : vector<16x128xf32>
    %254 = arith.addf %249, %253 : vector<16x128xf32>
    %cst_99 = arith.constant 0.797884583 : f32
    %255 = vector.broadcast %cst_99 : f32 to vector<16x128xf32>
    %256 = arith.mulf %255, %254 : vector<16x128xf32>
    %257 = math.tanh %256 : vector<16x128xf32>
    %cst_100 = arith.constant 1.000000e+00 : f32
    %258 = vector.broadcast %cst_100 : f32 to vector<16x128xf32>
    %259 = arith.addf %258, %257 : vector<16x128xf32>
    %cst_101 = arith.constant 5.000000e-01 : f32
    %260 = vector.broadcast %cst_101 : f32 to vector<16x128xf32>
    %261 = arith.mulf %260, %259 : vector<16x128xf32>
    %262 = arith.mulf %249, %261 : vector<16x128xf32>
    %263 = arith.truncf %262 : vector<16x128xf32> to vector<16x128xbf16>
    %c1_102 = arith.constant 1 : index
    %c0_103 = arith.constant 0 : index
    %c0_104 = arith.constant 0 : index
    %264 = vector.load %arg8[%c1_102, %c0_103, %c0_104] : memref<4x128x32xbf16, #tpu.memory_space<vmem>>, vector<1x128x32xbf16>
    %265 = vector.shape_cast %264 : vector<1x128x32xbf16> to vector<128x32xbf16>
    %cst_105 = arith.constant dense<0.000000e+00> : vector<16x32xf32>
    %266 = tpu.matmul %263, %265, %cst_105 {dimension_numbers = #tpu.dot_dimension_numbers<[1], [0], [0], [1], [0, 0, 1, 1], [], []>} : vector<16x128xbf16>, vector<128x32xbf16>, vector<16x32xf32> -> vector<16x32xf32>
    %267 = arith.addf %223, %266 : vector<16x32xf32>
    %268 = vector.broadcast %165 : vector<1x32xf32> to vector<16x32xf32>
    %269 = arith.addf %267, %268 : vector<16x32xf32>
    %c2 = arith.constant 2 : index
    %c0_106 = arith.constant 0 : index
    %c0_107 = arith.constant 0 : index
    %270 = vector.load %arg9[%c2, %c0_106, %c0_107] : memref<4x2x32xf32, #tpu.memory_space<vmem>>, vector<1x2x32xf32>
    %271 = vector.shape_cast %270 : vector<1x2x32xf32> to vector<2x32xf32>
    %272 = vector.extract_strided_slice %271 {offsets = [0, 0], sizes = [1, 32], strides = [1, 1]} : vector<2x32xf32> to vector<1x32xf32>
    %273 = vector.extract_strided_slice %271 {offsets = [1, 0], sizes = [1, 32], strides = [1, 1]} : vector<2x32xf32> to vector<1x32xf32>
    %cst_108 = arith.constant dense<0.000000e+00> : vector<16xf32>
    %274 = vector.multi_reduction <add>, %269, %cst_108 [1] : vector<16x32xf32> to vector<16xf32>
    %275 = vector.shape_cast %274 : vector<16xf32> to vector<16x1xf32>
    %cst_109 = arith.constant 3.200000e+01 : f32
    %276 = vector.broadcast %cst_109 : f32 to vector<16x1xf32>
    %277 = arith.divf %275, %276 : vector<16x1xf32>
    %278 = arith.mulf %269, %269 : vector<16x32xf32>
    %cst_110 = arith.constant dense<0.000000e+00> : vector<16xf32>
    %279 = vector.multi_reduction <add>, %278, %cst_110 [1] : vector<16x32xf32> to vector<16xf32>
    %280 = vector.shape_cast %279 : vector<16xf32> to vector<16x1xf32>
    %cst_111 = arith.constant 3.200000e+01 : f32
    %281 = vector.broadcast %cst_111 : f32 to vector<16x1xf32>
    %282 = arith.divf %280, %281 : vector<16x1xf32>
    %283 = arith.mulf %277, %277 : vector<16x1xf32>
    %284 = arith.subf %282, %283 : vector<16x1xf32>
    %285 = vector.broadcast %277 : vector<16x1xf32> to vector<16x32xf32>
    %286 = arith.subf %269, %285 : vector<16x32xf32>
    %cst_112 = arith.constant 9.99999974E-6 : f32
    %287 = vector.broadcast %cst_112 : f32 to vector<16x1xf32>
    %288 = arith.addf %284, %287 : vector<16x1xf32>
    %289 = math.rsqrt %288 : vector<16x1xf32>
    %290 = vector.broadcast %289 : vector<16x1xf32> to vector<16x32xf32>
    %291 = arith.mulf %286, %290 : vector<16x32xf32>
    %292 = arith.truncf %291 : vector<16x32xf32> to vector<16x32xbf16>
    %c2_113 = arith.constant 2 : index
    %c0_114 = arith.constant 0 : index
    %c0_115 = arith.constant 0 : index
    %293 = vector.load %arg3[%c2_113, %c0_114, %c0_115] : memref<4x32x96xbf16, #tpu.memory_space<vmem>>, vector<1x32x96xbf16>
    %294 = vector.shape_cast %293 : vector<1x32x96xbf16> to vector<32x96xbf16>
    %cst_116 = arith.constant dense<0.000000e+00> : vector<16x96xf32>
    %295 = tpu.matmul %292, %294, %cst_116 {dimension_numbers = #tpu.dot_dimension_numbers<[1], [0], [0], [1], [0, 0, 1, 1], [], []>} : vector<16x32xbf16>, vector<32x96xbf16>, vector<16x96xf32> -> vector<16x96xf32>
    %c2_117 = arith.constant 2 : index
    %c0_118 = arith.constant 0 : index
    %c0_119 = arith.constant 0 : index
    %296 = vector.load %arg4[%c2_117, %c0_118, %c0_119] : memref<4x1x96xf32, #tpu.memory_space<vmem>>, vector<1x1x96xf32>
    %297 = vector.shape_cast %296 : vector<1x1x96xf32> to vector<1x96xf32>
    %298 = vector.broadcast %297 : vector<1x96xf32> to vector<16x96xf32>
    %299 = arith.addf %295, %298 : vector<16x96xf32>
    %300 = vector.extract_strided_slice %299 {offsets = [0, 0], sizes = [16, 32], strides = [1, 1]} : vector<16x96xf32> to vector<16x32xf32>
    %301 = vector.extract_strided_slice %299 {offsets = [0, 32], sizes = [16, 32], strides = [1, 1]} : vector<16x96xf32> to vector<16x32xf32>
    %302 = vector.extract_strided_slice %299 {offsets = [0, 64], sizes = [16, 32], strides = [1, 1]} : vector<16x96xf32> to vector<16x32xf32>
    %303 = tpu.concatenate %300, %300, %300, %300 in 0 : vector<16x32xf32>, vector<16x32xf32>, vector<16x32xf32>, vector<16x32xf32> -> vector<64x32xf32>
    %304 = arith.mulf %303, %51 : vector<64x32xf32>
    %305 = arith.truncf %304 : vector<64x32xf32> to vector<64x32xbf16>
    %306 = arith.truncf %301 : vector<16x32xf32> to vector<16x32xbf16>
    %cst_120 = arith.constant dense<0.000000e+00> : vector<64x16xf32>
    %307 = tpu.matmul %305, %306, %cst_120 {dimension_numbers = #tpu.dot_dimension_numbers<[1], [1], [0], [0], [0, 0, 1, 0], [], []>} : vector<64x32xbf16>, vector<16x32xbf16>, vector<64x16xf32> -> vector<64x16xf32>
    %308 = arith.addf %307, %52 : vector<64x16xf32>
    %cst_121 = arith.constant dense<0xFF800000> : vector<64xf32>
    %309 = vector.multi_reduction <maximumf>, %308, %cst_121 [1] : vector<64x16xf32> to vector<64xf32>
    %310 = vector.shape_cast %309 : vector<64xf32> to vector<64x1xf32>
    %311 = vector.broadcast %310 : vector<64x1xf32> to vector<64x16xf32>
    %312 = arith.subf %308, %311 : vector<64x16xf32>
    %313 = math.exp %312 : vector<64x16xf32>
    %cst_122 = arith.constant dense<0.000000e+00> : vector<64xf32>
    %314 = vector.multi_reduction <add>, %313, %cst_122 [1] : vector<64x16xf32> to vector<64xf32>
    %315 = vector.shape_cast %314 : vector<64xf32> to vector<64x1xf32>
    %316 = tpu.reciprocal %315 {approx = true} : vector<64x1xf32> -> vector<64x1xf32>
    %317 = vector.broadcast %316 : vector<64x1xf32> to vector<64x16xf32>
    %318 = arith.mulf %313, %317 : vector<64x16xf32>
    %319 = arith.truncf %318 : vector<64x16xf32> to vector<64x16xbf16>
    %320 = arith.truncf %302 : vector<16x32xf32> to vector<16x32xbf16>
    %cst_123 = arith.constant dense<0.000000e+00> : vector<64x32xf32>
    %321 = tpu.matmul %319, %320, %cst_123 {dimension_numbers = #tpu.dot_dimension_numbers<[1], [0], [0], [1], [0, 0, 1, 1], [], []>} : vector<64x16xbf16>, vector<16x32xbf16>, vector<64x32xf32> -> vector<64x32xf32>
    %322 = arith.mulf %321, %51 : vector<64x32xf32>
    %323 = arith.truncf %322 : vector<64x32xf32> to vector<64x32xbf16>
    %cst_124 = arith.constant dense<0.000000e+00> : vector<16x32xf32>
    %324 = tpu.matmul %53, %323, %cst_124 {dimension_numbers = #tpu.dot_dimension_numbers<[1], [0], [0], [1], [0, 0, 1, 1], [], []>} : vector<16x64xbf16>, vector<64x32xbf16>, vector<16x32xf32> -> vector<16x32xf32>
    %325 = arith.truncf %324 : vector<16x32xf32> to vector<16x32xbf16>
    %c2_125 = arith.constant 2 : index
    %c0_126 = arith.constant 0 : index
    %c0_127 = arith.constant 0 : index
    %326 = vector.load %arg5[%c2_125, %c0_126, %c0_127] : memref<4x32x32xbf16, #tpu.memory_space<vmem>>, vector<1x32x32xbf16>
    %327 = vector.shape_cast %326 : vector<1x32x32xbf16> to vector<32x32xbf16>
    %cst_128 = arith.constant dense<0.000000e+00> : vector<16x32xf32>
    %328 = tpu.matmul %325, %327, %cst_128 {dimension_numbers = #tpu.dot_dimension_numbers<[1], [0], [0], [1], [0, 0, 1, 1], [], []>} : vector<16x32xbf16>, vector<32x32xbf16>, vector<16x32xf32> -> vector<16x32xf32>
    %329 = arith.addf %269, %328 : vector<16x32xf32>
    %330 = vector.broadcast %272 : vector<1x32xf32> to vector<16x32xf32>
    %331 = arith.addf %329, %330 : vector<16x32xf32>
    %cst_129 = arith.constant dense<0.000000e+00> : vector<16xf32>
    %332 = vector.multi_reduction <add>, %331, %cst_129 [1] : vector<16x32xf32> to vector<16xf32>
    %333 = vector.shape_cast %332 : vector<16xf32> to vector<16x1xf32>
    %cst_130 = arith.constant 3.200000e+01 : f32
    %334 = vector.broadcast %cst_130 : f32 to vector<16x1xf32>
    %335 = arith.divf %333, %334 : vector<16x1xf32>
    %336 = arith.mulf %331, %331 : vector<16x32xf32>
    %cst_131 = arith.constant dense<0.000000e+00> : vector<16xf32>
    %337 = vector.multi_reduction <add>, %336, %cst_131 [1] : vector<16x32xf32> to vector<16xf32>
    %338 = vector.shape_cast %337 : vector<16xf32> to vector<16x1xf32>
    %cst_132 = arith.constant 3.200000e+01 : f32
    %339 = vector.broadcast %cst_132 : f32 to vector<16x1xf32>
    %340 = arith.divf %338, %339 : vector<16x1xf32>
    %341 = arith.mulf %335, %335 : vector<16x1xf32>
    %342 = arith.subf %340, %341 : vector<16x1xf32>
    %343 = vector.broadcast %335 : vector<16x1xf32> to vector<16x32xf32>
    %344 = arith.subf %331, %343 : vector<16x32xf32>
    %cst_133 = arith.constant 9.99999974E-6 : f32
    %345 = vector.broadcast %cst_133 : f32 to vector<16x1xf32>
    %346 = arith.addf %342, %345 : vector<16x1xf32>
    %347 = math.rsqrt %346 : vector<16x1xf32>
    %348 = vector.broadcast %347 : vector<16x1xf32> to vector<16x32xf32>
    %349 = arith.mulf %344, %348 : vector<16x32xf32>
    %350 = arith.truncf %349 : vector<16x32xf32> to vector<16x32xbf16>
    %c2_134 = arith.constant 2 : index
    %c0_135 = arith.constant 0 : index
    %c0_136 = arith.constant 0 : index
    %351 = vector.load %arg6[%c2_134, %c0_135, %c0_136] : memref<4x32x128xbf16, #tpu.memory_space<vmem>>, vector<1x32x128xbf16>
    %352 = vector.shape_cast %351 : vector<1x32x128xbf16> to vector<32x128xbf16>
    %cst_137 = arith.constant dense<0.000000e+00> : vector<16x128xf32>
    %353 = tpu.matmul %350, %352, %cst_137 {dimension_numbers = #tpu.dot_dimension_numbers<[1], [0], [0], [1], [0, 0, 1, 1], [], []>} : vector<16x32xbf16>, vector<32x128xbf16>, vector<16x128xf32> -> vector<16x128xf32>
    %c2_138 = arith.constant 2 : index
    %c0_139 = arith.constant 0 : index
    %c0_140 = arith.constant 0 : index
    %354 = vector.load %arg7[%c2_138, %c0_139, %c0_140] : memref<4x1x128xf32, #tpu.memory_space<vmem>>, vector<1x1x128xf32>
    %355 = vector.shape_cast %354 : vector<1x1x128xf32> to vector<1x128xf32>
    %356 = vector.broadcast %355 : vector<1x128xf32> to vector<16x128xf32>
    %357 = arith.addf %353, %356 : vector<16x128xf32>
    %358 = arith.mulf %357, %357 : vector<16x128xf32>
    %359 = arith.mulf %357, %358 : vector<16x128xf32>
    %cst_141 = arith.constant 4.471500e-02 : f32
    %360 = vector.broadcast %cst_141 : f32 to vector<16x128xf32>
    %361 = arith.mulf %360, %359 : vector<16x128xf32>
    %362 = arith.addf %357, %361 : vector<16x128xf32>
    %cst_142 = arith.constant 0.797884583 : f32
    %363 = vector.broadcast %cst_142 : f32 to vector<16x128xf32>
    %364 = arith.mulf %363, %362 : vector<16x128xf32>
    %365 = math.tanh %364 : vector<16x128xf32>
    %cst_143 = arith.constant 1.000000e+00 : f32
    %366 = vector.broadcast %cst_143 : f32 to vector<16x128xf32>
    %367 = arith.addf %366, %365 : vector<16x128xf32>
    %cst_144 = arith.constant 5.000000e-01 : f32
    %368 = vector.broadcast %cst_144 : f32 to vector<16x128xf32>
    %369 = arith.mulf %368, %367 : vector<16x128xf32>
    %370 = arith.mulf %357, %369 : vector<16x128xf32>
    %371 = arith.truncf %370 : vector<16x128xf32> to vector<16x128xbf16>
    %c2_145 = arith.constant 2 : index
    %c0_146 = arith.constant 0 : index
    %c0_147 = arith.constant 0 : index
    %372 = vector.load %arg8[%c2_145, %c0_146, %c0_147] : memref<4x128x32xbf16, #tpu.memory_space<vmem>>, vector<1x128x32xbf16>
    %373 = vector.shape_cast %372 : vector<1x128x32xbf16> to vector<128x32xbf16>
    %cst_148 = arith.constant dense<0.000000e+00> : vector<16x32xf32>
    %374 = tpu.matmul %371, %373, %cst_148 {dimension_numbers = #tpu.dot_dimension_numbers<[1], [0], [0], [1], [0, 0, 1, 1], [], []>} : vector<16x128xbf16>, vector<128x32xbf16>, vector<16x32xf32> -> vector<16x32xf32>
    %375 = arith.addf %331, %374 : vector<16x32xf32>
    %376 = vector.broadcast %273 : vector<1x32xf32> to vector<16x32xf32>
    %377 = arith.addf %375, %376 : vector<16x32xf32>
    %c3 = arith.constant 3 : index
    %c0_149 = arith.constant 0 : index
    %c0_150 = arith.constant 0 : index
    %378 = vector.load %arg9[%c3, %c0_149, %c0_150] : memref<4x2x32xf32, #tpu.memory_space<vmem>>, vector<1x2x32xf32>
    %379 = vector.shape_cast %378 : vector<1x2x32xf32> to vector<2x32xf32>
    %380 = vector.extract_strided_slice %379 {offsets = [0, 0], sizes = [1, 32], strides = [1, 1]} : vector<2x32xf32> to vector<1x32xf32>
    %381 = vector.extract_strided_slice %379 {offsets = [1, 0], sizes = [1, 32], strides = [1, 1]} : vector<2x32xf32> to vector<1x32xf32>
    %cst_151 = arith.constant dense<0.000000e+00> : vector<16xf32>
    %382 = vector.multi_reduction <add>, %377, %cst_151 [1] : vector<16x32xf32> to vector<16xf32>
    %383 = vector.shape_cast %382 : vector<16xf32> to vector<16x1xf32>
    %cst_152 = arith.constant 3.200000e+01 : f32
    %384 = vector.broadcast %cst_152 : f32 to vector<16x1xf32>
    %385 = arith.divf %383, %384 : vector<16x1xf32>
    %386 = arith.mulf %377, %377 : vector<16x32xf32>
    %cst_153 = arith.constant dense<0.000000e+00> : vector<16xf32>
    %387 = vector.multi_reduction <add>, %386, %cst_153 [1] : vector<16x32xf32> to vector<16xf32>
    %388 = vector.shape_cast %387 : vector<16xf32> to vector<16x1xf32>
    %cst_154 = arith.constant 3.200000e+01 : f32
    %389 = vector.broadcast %cst_154 : f32 to vector<16x1xf32>
    %390 = arith.divf %388, %389 : vector<16x1xf32>
    %391 = arith.mulf %385, %385 : vector<16x1xf32>
    %392 = arith.subf %390, %391 : vector<16x1xf32>
    %393 = vector.broadcast %385 : vector<16x1xf32> to vector<16x32xf32>
    %394 = arith.subf %377, %393 : vector<16x32xf32>
    %cst_155 = arith.constant 9.99999974E-6 : f32
    %395 = vector.broadcast %cst_155 : f32 to vector<16x1xf32>
    %396 = arith.addf %392, %395 : vector<16x1xf32>
    %397 = math.rsqrt %396 : vector<16x1xf32>
    %398 = vector.broadcast %397 : vector<16x1xf32> to vector<16x32xf32>
    %399 = arith.mulf %394, %398 : vector<16x32xf32>
    %400 = arith.truncf %399 : vector<16x32xf32> to vector<16x32xbf16>
    %c3_156 = arith.constant 3 : index
    %c0_157 = arith.constant 0 : index
    %c0_158 = arith.constant 0 : index
    %401 = vector.load %arg3[%c3_156, %c0_157, %c0_158] : memref<4x32x96xbf16, #tpu.memory_space<vmem>>, vector<1x32x96xbf16>
    %402 = vector.shape_cast %401 : vector<1x32x96xbf16> to vector<32x96xbf16>
    %cst_159 = arith.constant dense<0.000000e+00> : vector<16x96xf32>
    %403 = tpu.matmul %400, %402, %cst_159 {dimension_numbers = #tpu.dot_dimension_numbers<[1], [0], [0], [1], [0, 0, 1, 1], [], []>} : vector<16x32xbf16>, vector<32x96xbf16>, vector<16x96xf32> -> vector<16x96xf32>
    %c3_160 = arith.constant 3 : index
    %c0_161 = arith.constant 0 : index
    %c0_162 = arith.constant 0 : index
    %404 = vector.load %arg4[%c3_160, %c0_161, %c0_162] : memref<4x1x96xf32, #tpu.memory_space<vmem>>, vector<1x1x96xf32>
    %405 = vector.shape_cast %404 : vector<1x1x96xf32> to vector<1x96xf32>
    %406 = vector.broadcast %405 : vector<1x96xf32> to vector<16x96xf32>
    %407 = arith.addf %403, %406 : vector<16x96xf32>
    %408 = vector.extract_strided_slice %407 {offsets = [0, 0], sizes = [16, 32], strides = [1, 1]} : vector<16x96xf32> to vector<16x32xf32>
    %409 = vector.extract_strided_slice %407 {offsets = [0, 32], sizes = [16, 32], strides = [1, 1]} : vector<16x96xf32> to vector<16x32xf32>
    %410 = vector.extract_strided_slice %407 {offsets = [0, 64], sizes = [16, 32], strides = [1, 1]} : vector<16x96xf32> to vector<16x32xf32>
    %411 = tpu.concatenate %408, %408, %408, %408 in 0 : vector<16x32xf32>, vector<16x32xf32>, vector<16x32xf32>, vector<16x32xf32> -> vector<64x32xf32>
    %412 = arith.mulf %411, %51 : vector<64x32xf32>
    %413 = arith.truncf %412 : vector<64x32xf32> to vector<64x32xbf16>
    %414 = arith.truncf %409 : vector<16x32xf32> to vector<16x32xbf16>
    %cst_163 = arith.constant dense<0.000000e+00> : vector<64x16xf32>
    %415 = tpu.matmul %413, %414, %cst_163 {dimension_numbers = #tpu.dot_dimension_numbers<[1], [1], [0], [0], [0, 0, 1, 0], [], []>} : vector<64x32xbf16>, vector<16x32xbf16>, vector<64x16xf32> -> vector<64x16xf32>
    %416 = arith.addf %415, %52 : vector<64x16xf32>
    %cst_164 = arith.constant dense<0xFF800000> : vector<64xf32>
    %417 = vector.multi_reduction <maximumf>, %416, %cst_164 [1] : vector<64x16xf32> to vector<64xf32>
    %418 = vector.shape_cast %417 : vector<64xf32> to vector<64x1xf32>
    %419 = vector.broadcast %418 : vector<64x1xf32> to vector<64x16xf32>
    %420 = arith.subf %416, %419 : vector<64x16xf32>
    %421 = math.exp %420 : vector<64x16xf32>
    %cst_165 = arith.constant dense<0.000000e+00> : vector<64xf32>
    %422 = vector.multi_reduction <add>, %421, %cst_165 [1] : vector<64x16xf32> to vector<64xf32>
    %423 = vector.shape_cast %422 : vector<64xf32> to vector<64x1xf32>
    %424 = tpu.reciprocal %423 {approx = true} : vector<64x1xf32> -> vector<64x1xf32>
    %425 = vector.broadcast %424 : vector<64x1xf32> to vector<64x16xf32>
    %426 = arith.mulf %421, %425 : vector<64x16xf32>
    %427 = arith.truncf %426 : vector<64x16xf32> to vector<64x16xbf16>
    %428 = arith.truncf %410 : vector<16x32xf32> to vector<16x32xbf16>
    %cst_166 = arith.constant dense<0.000000e+00> : vector<64x32xf32>
    %429 = tpu.matmul %427, %428, %cst_166 {dimension_numbers = #tpu.dot_dimension_numbers<[1], [0], [0], [1], [0, 0, 1, 1], [], []>} : vector<64x16xbf16>, vector<16x32xbf16>, vector<64x32xf32> -> vector<64x32xf32>
    %430 = arith.mulf %429, %51 : vector<64x32xf32>
    %431 = arith.truncf %430 : vector<64x32xf32> to vector<64x32xbf16>
    %cst_167 = arith.constant dense<0.000000e+00> : vector<16x32xf32>
    %432 = tpu.matmul %53, %431, %cst_167 {dimension_numbers = #tpu.dot_dimension_numbers<[1], [0], [0], [1], [0, 0, 1, 1], [], []>} : vector<16x64xbf16>, vector<64x32xbf16>, vector<16x32xf32> -> vector<16x32xf32>
    %433 = arith.truncf %432 : vector<16x32xf32> to vector<16x32xbf16>
    %c3_168 = arith.constant 3 : index
    %c0_169 = arith.constant 0 : index
    %c0_170 = arith.constant 0 : index
    %434 = vector.load %arg5[%c3_168, %c0_169, %c0_170] : memref<4x32x32xbf16, #tpu.memory_space<vmem>>, vector<1x32x32xbf16>
    %435 = vector.shape_cast %434 : vector<1x32x32xbf16> to vector<32x32xbf16>
    %cst_171 = arith.constant dense<0.000000e+00> : vector<16x32xf32>
    %436 = tpu.matmul %433, %435, %cst_171 {dimension_numbers = #tpu.dot_dimension_numbers<[1], [0], [0], [1], [0, 0, 1, 1], [], []>} : vector<16x32xbf16>, vector<32x32xbf16>, vector<16x32xf32> -> vector<16x32xf32>
    %437 = arith.addf %377, %436 : vector<16x32xf32>
    %438 = vector.broadcast %380 : vector<1x32xf32> to vector<16x32xf32>
    %439 = arith.addf %437, %438 : vector<16x32xf32>
    %cst_172 = arith.constant dense<0.000000e+00> : vector<16xf32>
    %440 = vector.multi_reduction <add>, %439, %cst_172 [1] : vector<16x32xf32> to vector<16xf32>
    %441 = vector.shape_cast %440 : vector<16xf32> to vector<16x1xf32>
    %cst_173 = arith.constant 3.200000e+01 : f32
    %442 = vector.broadcast %cst_173 : f32 to vector<16x1xf32>
    %443 = arith.divf %441, %442 : vector<16x1xf32>
    %444 = arith.mulf %439, %439 : vector<16x32xf32>
    %cst_174 = arith.constant dense<0.000000e+00> : vector<16xf32>
    %445 = vector.multi_reduction <add>, %444, %cst_174 [1] : vector<16x32xf32> to vector<16xf32>
    %446 = vector.shape_cast %445 : vector<16xf32> to vector<16x1xf32>
    %cst_175 = arith.constant 3.200000e+01 : f32
    %447 = vector.broadcast %cst_175 : f32 to vector<16x1xf32>
    %448 = arith.divf %446, %447 : vector<16x1xf32>
    %449 = arith.mulf %443, %443 : vector<16x1xf32>
    %450 = arith.subf %448, %449 : vector<16x1xf32>
    %451 = vector.broadcast %443 : vector<16x1xf32> to vector<16x32xf32>
    %452 = arith.subf %439, %451 : vector<16x32xf32>
    %cst_176 = arith.constant 9.99999974E-6 : f32
    %453 = vector.broadcast %cst_176 : f32 to vector<16x1xf32>
    %454 = arith.addf %450, %453 : vector<16x1xf32>
    %455 = math.rsqrt %454 : vector<16x1xf32>
    %456 = vector.broadcast %455 : vector<16x1xf32> to vector<16x32xf32>
    %457 = arith.mulf %452, %456 : vector<16x32xf32>
    %458 = arith.truncf %457 : vector<16x32xf32> to vector<16x32xbf16>
    %c3_177 = arith.constant 3 : index
    %c0_178 = arith.constant 0 : index
    %c0_179 = arith.constant 0 : index
    %459 = vector.load %arg6[%c3_177, %c0_178, %c0_179] : memref<4x32x128xbf16, #tpu.memory_space<vmem>>, vector<1x32x128xbf16>
    %460 = vector.shape_cast %459 : vector<1x32x128xbf16> to vector<32x128xbf16>
    %cst_180 = arith.constant dense<0.000000e+00> : vector<16x128xf32>
    %461 = tpu.matmul %458, %460, %cst_180 {dimension_numbers = #tpu.dot_dimension_numbers<[1], [0], [0], [1], [0, 0, 1, 1], [], []>} : vector<16x32xbf16>, vector<32x128xbf16>, vector<16x128xf32> -> vector<16x128xf32>
    %c3_181 = arith.constant 3 : index
    %c0_182 = arith.constant 0 : index
    %c0_183 = arith.constant 0 : index
    %462 = vector.load %arg7[%c3_181, %c0_182, %c0_183] : memref<4x1x128xf32, #tpu.memory_space<vmem>>, vector<1x1x128xf32>
    %463 = vector.shape_cast %462 : vector<1x1x128xf32> to vector<1x128xf32>
    %464 = vector.broadcast %463 : vector<1x128xf32> to vector<16x128xf32>
    %465 = arith.addf %461, %464 : vector<16x128xf32>
    %466 = arith.mulf %465, %465 : vector<16x128xf32>
    %467 = arith.mulf %465, %466 : vector<16x128xf32>
    %cst_184 = arith.constant 4.471500e-02 : f32
    %468 = vector.broadcast %cst_184 : f32 to vector<16x128xf32>
    %469 = arith.mulf %468, %467 : vector<16x128xf32>
    %470 = arith.addf %465, %469 : vector<16x128xf32>
    %cst_185 = arith.constant 0.797884583 : f32
    %471 = vector.broadcast %cst_185 : f32 to vector<16x128xf32>
    %472 = arith.mulf %471, %470 : vector<16x128xf32>
    %473 = math.tanh %472 : vector<16x128xf32>
    %cst_186 = arith.constant 1.000000e+00 : f32
    %474 = vector.broadcast %cst_186 : f32 to vector<16x128xf32>
    %475 = arith.addf %474, %473 : vector<16x128xf32>
    %cst_187 = arith.constant 5.000000e-01 : f32
    %476 = vector.broadcast %cst_187 : f32 to vector<16x128xf32>
    %477 = arith.mulf %476, %475 : vector<16x128xf32>
    %478 = arith.mulf %465, %477 : vector<16x128xf32>
    %479 = arith.truncf %478 : vector<16x128xf32> to vector<16x128xbf16>
    %c3_188 = arith.constant 3 : index
    %c0_189 = arith.constant 0 : index
    %c0_190 = arith.constant 0 : index
    %480 = vector.load %arg8[%c3_188, %c0_189, %c0_190] : memref<4x128x32xbf16, #tpu.memory_space<vmem>>, vector<1x128x32xbf16>
    %481 = vector.shape_cast %480 : vector<1x128x32xbf16> to vector<128x32xbf16>
    %cst_191 = arith.constant dense<0.000000e+00> : vector<16x32xf32>
    %482 = tpu.matmul %479, %481, %cst_191 {dimension_numbers = #tpu.dot_dimension_numbers<[1], [0], [0], [1], [0, 0, 1, 1], [], []>} : vector<16x128xbf16>, vector<128x32xbf16>, vector<16x32xf32> -> vector<16x32xf32>
    %483 = arith.addf %439, %482 : vector<16x32xf32>
    %484 = vector.broadcast %381 : vector<1x32xf32> to vector<16x32xf32>
    %485 = arith.addf %483, %484 : vector<16x32xf32>
    %cst_192 = arith.constant dense<0.000000e+00> : vector<16xf32>
    %486 = vector.multi_reduction <add>, %485, %cst_192 [1] : vector<16x32xf32> to vector<16xf32>
    %487 = vector.shape_cast %486 : vector<16xf32> to vector<16x1xf32>
    %cst_193 = arith.constant 3.200000e+01 : f32
    %488 = vector.broadcast %cst_193 : f32 to vector<16x1xf32>
    %489 = arith.divf %487, %488 : vector<16x1xf32>
    %490 = arith.mulf %485, %485 : vector<16x32xf32>
    %cst_194 = arith.constant dense<0.000000e+00> : vector<16xf32>
    %491 = vector.multi_reduction <add>, %490, %cst_194 [1] : vector<16x32xf32> to vector<16xf32>
    %492 = vector.shape_cast %491 : vector<16xf32> to vector<16x1xf32>
    %cst_195 = arith.constant 3.200000e+01 : f32
    %493 = vector.broadcast %cst_195 : f32 to vector<16x1xf32>
    %494 = arith.divf %492, %493 : vector<16x1xf32>
    %495 = arith.mulf %489, %489 : vector<16x1xf32>
    %496 = arith.subf %494, %495 : vector<16x1xf32>
    %497 = vector.broadcast %489 : vector<16x1xf32> to vector<16x32xf32>
    %498 = arith.subf %485, %497 : vector<16x32xf32>
    %cst_196 = arith.constant 9.99999974E-6 : f32
    %499 = vector.broadcast %cst_196 : f32 to vector<16x1xf32>
    %500 = arith.addf %496, %499 : vector<16x1xf32>
    %501 = math.rsqrt %500 : vector<16x1xf32>
    %502 = vector.broadcast %501 : vector<16x1xf32> to vector<16x32xf32>
    %503 = arith.mulf %498, %502 : vector<16x32xf32>
    %504 = arith.truncf %503 : vector<16x32xf32> to vector<16x32xbf16>
    %c0_197 = arith.constant 0 : index
    %c0_198 = arith.constant 0 : index
    %505 = vector.load %arg10[%c0_197, %c0_198] : memref<32x128xbf16, #tpu.memory_space<vmem>>, vector<32x128xbf16>
    %cst_199 = arith.constant dense<0.000000e+00> : vector<16x128xf32>
    %506 = tpu.matmul %504, %505, %cst_199 {dimension_numbers = #tpu.dot_dimension_numbers<[1], [0], [0], [1], [0, 0, 1, 1], [], []>} : vector<16x32xbf16>, vector<32x128xbf16>, vector<16x128xf32> -> vector<16x128xf32>
    %c0_200 = arith.constant 0 : index
    %c0_201 = arith.constant 0 : index
    %507 = vector.load %arg11[%c0_200, %c0_201] : memref<1x128xf32, #tpu.memory_space<vmem>>, vector<1x128xf32>
    %508 = vector.broadcast %507 : vector<1x128xf32> to vector<16x128xf32>
    %509 = arith.addf %506, %508 : vector<16x128xf32>
    %c0_202 = arith.constant 0 : index
    %c0_203 = arith.constant 0 : index
    %510 = vector.load %arg15[%c0_202, %c0_203] : memref<16x128xf32, #tpu.memory_space<vmem>>, vector<16x128xf32>
    tpu.vector_store %arg15[%c0_202, %c0_203], %509 {strides = array<i32>} : memref<16x128xf32, #tpu.memory_space<vmem>>, vector<16x128xf32>,
    return
  }
  func.func @transform_0(%arg0: i32) -> (i32, i32) {
    %c0_i32 = arith.constant 0 : i32
    %c0_i32_0 = arith.constant 0 : i32
    return %arg0, %c0_i32 : i32, i32
  }
  func.func @transform_1(%arg0: i32) -> (i32, i32) {
    %c0_i32 = arith.constant 0 : i32
    %c0_i32_0 = arith.constant 0 : i32
    %c0_i32_1 = arith.constant 0 : i32
    return %c0_i32, %c0_i32_0 : i32, i32
  }
  func.func @transform_2(%arg0: i32) -> (i32, i32, i32) {
    %c0_i32 = arith.constant 0 : i32
    %c0_i32_0 = arith.constant 0 : i32
    %c0_i32_1 = arith.constant 0 : i32
    %c0_i32_2 = arith.constant 0 : i32
    return %c0_i32, %c0_i32_0, %c0_i32_1 : i32, i32, i32
  }
  func.func @transform_3(%arg0: i32) -> (i32, i32, i32) {
    %c0_i32 = arith.constant 0 : i32
    %c0_i32_0 = arith.constant 0 : i32
    %c0_i32_1 = arith.constant 0 : i32
    %c0_i32_2 = arith.constant 0 : i32
    return %c0_i32, %c0_i32_0, %c0_i32_1 : i32, i32, i32
  }
  func.func @transform_4(%arg0: i32) -> (i32, i32, i32) {
    %c0_i32 = arith.constant 0 : i32
    %c0_i32_0 = arith.constant 0 : i32
    %c0_i32_1 = arith.constant 0 : i32
    %c0_i32_2 = arith.constant 0 : i32
    return %c0_i32, %c0_i32_0, %c0_i32_1 : i32, i32, i32
  }
  func.func @transform_5(%arg0: i32) -> (i32, i32, i32) {
    %c0_i32 = arith.constant 0 : i32
    %c0_i32_0 = arith.constant 0 : i32
    %c0_i32_1 = arith.constant 0 : i32
    %c0_i32_2 = arith.constant 0 : i32
    return %c0_i32, %c0_i32_0, %c0_i32_1 : i32, i32, i32
  }
  func.func @transform_6(%arg0: i32) -> (i32, i32, i32) {
    %c0_i32 = arith.constant 0 : i32
    %c0_i32_0 = arith.constant 0 : i32
    %c0_i32_1 = arith.constant 0 : i32
    %c0_i32_2 = arith.constant 0 : i32
    return %c0_i32, %c0_i32_0, %c0_i32_1 : i32, i32, i32
  }
  func.func @transform_7(%arg0: i32) -> (i32, i32, i32) {
    %c0_i32 = arith.constant 0 : i32
    %c0_i32_0 = arith.constant 0 : i32
    %c0_i32_1 = arith.constant 0 : i32
    %c0_i32_2 = arith.constant 0 : i32
    return %c0_i32, %c0_i32_0, %c0_i32_1 : i32, i32, i32
  }
  func.func @transform_8(%arg0: i32) -> (i32, i32, i32) {
    %c0_i32 = arith.constant 0 : i32
    %c0_i32_0 = arith.constant 0 : i32
    %c0_i32_1 = arith.constant 0 : i32
    %c0_i32_2 = arith.constant 0 : i32
    return %c0_i32, %c0_i32_0, %c0_i32_1 : i32, i32, i32
  }
  func.func @transform_9(%arg0: i32) -> (i32, i32) {
    %c0_i32 = arith.constant 0 : i32
    %c0_i32_0 = arith.constant 0 : i32
    %c0_i32_1 = arith.constant 0 : i32
    return %c0_i32, %c0_i32_0 : i32, i32
  }
  func.func @transform_10(%arg0: i32) -> (i32, i32) {
    %c0_i32 = arith.constant 0 : i32
    %c0_i32_0 = arith.constant 0 : i32
    %c0_i32_1 = arith.constant 0 : i32
    return %c0_i32, %c0_i32_0 : i32, i32
  }
  func.func @transform_11(%arg0: i32) -> (i32, i32) {
    %c0_i32 = arith.constant 0 : i32
    %c0_i32_0 = arith.constant 0 : i32
    %c0_i32_1 = arith.constant 0 : i32
    return %c0_i32, %c0_i32_0 : i32, i32
  }
  func.func @transform_12(%arg0: i32) -> (i32, i32) {
    %c0_i32 = arith.constant 0 : i32
    %c0_i32_0 = arith.constant 0 : i32
    %c0_i32_1 = arith.constant 0 : i32
    return %c0_i32, %c0_i32_0 : i32, i32
  }
  func.func @transform_13(%arg0: i32) -> (i32, i32) {
    %c0_i32 = arith.constant 0 : i32
    %c0_i32_0 = arith.constant 0 : i32
    %c0_i32_1 = arith.constant 0 : i32
    return %c0_i32, %c0_i32_0 : i32, i32
  }
  func.func @transform_14(%arg0: i32) -> (i32, i32) {
    %c0_i32 = arith.constant 0 : i32
    %c0_i32_0 = arith.constant 0 : i32
    return %arg0, %c0_i32 : i32, i32
  }
}

</mosaic_0001>

<llo_original>
// kernel: tpu_custom_call.1
$region0: #{tpu_custom_call.1}
  #allocation0 [shape = 'u32[]', space=smem, size = 0x4, offset = 0x4, fixed_abs, tag = 'smem constant byte address 0x4 - core index']
  #allocation1 [shape = 'u32[72,128]{1,0:T(1,128)}', space=vmem, size = 0x9000, scoped, tag = 'internal scratch']
  %s0 = inlined_call_operand.vmem [shape: s32[16,1], index: 0, kind: input, shape index: {}]
  %s1 = inlined_call_operand.vmem [shape: bf16[72,32], index: 1, kind: input, shape index: {}]
  %s2 = inlined_call_operand.vmem [shape: bf16[4,32,96], index: 2, kind: input, shape index: {}]
  %s3 = inlined_call_operand.vmem [shape: f32[4,1,96], index: 3, kind: input, shape index: {}]
  %s4 = inlined_call_operand.vmem [shape: bf16[4,32,32], index: 4, kind: input, shape index: {}]
  %s5 = inlined_call_operand.vmem [shape: bf16[4,32,128], index: 5, kind: input, shape index: {}]
  %s6 = inlined_call_operand.vmem [shape: f32[4,1,128], index: 6, kind: input, shape index: {}]
  %s7 = inlined_call_operand.vmem [shape: bf16[4,128,32], index: 7, kind: input, shape index: {}]
  %s8 = inlined_call_operand.vmem [shape: f32[4,2,32], index: 8, kind: input, shape index: {}]
  %s9 = inlined_call_operand.vmem [shape: bf16[32,128], index: 9, kind: input, shape index: {}]
  %s10 = inlined_call_operand.vmem [shape: f32[1,128], index: 10, kind: input, shape index: {}]
  %s11 = inlined_call_operand.vmem [shape: f32[64,32], index: 11, kind: input, shape index: {}]
  %s12 = inlined_call_operand.vmem [shape: f32[64,16], index: 12, kind: input, shape index: {}]
  %s13 = inlined_call_operand.vmem [shape: bf16[16,64], index: 13, kind: input, shape index: {}]
  %s14 = inlined_call_operand.hbm [shape: f32[16,128], index: 14, kind: output, shape index: {}]
  %s15 = sld [smem:[#allocation0]]
  $region66: #{tpu_custom_call.1} parent=0
    _
  %s17 = ssub.s32 1, %s15
  %s18 = scalar_select 0, %s17, %s15
  $region1: #{tpu_custom_call.1} parent=0
    #allocation2 [shape = 'u8[8192]{0}', space=vmem, size = 0x2000, scoped, tag = 'output window, operand 0, single buffered']
    #allocation3 [shape = 's32[1]{0}', space=sflag, size = 0x4, scoped, tag = 'scoped memory for tpu_custom_call.1']
    %19 = vsyncpa [#allocation3], 0
    // Predicated region
    $region2: #{tpu_custom_call.1} parent=1 // pred_check
      _
    $region3: #{tpu_custom_call.1} parent=1 // pred_check_branch
      %21 = sbr.rel (0) target = $region5
    $region4: #{tpu_custom_call.1} parent=1 // pred_region
      _
    $region5: #{tpu_custom_call.1} parent=1 // pred_fallthru
      _
    // Predicated region
    $region6: #{tpu_custom_call.1} parent=1 // pred_check
      _
    $region7: #{tpu_custom_call.1} parent=1 // pred_check_branch
      %23 = sbr.rel (0) target = $region9
    $region8: #{tpu_custom_call.1} parent=1 // pred_region
      _
    $region9: #{tpu_custom_call.1} parent=1 // pred_fallthru
      _
    // Predicated region
    $region10: #{tpu_custom_call.1} parent=1 // pred_check
      _
    $region11: #{tpu_custom_call.1} parent=1 // pred_check_branch
      %25 = sbr.rel (0) target = $region13
    $region12: #{tpu_custom_call.1} parent=1 // pred_region
      _
    $region13: #{tpu_custom_call.1} parent=1 // pred_fallthru
      _
    // Predicated region
    $region14: #{tpu_custom_call.1} parent=1 // pred_check
      _
    $region15: #{tpu_custom_call.1} parent=1 // pred_check_branch
      %27 = sbr.rel (0) target = $region17
    $region16: #{tpu_custom_call.1} parent=1 // pred_region
      _
    $region17: #{tpu_custom_call.1} parent=1 // pred_fallthru
      _
    // Predicated region
    $region18: #{tpu_custom_call.1} parent=1 // pred_check
      _
    $region19: #{tpu_custom_call.1} parent=1 // pred_check_branch
      %29 = sbr.rel (0) target = $region21
    $region20: #{tpu_custom_call.1} parent=1 // pred_region
      _
    $region21: #{tpu_custom_call.1} parent=1 // pred_fallthru
      _
    // Predicated region
    $region22: #{tpu_custom_call.1} parent=1 // pred_check
      _
    $region23: #{tpu_custom_call.1} parent=1 // pred_check_branch
      %31 = sbr.rel (0) target = $region25
    $region24: #{tpu_custom_call.1} parent=1 // pred_region
      _
    $region25: #{tpu_custom_call.1} parent=1 // pred_fallthru
      _
    // Predicated region
    $region26: #{tpu_custom_call.1} parent=1 // pred_check
      _
    $region27: #{tpu_custom_call.1} parent=1 // pred_check_branch
      %33 = sbr.rel (0) target = $region29
    $region28: #{tpu_custom_call.1} parent=1 // pred_region
      _
    $region29: #{tpu_custom_call.1} parent=1 // pred_fallthru
      _
    // Predicated region
    $region30: #{tpu_custom_call.1} parent=1 // pred_check
      _
    $region31: #{tpu_custom_call.1} parent=1 // pred_check_branch
      %35 = sbr.rel (0) target = $region33
    $region32: #{tpu_custom_call.1} parent=1 // pred_region
      _
    $region33: #{tpu_custom_call.1} parent=1 // pred_fallthru
      _
    // Predicated region
    $region34: #{tpu_custom_call.1} parent=1 // pred_check
      _
    $region35: #{tpu_custom_call.1} parent=1 // pred_check_branch
      %37 = sbr.rel (0) target = $region37
    $region36: #{tpu_custom_call.1} parent=1 // pred_region
      _
    $region37: #{tpu_custom_call.1} parent=1 // pred_fallthru
      _
    // Predicated region
    $region38: #{tpu_custom_call.1} parent=1 // pred_check
      _
    $region39: #{tpu_custom_call.1} parent=1 // pred_check_branch
      %39 = sbr.rel (0) target = $region41
    $region40: #{tpu_custom_call.1} parent=1 // pred_region
      _
    $region41: #{tpu_custom_call.1} parent=1 // pred_fallthru
      _
    // Predicated region
    $region42: #{tpu_custom_call.1} parent=1 // pred_check
      _
    $region43: #{tpu_custom_call.1} parent=1 // pred_check_branch
      %41 = sbr.rel (0) target = $region45
    $region44: #{tpu_custom_call.1} parent=1 // pred_region
      _
    $region45: #{tpu_custom_call.1} parent=1 // pred_fallthru
      _
    // Predicated region
    $region46: #{tpu_custom_call.1} parent=1 // pred_check
      _
    $region47: #{tpu_custom_call.1} parent=1 // pred_check_branch
      %43 = sbr.rel (0) target = $region49
    $region48: #{tpu_custom_call.1} parent=1 // pred_region
      _
    $region49: #{tpu_custom_call.1} parent=1 // pred_fallthru
      _
    // Predicated region
    $region50: #{tpu_custom_call.1} parent=1 // pred_check
      _
    $region51: #{tpu_custom_call.1} parent=1 // pred_check_branch
      %45 = sbr.rel (0) target = $region53
    $region52: #{tpu_custom_call.1} parent=1 // pred_region
      _
    $region53: #{tpu_custom_call.1} parent=1 // pred_fallthru
      _
    // Predicated region
    $region54: #{tpu_custom_call.1} parent=1 // pred_check
      _
    $region55: #{tpu_custom_call.1} parent=1 // pred_check_branch
      %47 = sbr.rel (0) target = $region57
    $region56: #{tpu_custom_call.1} parent=1 // pred_region
      _
    $region57: #{tpu_custom_call.1} parent=1 // pred_fallthru
      _
    %v49 = vlaneseq
    %v50 = vshrl.u32 %v49, 7
    %v51 = vadd.s32 %v50, 8
    %vm52 = vcmp.lt.s32.totalorder %v50, 0
    %v53 = vsub.s32 0, %v50
    %v54 = vsel %vm52, %v53, %v50
    %v55 = vshrl.u32 %v54, 3
    %v56 = vand.u32 %v54, 7
    %v57 = vsub.s32 0, %v56
    %v58 = vsel %vm52, %v57, %v56
    %vm59 = vcmp.lt.s32.totalorder %v51, 0
    %v60 = vsub.s32 0, %v51
    %v61 = vsel %vm59, %v60, %v51
    %v62 = vshrl.u32 %v61, 3
    %v63 = vand.u32 %v61, 7
    %v64 = vsub.s32 0, %v63
    %v65 = vsel %vm59, %v64, %v63
    %vm66 = vcmp.ne.s32.totalorder %v58, 0
    %vm67 = vcmp.ne.s32.totalorder %v65, 0
    %vm68 = vcmp.lt.s32.totalorder %v58, 0
    %vm69 = vcmp.lt.s32.totalorder %v65, 0
    %vm70 = vmand %vm68, %vm66
    %vm71 = vmand %vm69, %vm67
    %v72 = vadd.s32 %v58, 8
    %v73 = vadd.s32 %v65, 8
    %v74 = vsel %vm70, %v72, %v58
    %v75 = vsel %vm71, %v73, %v65
    %v76 = vld [vmem:[%s0] sm:$0xff]
    %v77 = vld [vmem:[%s0 + $0x8] sm:$0xff]
    %vm78 = vcmp.lt.s32.totalorder %v74, 0
    %v79 = vsub.s32 0, %v74
    %v80 = vsel %vm78, %v79, %v74
    %v81 = vand.u32 %v80, 65535
    %v82 = vshrl.u32 %v80, 16
    %v84 = vmul.u32 %v81, 52429
    %v85 = vmul.u32 %v81, 52428
    %v86 = vmul.u32 %v82, 52429
    %v87 = vmul.u32 %v82, 52428
    %v88 = vshll.u32 %v85, 16
    %v89 = vshrl.u32 %v85, 16
    %v90 = vshll.u32 %v86, 16
    %v91 = vshrl.u32 %v86, 16
    %vm92 = vc.u32 %v84, %v88
    %v93 = vsel %vm92, 1, 0
    %v94 = vadd.s32 %v84, %v88
    %v95 = vadd.s32 %v87, %v93
    %vm96 = vc.u32 %v94, %v90
    %v97 = vsel %vm96, 1, 0
    %v98 = vadd.s32 %v94, %v90
    %v99 = vadd.s32 %v95, %v97
    %v100 = vadd.s32 %v99, %v89
    %v101 = vadd.s32 %v100, %v91
    %v102 = vshrl.u32 %v101, 2
    %v103 = vmul.u32 %v102, 5
    %v104 = vsub.s32 %v80, %v103
    %v105 = vsub.s32 0, %v104
    %v106 = vsel %vm78, %v105, %v104
    %vm107 = vcmp.lt.s32.totalorder %v75, 0
    %v108 = vsub.s32 0, %v75
    %v109 = vsel %vm107, %v108, %v75
    %v110 = vand.u32 %v109, 65535
    %v111 = vshrl.u32 %v109, 16
    %v113 = vmul.u32 %v110, 52429
    %v114 = vmul.u32 %v110, 52428
    %v115 = vmul.u32 %v111, 52429
    %v116 = vmul.u32 %v111, 52428
    %v117 = vshll.u32 %v114, 16
    %v118 = vshrl.u32 %v114, 16
    %v119 = vshll.u32 %v115, 16
    %v120 = vshrl.u32 %v115, 16
    %vm121 = vc.u32 %v113, %v117
    %v122 = vsel %vm121, 1, 0
    %v123 = vadd.s32 %v113, %v117
    %v124 = vadd.s32 %v116, %v122
    %vm125 = vc.u32 %v123, %v119
    %v126 = vsel %vm125, 1, 0
    %v127 = vadd.s32 %v123, %v119
    %v128 = vadd.s32 %v124, %v126
    %v129 = vadd.s32 %v128, %v118
    %v130 = vadd.s32 %v129, %v120
    %v131 = vshrl.u32 %v130, 2
    %v132 = vmul.u32 %v131, 5
    %v133 = vsub.s32 %v109, %v132
    %v134 = vsub.s32 0, %v133
    %v135 = vsel %vm107, %v134, %v133
    %vm136 = vcmp.ne.s32.totalorder %v106, 0
    %vm137 = vcmp.ne.s32.totalorder %v135, 0
    %vm138 = vcmp.lt.s32.totalorder %v106, 0
    %vm139 = vcmp.lt.s32.totalorder %v135, 0
    %vm140 = vmand %vm138, %vm136
    %vm141 = vmand %vm139, %vm137
    %v142 = vadd.s32 %v106, 5
    %v143 = vadd.s32 %v135, 5
    %v144 = vsel %vm140, %v142, %v106
    %v145 = vsel %vm141, %v143, %v135
    %v146 = vmul.u32 %v144, 10
    %v147 = vmul.u32 %v145, 10
    %v148 = vadd.s32 %v76, %v146
    %v149 = vadd.s32 %v77, %v147
    %v150 = vlaneseq
    %v151 = vand.u32 %v150, 127
    %152 = vset.pattern.permute.xlu0 0
    %153 = vperm.xlu0 %152, %v148
    %v154 = vpop.permute.xlu0 %153
    %155 = vset.pattern.permute.xlu0 0
    %156 = vperm.xlu0 %155, %v149
    %v157 = vpop.permute.xlu0 %156
    %vm158 = vcmp.eq.s32.totalorder %v151, %v154
    %vm159 = vcmp.eq.s32.totalorder %v151, %v157
    %v160 = vadd.s32 %v74, 64
    %v161 = vadd.s32 %v75, 64
    %vm162 = vcmp.eq.s32.totalorder %v151, %v160
    %vm163 = vcmp.eq.s32.totalorder %v151, %v161
    %vm164 = vmor %vm158, %vm162
    %vm165 = vmor %vm159, %vm163
    %v166 = vsel %vm164, 1.0, 0.0
    %v167 = vsel %vm165, 1.0, 0.0
    %v168 = vpack.c.bf16 %v167, %v166
    %v169 = vld [vmem:[%s1] sm:$0xf]
    %v170 = vld [vmem:[%s1 + $0x4] sm:$0xf]
    %v171 = vld [vmem:[%s1 + $0x8] sm:$0xf]
    %v172 = vld [vmem:[%s1 + $0xc] sm:$0xf]
    %v173 = vld [vmem:[%s1 + $0x10] sm:$0xf]
    %v174 = vld [vmem:[%s1 + $0x14] sm:$0xf]
    %v175 = vld [vmem:[%s1 + $0x18] sm:$0xf]
    %v176 = vld [vmem:[%s1 + $0x1c] sm:$0xf]
    %v177 = vld [vmem:[%s1 + $0x20] sm:$0xf]
    %v187 = vunpack.c.l.b16 %v169
    %v188 = vunpack.c.l.b16 %v170
    %v189 = vunpack.c.l.b16 %v171
    %v190 = vunpack.c.l.b16 %v172
    %v191 = vunpack.c.l.b16 %v173
    %v192 = vunpack.c.l.b16 %v174
    %v193 = vunpack.c.l.b16 %v175
    %v194 = vunpack.c.l.b16 %v176
    %v195 = vunpack.c.l.b16 %v177
    %v196 = vpack.c.b16 %v188, %v187
    %v197 = vpack.c.b16 %v190, %v189
    %v198 = vpack.c.b16 %v192, %v191
    %v199 = vpack.c.b16 %v194, %v193
    %v200 = vpack.c.b16 %v195, %v195
    %vm205 = vcmask 588800
    %v207 = vsel %vm205, %v168, 0
    %vm209 = vcmask 1043456
    %v211 = vsel %vm209, %v200, 0
    %213 = vmatpush.bf16.msra.mxu0 0
    %214 = vmatpush.bf16.msra.mxu0 0
    %215 = vmatpush.bf16.msra.mxu0 0
    %216 = vmatpush.bf16.msra.mxu0 %v211
    %217 = vmatpush.bf16.msra.mxu0 %v199
    %218 = vmatpush.bf16.msra.mxu0 %v198
    %219 = vmatpush.bf16.msra.mxu0 %v197
    %220 = vmatpush.bf16.msra.mxu0 %v196
    %221 = vmatmul.bf16.gmra.mxu0 %v207
    %v222 = vpop.f32.mrf.mxu0
    %v223 = vadd.f32 0.0, %v222
    %v224 = vpop.f32.mrf.mxu0
    %v225 = vadd.f32 0.0, %v224
    %226 = vdwg.mxu0
    %v227 = vld [vmem:[%s11] sm:$0xff]
    %v228 = vld [vmem:[%s11 + $0x8] sm:$0xff]
    %v229 = vld [vmem:[%s11 + $0x10] sm:$0xff]
    %v230 = vld [vmem:[%s11 + $0x18] sm:$0xff]
    %v231 = vld [vmem:[%s11 + $0x20] sm:$0xff]
    %v232 = vld [vmem:[%s11 + $0x28] sm:$0xff]
    %v233 = vld [vmem:[%s11 + $0x30] sm:$0xff]
    %v234 = vld [vmem:[%s11 + $0x38] sm:$0xff]
    %v235 = vld [vmem:[%s12] sm:$0xff]
    %v236 = vld [vmem:[%s12 + $0x8] sm:$0xff]
    %v237 = vld [vmem:[%s12 + $0x10] sm:$0xff]
    %v238 = vld [vmem:[%s12 + $0x18] sm:$0xff]
    %v239 = vld [vmem:[%s12 + $0x20] sm:$0xff]
    %v240 = vld [vmem:[%s12 + $0x28] sm:$0xff]
    %v241 = vld [vmem:[%s12 + $0x30] sm:$0xff]
    %v242 = vld [vmem:[%s12 + $0x38] sm:$0xff]
    %v243 = vld [vmem:[%s13] sm:$0xf]
    %v244 = vld [vmem:[%s13 + $0x4] sm:$0xf]
    %v245 = vld [vmem:[%s8] sm:$0x3]
    %vm246 = vcmask 261120
    %v247 = vsel %vm246, %v223, 0.0
    %248 = vadd.xlane.f32.xlu0 %v247
    %v249 = vpop.xlane.xlu0 %248
    %v250 = vsel %vm246, %v225, 0.0
    %251 = vadd.xlane.f32.xlu0 %v250
    %v252 = vpop.xlane.xlu0 %251
    %v253 = vrcp.pop 32.0
    %v254 = vmul.f32 32.0, %v253
    %v255 = vsub.f32 1.0, %v254
    %v256 = vmul.f32 %v253, %v255
    %v257 = vadd.f32 %v253, %v256
    %vm258 = vweird.f32 %v253
    %v259 = vsel %vm258, %v253, %v257
    %v260 = vmul.f32 %v249, %v259
    %v261 = vmul.f32 %v252, %v259
    %v262 = vmul.f32 %v223, %v223
    %v263 = vmul.f32 %v225, %v225
    %v264 = vsel %vm246, %v262, 0.0
    %265 = vadd.xlane.f32.xlu0 %v264
    %v266 = vpop.xlane.xlu0 %265
    %v267 = vsel %vm246, %v263, 0.0
    %268 = vadd.xlane.f32.xlu0 %v267
    %v269 = vpop.xlane.xlu0 %268
    %v270 = vmul.f32 %v266, %v259
    %v271 = vmul.f32 %v269, %v259
    %v272 = vmul.f32 %v260, %v260
    %v273 = vmul.f32 %v261, %v261
    %v274 = vsub.f32 %v270, %v272
    %v275 = vsub.f32 %v271, %v273
    %v276 = vsub.f32 %v223, %v260
    %v277 = vsub.f32 %v225, %v261
    %v278 = vadd.f32 %v274, 1e-05
    %v279 = vadd.f32 %v275, 1e-05
    %v280 = vrsqrt.pop %v278
    %v281 = vmul.f32 %v280, %v278
    %v282 = vmul.f32 %v281, %v280
    %v283 = vmul.f32 0.5, %v282
    %v284 = vsub.f32 1.5, %v283
    %v285 = vmul.f32 %v280, %v284
    %vm286 = vweird.f32 %v278
    %vm287 = vweird.f32 %v280
    %vm288 = vmor %vm286, %vm287
    %v289 = vsel %vm288, %v280, %v285
    %v290 = vrsqrt.pop %v279
    %v291 = vmul.f32 %v290, %v279
    %v292 = vmul.f32 %v291, %v290
    %v293 = vmul.f32 0.5, %v292
    %v294 = vsub.f32 1.5, %v293
    %v295 = vmul.f32 %v290, %v294
    %vm296 = vweird.f32 %v279
    %vm297 = vweird.f32 %v290
    %vm298 = vmor %vm296, %vm297
    %v299 = vsel %vm298, %v290, %v295
    %v300 = vmul.f32 %v276, %v289
    %v301 = vmul.f32 %v277, %v299
    %v302 = vpack.c.bf16 %v301, %v300
    %v303 = vld [vmem:[%s2] sm:$0xf]
    %v304 = vld [vmem:[%s2 + $0x4] sm:$0xf]
    %v305 = vld [vmem:[%s2 + $0x8] sm:$0xf]
    %v306 = vld [vmem:[%s2 + $0xc] sm:$0xf]
    %v307 = vld [vmem:[%s3] sm:$0x1]
    %v309 = vperm.slane %v307, 0
    %v315 = vunpack.c.l.b16 %v303
    %v316 = vunpack.c.l.b16 %v304
    %v317 = vunpack.c.l.b16 %v305
    %v318 = vunpack.c.l.b16 %v306
    %v319 = vpack.c.b16 %v316, %v315
    %v320 = vpack.c.b16 %v318, %v317
    %v324 = vsel %vm246, %v302, 0
    %326 = vmatpush.bf16.msra.mxu0 0
    %327 = vmatpush.bf16.msra.mxu0 0
    %328 = vmatpush.bf16.msra.mxu0 0
    %329 = vmatpush.bf16.msra.mxu0 0
    %330 = vmatpush.bf16.msra.mxu0 0
    %331 = vmatpush.bf16.msra.mxu0 0
    %332 = vmatpush.bf16.msra.mxu0 %v320
    %333 = vmatpush.bf16.msra.mxu0 %v319
    %334 = vmatmul.bf16.gmra.mxu0 %v324
    %v335 = vpop.f32.mrf.mxu0
    %v336 = vadd.f32 %v309, %v335
    %v337 = vpop.f32.mrf.mxu0
    %v338 = vadd.f32 %v309, %v337
    %339 = vdwg.mxu0
    %v340 = vmul.f32 %v336, %v227
    %v341 = vmul.f32 %v338, %v228
    %v342 = vmul.f32 %v336, %v229
    %v343 = vmul.f32 %v338, %v230
    %v344 = vmul.f32 %v336, %v231
    %v345 = vmul.f32 %v338, %v232
    %v346 = vmul.f32 %v336, %v233
    %v347 = vmul.f32 %v338, %v234
    %v348 = vpack.c.bf16 %v341, %v340
    %v349 = vpack.c.bf16 %v343, %v342
    %v350 = vpack.c.bf16 %v345, %v344
    %v351 = vpack.c.bf16 %v347, %v346
    %v352 = vpack.c.bf16 %v338, %v336
    %354 = vrot.lane.b32.xlu0 %v352, 96
    %v355 = vpop.permute.xlu0 %354
    %v357 = vsel %vm246, %v348, 0
    %v360 = vsel %vm246, %v349, 0
    %v363 = vsel %vm246, %v350, 0
    %v366 = vsel %vm246, %v351, 0
    %v369 = vsel %vm246, %v355, 0
    %371 = vmatpush.bf16.xpose.msra.mxu0 0
    %372 = vmatpush.bf16.xpose.msra.mxu0 0
    %373 = vmatpush.bf16.xpose.msra.mxu0 0
    %374 = vmatpush.bf16.xpose.msra.mxu0 0
    %375 = vmatpush.bf16.xpose.msra.mxu0 0
    %376 = vmatpush.bf16.xpose.msra.mxu0 0
    %377 = vmatpush.bf16.xpose.msra.mxu0 0
    %378 = vmatpush.bf16.xpose.msra.mxu0 %v369
    %379 = vmatmul.bf16.gmra.mxu0 %v357
    %v380 = vpop.f32.mrf.mxu0
    %v381 = vadd.f32 %v235, %v380
    %v382 = vpop.f32.mrf.mxu0
    %v383 = vadd.f32 %v236, %v382
    %384 = vmatmul.bf16.gmra.mxu0 %v360
    %v385 = vpop.f32.mrf.mxu0
    %v386 = vadd.f32 %v237, %v385
    %v387 = vpop.f32.mrf.mxu0
    %v388 = vadd.f32 %v238, %v387
    %389 = vmatmul.bf16.gmra.mxu0 %v363
    %v390 = vpop.f32.mrf.mxu0
    %v391 = vadd.f32 %v239, %v390
    %v392 = vpop.f32.mrf.mxu0
    %v393 = vadd.f32 %v240, %v392
    %394 = vmatmul.bf16.gmra.mxu0 %v366
    %v395 = vpop.f32.mrf.mxu0
    %v396 = vadd.f32 %v241, %v395
    %v397 = vpop.f32.mrf.mxu0
    %v398 = vadd.f32 %v242, %v397
    %399 = vdwg.mxu0
    %vm400 = vcmask 130048
    %v401 = vsel %vm400, %v381, -inf
    %402 = vmax.xlane.f32.xlu0 %v401
    %v403 = vpop.xlane.xlu0 %402
    %v404 = vsel %vm400, %v383, -inf
    %405 = vmax.xlane.f32.xlu0 %v404
    %v406 = vpop.xlane.xlu0 %405
    %v407 = vsel %vm400, %v386, -inf
    %408 = vmax.xlane.f32.xlu0 %v407
    %v409 = vpop.xlane.xlu0 %408
    %v410 = vsel %vm400, %v388, -inf
    %411 = vmax.xlane.f32.xlu0 %v410
    %v412 = vpop.xlane.xlu0 %411
    %v413 = vsel %vm400, %v391, -inf
    %414 = vmax.xlane.f32.xlu0 %v413
    %v415 = vpop.xlane.xlu0 %414
    %v416 = vsel %vm400, %v393, -inf
    %417 = vmax.xlane.f32.xlu0 %v416
    %v418 = vpop.xlane.xlu0 %417
    %v419 = vsel %vm400, %v396, -inf
    %420 = vmax.xlane.f32.xlu0 %v419
    %v421 = vpop.xlane.xlu0 %420
    %v422 = vsel %vm400, %v398, -inf
    %423 = vmax.xlane.f32.xlu0 %v422
    %v424 = vpop.xlane.xlu0 %423
    %v425 = vsub.f32 %v381, %v403
    %v426 = vsub.f32 %v383, %v406
    %v427 = vsub.f32 %v386, %v409
    %v428 = vsub.f32 %v388, %v412
    %v429 = vsub.f32 %v391, %v415
    %v430 = vsub.f32 %v393, %v418
    %v431 = vsub.f32 %v396, %v421
    %v432 = vsub.f32 %v398, %v424
    %v433 = vmul.f32 %v425, 1.442695
    %v434 = vpow.pop %v433
    %v435 = vmul.f32 %v426, 1.442695
    %v436 = vpow.pop %v435
    %v437 = vmul.f32 %v427, 1.442695
    %v438 = vpow.pop %v437
    %v439 = vmul.f32 %v428, 1.442695
    %v440 = vpow.pop %v439
    %v441 = vmul.f32 %v429, 1.442695
    %v442 = vpow.pop %v441
    %v443 = vmul.f32 %v430, 1.442695
    %v444 = vpow.pop %v443
    %v445 = vmul.f32 %v431, 1.442695
    %v446 = vpow.pop %v445
    %v447 = vmul.f32 %v432, 1.442695
    %v448 = vpow.pop %v447
    %v449 = vsel %vm400, %v434, 0.0
    %450 = vadd.xlane.f32.xlu0 %v449
    %v451 = vpop.xlane.xlu0 %450
    %v452 = vsel %vm400, %v436, 0.0
    %453 = vadd.xlane.f32.xlu0 %v452
    %v454 = vpop.xlane.xlu0 %453
    %v455 = vsel %vm400, %v438, 0.0
    %456 = vadd.xlane.f32.xlu0 %v455
    %v457 = vpop.xlane.xlu0 %456
    %v458 = vsel %vm400, %v440, 0.0
    %459 = vadd.xlane.f32.xlu0 %v458
    %v460 = vpop.xlane.xlu0 %459
    %v461 = vsel %vm400, %v442, 0.0
    %462 = vadd.xlane.f32.xlu0 %v461
    %v463 = vpop.xlane.xlu0 %462
    %v464 = vsel %vm400, %v444, 0.0
    %465 = vadd.xlane.f32.xlu0 %v464
    %v466 = vpop.xlane.xlu0 %465
    %v467 = vsel %vm400, %v446, 0.0
    %468 = vadd.xlane.f32.xlu0 %v467
    %v469 = vpop.xlane.xlu0 %468
    %v470 = vsel %vm400, %v448, 0.0
    %471 = vadd.xlane.f32.xlu0 %v470
    %v472 = vpop.xlane.xlu0 %471
    %v473 = vrcp.pop %v451
    %v474 = vrcp.pop %v454
    %v475 = vrcp.pop %v457
    %v476 = vrcp.pop %v460
    %v477 = vrcp.pop %v463
    %v478 = vrcp.pop %v466
    %v479 = vrcp.pop %v469
    %v480 = vrcp.pop %v472
    %v481 = vmul.f32 %v434, %v473
    %v482 = vmul.f32 %v436, %v474
    %v483 = vmul.f32 %v438, %v475
    %v484 = vmul.f32 %v440, %v476
    %v485 = vmul.f32 %v442, %v477
    %v486 = vmul.f32 %v444, %v478
    %v487 = vmul.f32 %v446, %v479
    %v488 = vmul.f32 %v448, %v480
    %v489 = vpack.c.bf16 %v482, %v481
    %v490 = vpack.c.bf16 %v484, %v483
    %v491 = vpack.c.bf16 %v486, %v485
    %v492 = vpack.c.bf16 %v488, %v487
    %493 = vrot.lane.b32.xlu0 %v352, 64
    %v494 = vpop.permute.xlu0 %493
    %v497 = vsel %vm400, %v489, 0
    %v500 = vsel %vm400, %v490, 0
    %v503 = vsel %vm400, %v491, 0
    %v506 = vsel %vm400, %v492, 0
    %508 = vmatpush.bf16.msra.mxu0 0
    %509 = vmatpush.bf16.msra.mxu0 0
    %510 = vmatpush.bf16.msra.mxu0 0
    %511 = vmatpush.bf16.msra.mxu0 0
    %512 = vmatpush.bf16.msra.mxu0 0
    %513 = vmatpush.bf16.msra.mxu0 0
    %514 = vmatpush.bf16.msra.mxu0 0
    %515 = vmatpush.bf16.msra.mxu0 %v494
    %516 = vmatmul.bf16.gmra.mxu0 %v497
    %v517 = vpop.f32.mrf.mxu0
    %v518 = vadd.f32 0.0, %v517
    %v519 = vpop.f32.mrf.mxu0
    %v520 = vadd.f32 0.0, %v519
    %521 = vmatmul.bf16.gmra.mxu0 %v500
    %v522 = vpop.f32.mrf.mxu0
    %v523 = vadd.f32 0.0, %v522
    %v524 = vpop.f32.mrf.mxu0
    %v525 = vadd.f32 0.0, %v524
    %526 = vmatmul.bf16.gmra.mxu0 %v503
    %v527 = vpop.f32.mrf.mxu0
    %v528 = vadd.f32 0.0, %v527
    %v529 = vpop.f32.mrf.mxu0
    %v530 = vadd.f32 0.0, %v529
    %531 = vmatmul.bf16.gmra.mxu0 %v506
    %v532 = vpop.f32.mrf.mxu0
    %v533 = vadd.f32 0.0, %v532
    %v534 = vpop.f32.mrf.mxu0
    %v535 = vadd.f32 0.0, %v534
    %536 = vdwg.mxu0
    %v537 = vmul.f32 %v518, %v227
    %v538 = vmul.f32 %v520, %v228
    %v539 = vmul.f32 %v523, %v229
    %v540 = vmul.f32 %v525, %v230
    %v541 = vmul.f32 %v528, %v231
    %v542 = vmul.f32 %v530, %v232
    %v543 = vmul.f32 %v533, %v233
    %v544 = vmul.f32 %v535, %v234
    %v545 = vpack.c.bf16 %v538, %v537
    %v546 = vpack.c.bf16 %v540, %v539
    %v547 = vpack.c.bf16 %v542, %v541
    %v548 = vpack.c.bf16 %v544, %v543
    %v551 = vunpack.c.l.b16 %v243
    %v552 = vunpack.c.l.b16 %v244
    %v553 = vpack.c.b16 %v552, %v551
    %vm554 = vcmask 523264
    %v556 = vsel %vm554, %v553, 0
    %558 = vmatpush.bf16.msra.mxu0 0
    %559 = vmatpush.bf16.msra.mxu0 0
    %560 = vmatpush.bf16.msra.mxu0 0
    %561 = vmatpush.bf16.msra.mxu0 0
    %562 = vmatpush.bf16.msra.mxu0 %v548
    %563 = vmatpush.bf16.msra.mxu0 %v547
    %564 = vmatpush.bf16.msra.mxu0 %v546
    %565 = vmatpush.bf16.msra.mxu0 %v545
    %566 = vmatmul.bf16.gmra.mxu0 %v556
    %v567 = vpop.f32.mrf.mxu0
    %v568 = vadd.f32 0.0, %v567
    %v569 = vpop.f32.mrf.mxu0
    %v570 = vadd.f32 0.0, %v569
    %571 = vdwg.mxu0
    %v572 = vpack.c.bf16 %v570, %v568
    %v573 = vld [vmem:[%s4] sm:$0xf]
    %v574 = vld [vmem:[%s4 + $0x4] sm:$0xf]
    %v575 = vld [vmem:[%s4 + $0x8] sm:$0xf]
    %v576 = vld [vmem:[%s4 + $0xc] sm:$0xf]
    %v581 = vunpack.c.l.b16 %v573
    %v582 = vunpack.c.l.b16 %v574
    %v583 = vunpack.c.l.b16 %v575
    %v584 = vunpack.c.l.b16 %v576
    %v585 = vpack.c.b16 %v582, %v581
    %v586 = vpack.c.b16 %v584, %v583
    %v590 = vsel %vm246, %v572, 0
    %592 = vmatpush.bf16.msra.mxu0 0
    %593 = vmatpush.bf16.msra.mxu0 0
    %594 = vmatpush.bf16.msra.mxu0 0
    %595 = vmatpush.bf16.msra.mxu0 0
    %596 = vmatpush.bf16.msra.mxu0 0
    %597 = vmatpush.bf16.msra.mxu0 0
    %598 = vmatpush.bf16.msra.mxu0 %v586
    %599 = vmatpush.bf16.msra.mxu0 %v585
    %600 = vmatmul.bf16.gmra.mxu0 %v590
    %v601 = vpop.f32.mrf.mxu0
    %v602 = vadd.f32 0.0, %v601
    %v603 = vpop.f32.mrf.mxu0
    %v604 = vadd.f32 0.0, %v603
    %605 = vdwg.mxu0
    %v606 = vadd.f32 %v223, %v602
    %v607 = vadd.f32 %v225, %v604
    %v608 = vperm.slane %v245, 0
    %v609 = vadd.f32 %v606, %v608
    %v610 = vadd.f32 %v607, %v608
    %v611 = vsel %vm246, %v609, 0.0
    %612 = vadd.xlane.f32.xlu0 %v611
    %v613 = vpop.xlane.xlu0 %612
    %v614 = vsel %vm246, %v610, 0.0
    %615 = vadd.xlane.f32.xlu0 %v614
    %v616 = vpop.xlane.xlu0 %615
    %v617 = vmul.f32 %v613, %v259
    %v618 = vmul.f32 %v616, %v259
    %v619 = vmul.f32 %v609, %v609
    %v620 = vmul.f32 %v610, %v610
    %v621 = vsel %vm246, %v619, 0.0
    %622 = vadd.xlane.f32.xlu0 %v621
    %v623 = vpop.xlane.xlu0 %622
    %v624 = vsel %vm246, %v620, 0.0
    %625 = vadd.xlane.f32.xlu0 %v624
    %v626 = vpop.xlane.xlu0 %625
    %v627 = vmul.f32 %v623, %v259
    %v628 = vmul.f32 %v626, %v259
    %v629 = vmul.f32 %v617, %v617
    %v630 = vmul.f32 %v618, %v618
    %v631 = vsub.f32 %v627, %v629
    %v632 = vsub.f32 %v628, %v630
    %v633 = vsub.f32 %v609, %v617
    %v634 = vsub.f32 %v610, %v618
    %v635 = vadd.f32 %v631, 1e-05
    %v636 = vadd.f32 %v632, 1e-05
    %v637 = vrsqrt.pop %v635
    %v638 = vmul.f32 %v637, %v635
    %v639 = vmul.f32 %v638, %v637
    %v640 = vmul.f32 0.5, %v639
    %v641 = vsub.f32 1.5, %v640
    %v642 = vmul.f32 %v637, %v641
    %vm643 = vweird.f32 %v635
    %vm644 = vweird.f32 %v637
    %vm645 = vmor %vm643, %vm644
    %v646 = vsel %vm645, %v637, %v642
    %v647 = vrsqrt.pop %v636
    %v648 = vmul.f32 %v647, %v636
    %v649 = vmul.f32 %v648, %v647
    %v650 = vmul.f32 0.5, %v649
    %v651 = vsub.f32 1.5, %v650
    %v652 = vmul.f32 %v647, %v651
    %vm653 = vweird.f32 %v636
    %vm654 = vweird.f32 %v647
    %vm655 = vmor %vm653, %vm654
    %v656 = vsel %vm655, %v647, %v652
    %v657 = vmul.f32 %v633, %v646
    %v658 = vmul.f32 %v634, %v656
    %v659 = vpack.c.bf16 %v658, %v657
    %v660 = vld [vmem:[%s5] sm:$0xf]
    %v661 = vld [vmem:[%s5 + $0x4] sm:$0xf]
    %v662 = vld [vmem:[%s5 + $0x8] sm:$0xf]
    %v663 = vld [vmem:[%s5 + $0xc] sm:$0xf]
    %v664 = vld [vmem:[%s6] sm:$0x1]
    %v666 = vperm.slane %v664, 0
    %v672 = vunpack.c.l.b16 %v660
    %v673 = vunpack.c.l.b16 %v661
    %v674 = vunpack.c.l.b16 %v662
    %v675 = vunpack.c.l.b16 %v663
    %v676 = vpack.c.b16 %v673, %v672
    %v677 = vpack.c.b16 %v675, %v674
    %v681 = vsel %vm246, %v659, 0
    %683 = vmatpush.bf16.msra.mxu0 0
    %684 = vmatpush.bf16.msra.mxu0 0
    %685 = vmatpush.bf16.msra.mxu0 0
    %686 = vmatpush.bf16.msra.mxu0 0
    %687 = vmatpush.bf16.msra.mxu0 0
    %688 = vmatpush.bf16.msra.mxu0 0
    %689 = vmatpush.bf16.msra.mxu0 %v677
    %690 = vmatpush.bf16.msra.mxu0 %v676
    %691 = vmatmul.bf16.gmra.mxu0 %v681
    %v692 = vpop.f32.mrf.mxu0
    %v693 = vadd.f32 %v666, %v692
    %v694 = vpop.f32.mrf.mxu0
    %v695 = vadd.f32 %v666, %v694
    %696 = vdwg.mxu0
    %v697 = vmul.f32 %v693, %v693
    %v698 = vmul.f32 %v695, %v695
    %v699 = vmul.f32 %v693, %v697
    %v700 = vmul.f32 %v695, %v698
    %v701 = vmul.f32 %v699, 0.044715
    %v702 = vmul.f32 %v700, 0.044715
    %v703 = vadd.f32 %v693, %v701
    %v704 = vadd.f32 %v695, %v702
    %v705 = vmul.f32 %v703, 0.7978846
    %v706 = vmul.f32 %v704, 0.7978846
    %v707 = vtanh.pop %v705
    %v708 = vtanh.pop %v706
    %v709 = vadd.f32 %v707, 1.0
    %v710 = vadd.f32 %v708, 1.0
    %v711 = vmul.f32 %v709, 0.5
    %v712 = vmul.f32 %v710, 0.5
    %v713 = vmul.f32 %v693, %v711
    %v714 = vmul.f32 %v695, %v712
    %v715 = vpack.c.bf16 %v714, %v713
    %v716 = vld [vmem:[%s7] sm:$0xf]
    %v717 = vld [vmem:[%s7 + $0x4] sm:$0xf]
    %v718 = vld [vmem:[%s7 + $0x8] sm:$0xf]
    %v719 = vld [vmem:[%s7 + $0xc] sm:$0xf]
    %v720 = vld [vmem:[%s7 + $0x10] sm:$0xf]
    %v721 = vld [vmem:[%s7 + $0x14] sm:$0xf]
    %v722 = vld [vmem:[%s7 + $0x18] sm:$0xf]
    %v723 = vld [vmem:[%s7 + $0x1c] sm:$0xf]
    %v724 = vld [vmem:[%s7 + $0x20] sm:$0xf]
    %v725 = vld [vmem:[%s7 + $0x24] sm:$0xf]
    %v726 = vld [vmem:[%s7 + $0x28] sm:$0xf]
    %v727 = vld [vmem:[%s7 + $0x2c] sm:$0xf]
    %v728 = vld [vmem:[%s7 + $0x30] sm:$0xf]
    %v729 = vld [vmem:[%s7 + $0x34] sm:$0xf]
    %v730 = vld [vmem:[%s7 + $0x38] sm:$0xf]
    %v731 = vld [vmem:[%s7 + $0x3c] sm:$0xf]
    %v748 = vunpack.c.l.b16 %v716
    %v749 = vunpack.c.l.b16 %v717
    %v750 = vunpack.c.l.b16 %v718
    %v751 = vunpack.c.l.b16 %v719
    %v752 = vunpack.c.l.b16 %v720
    %v753 = vunpack.c.l.b16 %v721
    %v754 = vunpack.c.l.b16 %v722
    %v755 = vunpack.c.l.b16 %v723
    %v756 = vunpack.c.l.b16 %v724
    %v757 = vunpack.c.l.b16 %v725
    %v758 = vunpack.c.l.b16 %v726
    %v759 = vunpack.c.l.b16 %v727
    %v760 = vunpack.c.l.b16 %v728
    %v761 = vunpack.c.l.b16 %v729
    %v762 = vunpack.c.l.b16 %v730
    %v763 = vunpack.c.l.b16 %v731
    %v764 = vpack.c.b16 %v749, %v748
    %v765 = vpack.c.b16 %v751, %v750
    %v766 = vpack.c.b16 %v753, %v752
    %v767 = vpack.c.b16 %v755, %v754
    %v768 = vpack.c.b16 %v757, %v756
    %v769 = vpack.c.b16 %v759, %v758
    %v770 = vpack.c.b16 %v761, %v760
    %v771 = vpack.c.b16 %v763, %v762
    %780 = vmatpush.bf16.msra.mxu0 %v771
    %781 = vmatpush.bf16.msra.mxu0 %v770
    %782 = vmatpush.bf16.msra.mxu0 %v769
    %783 = vmatpush.bf16.msra.mxu0 %v768
    %784 = vmatpush.bf16.msra.mxu0 %v767
    %785 = vmatpush.bf16.msra.mxu0 %v766
    %786 = vmatpush.bf16.msra.mxu0 %v765
    %787 = vmatpush.bf16.msra.mxu0 %v764
    %788 = vmatmul.bf16.gmra.mxu0 %v715
    %v789 = vpop.f32.mrf.mxu0
    %v790 = vadd.f32 0.0, %v789
    %v791 = vpop.f32.mrf.mxu0
    %v792 = vadd.f32 0.0, %v791
    %793 = vdwg.mxu0
    %v794 = vadd.f32 %v609, %v790
    %v795 = vadd.f32 %v610, %v792
    %v796 = vperm.slane %v245, 1
    %v797 = vadd.f32 %v794, %v796
    %v798 = vadd.f32 %v795, %v796
    %s799 = scalar_lea.vmem %s8, 2
    %v800 = vld [vmem:[%s799] sm:$0x3]
    %v801 = vsel %vm246, %v797, 0.0
    %802 = vadd.xlane.f32.xlu0 %v801
    %v803 = vpop.xlane.xlu0 %802
    %v804 = vsel %vm246, %v798, 0.0
    %805 = vadd.xlane.f32.xlu0 %v804
    %v806 = vpop.xlane.xlu0 %805
    %v807 = vmul.f32 %v803, %v259
    %v808 = vmul.f32 %v806, %v259
    %v809 = vmul.f32 %v797, %v797
    %v810 = vmul.f32 %v798, %v798
    %v811 = vsel %vm246, %v809, 0.0
    %812 = vadd.xlane.f32.xlu0 %v811
    %v813 = vpop.xlane.xlu0 %812
    %v814 = vsel %vm246, %v810, 0.0
    %815 = vadd.xlane.f32.xlu0 %v814
    %v816 = vpop.xlane.xlu0 %815
    %v817 = vmul.f32 %v813, %v259
    %v818 = vmul.f32 %v816, %v259
    %v819 = vmul.f32 %v807, %v807
    %v820 = vmul.f32 %v808, %v808
    %v821 = vsub.f32 %v817, %v819
    %v822 = vsub.f32 %v818, %v820
    %v823 = vsub.f32 %v797, %v807
    %v824 = vsub.f32 %v798, %v808
    %v825 = vadd.f32 %v821, 1e-05
    %v826 = vadd.f32 %v822, 1e-05
    %v827 = vrsqrt.pop %v825
    %v828 = vmul.f32 %v827, %v825
    %v829 = vmul.f32 %v828, %v827
    %v830 = vmul.f32 0.5, %v829
    %v831 = vsub.f32 1.5, %v830
    %v832 = vmul.f32 %v827, %v831
    %vm833 = vweird.f32 %v825
    %vm834 = vweird.f32 %v827
    %vm835 = vmor %vm833, %vm834
    %v836 = vsel %vm835, %v827, %v832
    %v837 = vrsqrt.pop %v826
    %v838 = vmul.f32 %v837, %v826
    %v839 = vmul.f32 %v838, %v837
    %v840 = vmul.f32 0.5, %v839
    %v841 = vsub.f32 1.5, %v840
    %v842 = vmul.f32 %v837, %v841
    %vm843 = vweird.f32 %v826
    %vm844 = vweird.f32 %v837
    %vm845 = vmor %vm843, %vm844
    %v846 = vsel %vm845, %v837, %v842
    %v847 = vmul.f32 %v823, %v836
    %v848 = vmul.f32 %v824, %v846
    %v849 = vpack.c.bf16 %v848, %v847
    %s850 = scalar_lea.vmem %s2, 16
    %v851 = vld [vmem:[%s850] sm:$0xf]
    %v852 = vld [vmem:[%s850 + $0x4] sm:$0xf]
    %v853 = vld [vmem:[%s850 + $0x8] sm:$0xf]
    %v854 = vld [vmem:[%s850 + $0xc] sm:$0xf]
    %s855 = scalar_lea.vmem %s3, 1
    %v856 = vld [vmem:[%s855] sm:$0x1]
    %v858 = vperm.slane %v856, 0
    %v864 = vunpack.c.l.b16 %v851
    %v865 = vunpack.c.l.b16 %v852
    %v866 = vunpack.c.l.b16 %v853
    %v867 = vunpack.c.l.b16 %v854
    %v868 = vpack.c.b16 %v865, %v864
    %v869 = vpack.c.b16 %v867, %v866
    %v873 = vsel %vm246, %v849, 0
    %875 = vmatpush.bf16.msra.mxu0 0
    %876 = vmatpush.bf16.msra.mxu0 0
    %877 = vmatpush.bf16.msra.mxu0 0
    %878 = vmatpush.bf16.msra.mxu0 0
    %879 = vmatpush.bf16.msra.mxu0 0
    %880 = vmatpush.bf16.msra.mxu0 0
    %881 = vmatpush.bf16.msra.mxu0 %v869
    %882 = vmatpush.bf16.msra.mxu0 %v868
    %883 = vmatmul.bf16.gmra.mxu0 %v873
    %v884 = vpop.f32.mrf.mxu0
    %v885 = vadd.f32 %v858, %v884
    %v886 = vpop.f32.mrf.mxu0
    %v887 = vadd.f32 %v858, %v886
    %888 = vdwg.mxu0
    %v889 = vmul.f32 %v885, %v227
    %v890 = vmul.f32 %v887, %v228
    %v891 = vmul.f32 %v885, %v229
    %v892 = vmul.f32 %v887, %v230
    %v893 = vmul.f32 %v885, %v231
    %v894 = vmul.f32 %v887, %v232
    %v895 = vmul.f32 %v885, %v233
    %v896 = vmul.f32 %v887, %v234
    %v897 = vpack.c.bf16 %v890, %v889
    %v898 = vpack.c.bf16 %v892, %v891
    %v899 = vpack.c.bf16 %v894, %v893
    %v900 = vpack.c.bf16 %v896, %v895
    %v901 = vpack.c.bf16 %v887, %v885
    %903 = vrot.lane.b32.xlu0 %v901, 96
    %v904 = vpop.permute.xlu0 %903
    %v906 = vsel %vm246, %v897, 0
    %v909 = vsel %vm246, %v898, 0
    %v912 = vsel %vm246, %v899, 0
    %v915 = vsel %vm246, %v900, 0
    %v918 = vsel %vm246, %v904, 0
    %920 = vmatpush.bf16.xpose.msra.mxu0 0
    %921 = vmatpush.bf16.xpose.msra.mxu0 0
    %922 = vmatpush.bf16.xpose.msra.mxu0 0
    %923 = vmatpush.bf16.xpose.msra.mxu0 0
    %924 = vmatpush.bf16.xpose.msra.mxu0 0
    %925 = vmatpush.bf16.xpose.msra.mxu0 0
    %926 = vmatpush.bf16.xpose.msra.mxu0 0
    %927 = vmatpush.bf16.xpose.msra.mxu0 %v918
    %928 = vmatmul.bf16.gmra.mxu0 %v906
    %v929 = vpop.f32.mrf.mxu0
    %v930 = vadd.f32 %v235, %v929
    %v931 = vpop.f32.mrf.mxu0
    %v932 = vadd.f32 %v236, %v931
    %933 = vmatmul.bf16.gmra.mxu0 %v909
    %v934 = vpop.f32.mrf.mxu0
    %v935 = vadd.f32 %v237, %v934
    %v936 = vpop.f32.mrf.mxu0
    %v937 = vadd.f32 %v238, %v936
    %938 = vmatmul.bf16.gmra.mxu0 %v912
    %v939 = vpop.f32.mrf.mxu0
    %v940 = vadd.f32 %v239, %v939
    %v941 = vpop.f32.mrf.mxu0
    %v942 = vadd.f32 %v240, %v941
    %943 = vmatmul.bf16.gmra.mxu0 %v915
    %v944 = vpop.f32.mrf.mxu0
    %v945 = vadd.f32 %v241, %v944
    %v946 = vpop.f32.mrf.mxu0
    %v947 = vadd.f32 %v242, %v946
    %948 = vdwg.mxu0
    %v949 = vsel %vm400, %v930, -inf
    %950 = vmax.xlane.f32.xlu0 %v949
    %v951 = vpop.xlane.xlu0 %950
    %v952 = vsel %vm400, %v932, -inf
    %953 = vmax.xlane.f32.xlu0 %v952
    %v954 = vpop.xlane.xlu0 %953
    %v955 = vsel %vm400, %v935, -inf
    %956 = vmax.xlane.f32.xlu0 %v955
    %v957 = vpop.xlane.xlu0 %956
    %v958 = vsel %vm400, %v937, -inf
    %959 = vmax.xlane.f32.xlu0 %v958
    %v960 = vpop.xlane.xlu0 %959
    %v961 = vsel %vm400, %v940, -inf
    %962 = vmax.xlane.f32.xlu0 %v961
    %v963 = vpop.xlane.xlu0 %962
    %v964 = vsel %vm400, %v942, -inf
    %965 = vmax.xlane.f32.xlu0 %v964
    %v966 = vpop.xlane.xlu0 %965
    %v967 = vsel %vm400, %v945, -inf
    %968 = vmax.xlane.f32.xlu0 %v967
    %v969 = vpop.xlane.xlu0 %968
    %v970 = vsel %vm400, %v947, -inf
    %971 = vmax.xlane.f32.xlu0 %v970
    %v972 = vpop.xlane.xlu0 %971
    %v973 = vsub.f32 %v930, %v951
    %v974 = vsub.f32 %v932, %v954
    %v975 = vsub.f32 %v935, %v957
    %v976 = vsub.f32 %v937, %v960
    %v977 = vsub.f32 %v940, %v963
    %v978 = vsub.f32 %v942, %v966
    %v979 = vsub.f32 %v945, %v969
    %v980 = vsub.f32 %v947, %v972
    %v981 = vmul.f32 %v973, 1.442695
    %v982 = vpow.pop %v981
    %v983 = vmul.f32 %v974, 1.442695
    %v984 = vpow.pop %v983
    %v985 = vmul.f32 %v975, 1.442695
    %v986 = vpow.pop %v985
    %v987 = vmul.f32 %v976, 1.442695
    %v988 = vpow.pop %v987
    %v989 = vmul.f32 %v977, 1.442695
    %v990 = vpow.pop %v989
    %v991 = vmul.f32 %v978, 1.442695
    %v992 = vpow.pop %v991
    %v993 = vmul.f32 %v979, 1.442695
    %v994 = vpow.pop %v993
    %v995 = vmul.f32 %v980, 1.442695
    %v996 = vpow.pop %v995
    %v997 = vsel %vm400, %v982, 0.0
    %998 = vadd.xlane.f32.xlu0 %v997
    %v999 = vpop.xlane.xlu0 %998
    %v1000 = vsel %vm400, %v984, 0.0
    %1001 = vadd.xlane.f32.xlu0 %v1000
    %v1002 = vpop.xlane.xlu0 %1001
    %v1003 = vsel %vm400, %v986, 0.0
    %1004 = vadd.xlane.f32.xlu0 %v1003
    %v1005 = vpop.xlane.xlu0 %1004
    %v1006 = vsel %vm400, %v988, 0.0
    %1007 = vadd.xlane.f32.xlu0 %v1006
    %v1008 = vpop.xlane.xlu0 %1007
    %v1009 = vsel %vm400, %v990, 0.0
    %1010 = vadd.xlane.f32.xlu0 %v1009
    %v1011 = vpop.xlane.xlu0 %1010
    %v1012 = vsel %vm400, %v992, 0.0
    %1013 = vadd.xlane.f32.xlu0 %v1012
    %v1014 = vpop.xlane.xlu0 %1013
    %v1015 = vsel %vm400, %v994, 0.0
    %1016 = vadd.xlane.f32.xlu0 %v1015
    %v1017 = vpop.xlane.xlu0 %1016
    %v1018 = vsel %vm400, %v996, 0.0
    %1019 = vadd.xlane.f32.xlu0 %v1018
    %v1020 = vpop.xlane.xlu0 %1019
    %v1021 = vrcp.pop %v999
    %v1022 = vrcp.pop %v1002
    %v1023 = vrcp.pop %v1005
    %v1024 = vrcp.pop %v1008
    %v1025 = vrcp.pop %v1011
    %v1026 = vrcp.pop %v1014
    %v1027 = vrcp.pop %v1017
    %v1028 = vrcp.pop %v1020
    %v1029 = vmul.f32 %v982, %v1021
    %v1030 = vmul.f32 %v984, %v1022
    %v1031 = vmul.f32 %v986, %v1023
    %v1032 = vmul.f32 %v988, %v1024
    %v1033 = vmul.f32 %v990, %v1025
    %v1034 = vmul.f32 %v992, %v1026
    %v1035 = vmul.f32 %v994, %v1027
    %v1036 = vmul.f32 %v996, %v1028
    %v1037 = vpack.c.bf16 %v1030, %v1029
    %v1038 = vpack.c.bf16 %v1032, %v1031
    %v1039 = vpack.c.bf16 %v1034, %v1033
    %v1040 = vpack.c.bf16 %v1036, %v1035
    %1041 = vrot.lane.b32.xlu0 %v901, 64
    %v1042 = vpop.permute.xlu0 %1041
    %v1045 = vsel %vm400, %v1037, 0
    %v1048 = vsel %vm400, %v1038, 0
    %v1051 = vsel %vm400, %v1039, 0
    %v1054 = vsel %vm400, %v1040, 0
    %1056 = vmatpush.bf16.msra.mxu0 0
    %1057 = vmatpush.bf16.msra.mxu0 0
    %1058 = vmatpush.bf16.msra.mxu0 0
    %1059 = vmatpush.bf16.msra.mxu0 0
    %1060 = vmatpush.bf16.msra.mxu0 0
    %1061 = vmatpush.bf16.msra.mxu0 0
    %1062 = vmatpush.bf16.msra.mxu0 0
    %1063 = vmatpush.bf16.msra.mxu0 %v1042
    %1064 = vmatmul.bf16.gmra.mxu0 %v1045
    %v1065 = vpop.f32.mrf.mxu0
    %v1066 = vadd.f32 0.0, %v1065
    %v1067 = vpop.f32.mrf.mxu0
    %v1068 = vadd.f32 0.0, %v1067
    %1069 = vmatmul.bf16.gmra.mxu0 %v1048
    %v1070 = vpop.f32.mrf.mxu0
    %v1071 = vadd.f32 0.0, %v1070
    %v1072 = vpop.f32.mrf.mxu0
    %v1073 = vadd.f32 0.0, %v1072
    %1074 = vmatmul.bf16.gmra.mxu0 %v1051
    %v1075 = vpop.f32.mrf.mxu0
    %v1076 = vadd.f32 0.0, %v1075
    %v1077 = vpop.f32.mrf.mxu0
    %v1078 = vadd.f32 0.0, %v1077
    %1079 = vmatmul.bf16.gmra.mxu0 %v1054
    %v1080 = vpop.f32.mrf.mxu0
    %v1081 = vadd.f32 0.0, %v1080
    %v1082 = vpop.f32.mrf.mxu0
    %v1083 = vadd.f32 0.0, %v1082
    %1084 = vdwg.mxu0
    %v1085 = vmul.f32 %v1066, %v227
    %v1086 = vmul.f32 %v1068, %v228
    %v1087 = vmul.f32 %v1071, %v229
    %v1088 = vmul.f32 %v1073, %v230
    %v1089 = vmul.f32 %v1076, %v231
    %v1090 = vmul.f32 %v1078, %v232
    %v1091 = vmul.f32 %v1081, %v233
    %v1092 = vmul.f32 %v1083, %v234
    %v1093 = vpack.c.bf16 %v1086, %v1085
    %v1094 = vpack.c.bf16 %v1088, %v1087
    %v1095 = vpack.c.bf16 %v1090, %v1089
    %v1096 = vpack.c.bf16 %v1092, %v1091
    %1097 = vmatpush.bf16.msra.mxu0 0
    %1098 = vmatpush.bf16.msra.mxu0 0
    %1099 = vmatpush.bf16.msra.mxu0 0
    %1100 = vmatpush.bf16.msra.mxu0 0
    %1101 = vmatpush.bf16.msra.mxu0 %v1096
    %1102 = vmatpush.bf16.msra.mxu0 %v1095
    %1103 = vmatpush.bf16.msra.mxu0 %v1094
    %1104 = vmatpush.bf16.msra.mxu0 %v1093
    %1105 = vmatmul.bf16.gmra.mxu0 %v556
    %v1106 = vpop.f32.mrf.mxu0
    %v1107 = vadd.f32 0.0, %v1106
    %v1108 = vpop.f32.mrf.mxu0
    %v1109 = vadd.f32 0.0, %v1108
    %1110 = vdwg.mxu0
    %v1111 = vpack.c.bf16 %v1109, %v1107
    %s1112 = scalar_lea.vmem %s4, 16
    %v1113 = vld [vmem:[%s1112] sm:$0xf]
    %v1114 = vld [vmem:[%s1112 + $0x4] sm:$0xf]
    %v1115 = vld [vmem:[%s1112 + $0x8] sm:$0xf]
    %v1116 = vld [vmem:[%s1112 + $0xc] sm:$0xf]
    %v1121 = vunpack.c.l.b16 %v1113
    %v1122 = vunpack.c.l.b16 %v1114
    %v1123 = vunpack.c.l.b16 %v1115
    %v1124 = vunpack.c.l.b16 %v1116
    %v1125 = vpack.c.b16 %v1122, %v1121
    %v1126 = vpack.c.b16 %v1124, %v1123
    %v1130 = vsel %vm246, %v1111, 0
    %1132 = vmatpush.bf16.msra.mxu0 0
    %1133 = vmatpush.bf16.msra.mxu0 0
    %1134 = vmatpush.bf16.msra.mxu0 0
    %1135 = vmatpush.bf16.msra.mxu0 0
    %1136 = vmatpush.bf16.msra.mxu0 0
    %1137 = vmatpush.bf16.msra.mxu0 0
    %1138 = vmatpush.bf16.msra.mxu0 %v1126
    %1139 = vmatpush.bf16.msra.mxu0 %v1125
    %1140 = vmatmul.bf16.gmra.mxu0 %v1130
    %v1141 = vpop.f32.mrf.mxu0
    %v1142 = vadd.f32 0.0, %v1141
    %v1143 = vpop.f32.mrf.mxu0
    %v1144 = vadd.f32 0.0, %v1143
    %1145 = vdwg.mxu0
    %v1146 = vadd.f32 %v797, %v1142
    %v1147 = vadd.f32 %v798, %v1144
    %v1148 = vperm.slane %v800, 0
    %v1149 = vadd.f32 %v1146, %v1148
    %v1150 = vadd.f32 %v1147, %v1148
    %v1151 = vsel %vm246, %v1149, 0.0
    %1152 = vadd.xlane.f32.xlu0 %v1151
    %v1153 = vpop.xlane.xlu0 %1152
    %v1154 = vsel %vm246, %v1150, 0.0
    %1155 = vadd.xlane.f32.xlu0 %v1154
    %v1156 = vpop.xlane.xlu0 %1155
    %v1157 = vmul.f32 %v1153, %v259
    %v1158 = vmul.f32 %v1156, %v259
    %v1159 = vmul.f32 %v1149, %v1149
    %v1160 = vmul.f32 %v1150, %v1150
    %v1161 = vsel %vm246, %v1159, 0.0
    %1162 = vadd.xlane.f32.xlu0 %v1161
    %v1163 = vpop.xlane.xlu0 %1162
    %v1164 = vsel %vm246, %v1160, 0.0
    %1165 = vadd.xlane.f32.xlu0 %v1164
    %v1166 = vpop.xlane.xlu0 %1165
    %v1167 = vmul.f32 %v1163, %v259
    %v1168 = vmul.f32 %v1166, %v259
    %v1169 = vmul.f32 %v1157, %v1157
    %v1170 = vmul.f32 %v1158, %v1158
    %v1171 = vsub.f32 %v1167, %v1169
    %v1172 = vsub.f32 %v1168, %v1170
    %v1173 = vsub.f32 %v1149, %v1157
    %v1174 = vsub.f32 %v1150, %v1158
    %v1175 = vadd.f32 %v1171, 1e-05
    %v1176 = vadd.f32 %v1172, 1e-05
    %v1177 = vrsqrt.pop %v1175
    %v1178 = vmul.f32 %v1177, %v1175
    %v1179 = vmul.f32 %v1178, %v1177
    %v1180 = vmul.f32 0.5, %v1179
    %v1181 = vsub.f32 1.5, %v1180
    %v1182 = vmul.f32 %v1177, %v1181
    %vm1183 = vweird.f32 %v1175
    %vm1184 = vweird.f32 %v1177
    %vm1185 = vmor %vm1183, %vm1184
    %v1186 = vsel %vm1185, %v1177, %v1182
    %v1187 = vrsqrt.pop %v1176
    %v1188 = vmul.f32 %v1187, %v1176
    %v1189 = vmul.f32 %v1188, %v1187
    %v1190 = vmul.f32 0.5, %v1189
    %v1191 = vsub.f32 1.5, %v1190
    %v1192 = vmul.f32 %v1187, %v1191
    %vm1193 = vweird.f32 %v1176
    %vm1194 = vweird.f32 %v1187
    %vm1195 = vmor %vm1193, %vm1194
    %v1196 = vsel %vm1195, %v1187, %v1192
    %v1197 = vmul.f32 %v1173, %v1186
    %v1198 = vmul.f32 %v1174, %v1196
    %v1199 = vpack.c.bf16 %v1198, %v1197
    %s1200 = scalar_lea.vmem %s5, 16
    %v1201 = vld [vmem:[%s1200] sm:$0xf]
    %v1202 = vld [vmem:[%s1200 + $0x4] sm:$0xf]
    %v1203 = vld [vmem:[%s1200 + $0x8] sm:$0xf]
    %v1204 = vld [vmem:[%s1200 + $0xc] sm:$0xf]
    %s1205 = scalar_lea.vmem %s6, 1
    %v1206 = vld [vmem:[%s1205] sm:$0x1]
    %v1208 = vperm.slane %v1206, 0
    %v1214 = vunpack.c.l.b16 %v1201
    %v1215 = vunpack.c.l.b16 %v1202
    %v1216 = vunpack.c.l.b16 %v1203
    %v1217 = vunpack.c.l.b16 %v1204
    %v1218 = vpack.c.b16 %v1215, %v1214
    %v1219 = vpack.c.b16 %v1217, %v1216
    %v1223 = vsel %vm246, %v1199, 0
    %1225 = vmatpush.bf16.msra.mxu0 0
    %1226 = vmatpush.bf16.msra.mxu0 0
    %1227 = vmatpush.bf16.msra.mxu0 0
    %1228 = vmatpush.bf16.msra.mxu0 0
    %1229 = vmatpush.bf16.msra.mxu0 0
    %1230 = vmatpush.bf16.msra.mxu0 0
    %1231 = vmatpush.bf16.msra.mxu0 %v1219
    %1232 = vmatpush.bf16.msra.mxu0 %v1218
    %1233 = vmatmul.bf16.gmra.mxu0 %v1223
    %v1234 = vpop.f32.mrf.mxu0
    %v1235 = vadd.f32 %v1208, %v1234
    %v1236 = vpop.f32.mrf.mxu0
    %v1237 = vadd.f32 %v1208, %v1236
    %1238 = vdwg.mxu0
    %v1239 = vmul.f32 %v1235, %v1235
    %v1240 = vmul.f32 %v1237, %v1237
    %v1241 = vmul.f32 %v1235, %v1239
    %v1242 = vmul.f32 %v1237, %v1240
    %v1243 = vmul.f32 %v1241, 0.044715
    %v1244 = vmul.f32 %v1242, 0.044715
    %v1245 = vadd.f32 %v1235, %v1243
    %v1246 = vadd.f32 %v1237, %v1244
    %v1247 = vmul.f32 %v1245, 0.7978846
    %v1248 = vmul.f32 %v1246, 0.7978846
    %v1249 = vtanh.pop %v1247
    %v1250 = vtanh.pop %v1248
    %v1251 = vadd.f32 %v1249, 1.0
    %v1252 = vadd.f32 %v1250, 1.0
    %v1253 = vmul.f32 %v1251, 0.5
    %v1254 = vmul.f32 %v1252, 0.5
    %v1255 = vmul.f32 %v1235, %v1253
    %v1256 = vmul.f32 %v1237, %v1254
    %v1257 = vpack.c.bf16 %v1256, %v1255
    %s1258 = scalar_lea.vmem %s7, 64
    %v1259 = vld [vmem:[%s1258] sm:$0xf]
    %v1260 = vld [vmem:[%s1258 + $0x4] sm:$0xf]
    %v1261 = vld [vmem:[%s1258 + $0x8] sm:$0xf]
    %v1262 = vld [vmem:[%s1258 + $0xc] sm:$0xf]
    %v1263 = vld [vmem:[%s1258 + $0x10] sm:$0xf]
    %v1264 = vld [vmem:[%s1258 + $0x14] sm:$0xf]
    %v1265 = vld [vmem:[%s1258 + $0x18] sm:$0xf]
    %v1266 = vld [vmem:[%s1258 + $0x1c] sm:$0xf]
    %v1267 = vld [vmem:[%s1258 + $0x20] sm:$0xf]
    %v1268 = vld [vmem:[%s1258 + $0x24] sm:$0xf]
    %v1269 = vld [vmem:[%s1258 + $0x28] sm:$0xf]
    %v1270 = vld [vmem:[%s1258 + $0x2c] sm:$0xf]
    %v1271 = vld [vmem:[%s1258 + $0x30] sm:$0xf]
    %v1272 = vld [vmem:[%s1258 + $0x34] sm:$0xf]
    %v1273 = vld [vmem:[%s1258 + $0x38] sm:$0xf]
    %v1274 = vld [vmem:[%s1258 + $0x3c] sm:$0xf]
    %v1291 = vunpack.c.l.b16 %v1259
    %v1292 = vunpack.c.l.b16 %v1260
    %v1293 = vunpack.c.l.b16 %v1261
    %v1294 = vunpack.c.l.b16 %v1262
    %v1295 = vunpack.c.l.b16 %v1263
    %v1296 = vunpack.c.l.b16 %v1264
    %v1297 = vunpack.c.l.b16 %v1265
    %v1298 = vunpack.c.l.b16 %v1266
    %v1299 = vunpack.c.l.b16 %v1267
    %v1300 = vunpack.c.l.b16 %v1268
    %v1301 = vunpack.c.l.b16 %v1269
    %v1302 = vunpack.c.l.b16 %v1270
    %v1303 = vunpack.c.l.b16 %v1271
    %v1304 = vunpack.c.l.b16 %v1272
    %v1305 = vunpack.c.l.b16 %v1273
    %v1306 = vunpack.c.l.b16 %v1274
    %v1307 = vpack.c.b16 %v1292, %v1291
    %v1308 = vpack.c.b16 %v1294, %v1293
    %v1309 = vpack.c.b16 %v1296, %v1295
    %v1310 = vpack.c.b16 %v1298, %v1297
    %v1311 = vpack.c.b16 %v1300, %v1299
    %v1312 = vpack.c.b16 %v1302, %v1301
    %v1313 = vpack.c.b16 %v1304, %v1303
    %v1314 = vpack.c.b16 %v1306, %v1305
    %1323 = vmatpush.bf16.msra.mxu0 %v1314
    %1324 = vmatpush.bf16.msra.mxu0 %v1313
    %1325 = vmatpush.bf16.msra.mxu0 %v1312
    %1326 = vmatpush.bf16.msra.mxu0 %v1311
    %1327 = vmatpush.bf16.msra.mxu0 %v1310
    %1328 = vmatpush.bf16.msra.mxu0 %v1309
    %1329 = vmatpush.bf16.msra.mxu0 %v1308
    %1330 = vmatpush.bf16.msra.mxu0 %v1307
    %1331 = vmatmul.bf16.gmra.mxu0 %v1257
    %v1332 = vpop.f32.mrf.mxu0
    %v1333 = vadd.f32 0.0, %v1332
    %v1334 = vpop.f32.mrf.mxu0
    %v1335 = vadd.f32 0.0, %v1334
    %1336 = vdwg.mxu0
    %v1337 = vadd.f32 %v1149, %v1333
    %v1338 = vadd.f32 %v1150, %v1335
    %v1339 = vperm.slane %v800, 1
    %v1340 = vadd.f32 %v1337, %v1339
    %v1341 = vadd.f32 %v1338, %v1339
    %s1342 = scalar_lea.vmem %s8, 4
    %v1343 = vld [vmem:[%s1342] sm:$0x3]
    %v1344 = vsel %vm246, %v1340, 0.0
    %1345 = vadd.xlane.f32.xlu0 %v1344
    %v1346 = vpop.xlane.xlu0 %1345
    %v1347 = vsel %vm246, %v1341, 0.0
    %1348 = vadd.xlane.f32.xlu0 %v1347
    %v1349 = vpop.xlane.xlu0 %1348
    %v1350 = vmul.f32 %v1346, %v259
    %v1351 = vmul.f32 %v1349, %v259
    %v1352 = vmul.f32 %v1340, %v1340
    %v1353 = vmul.f32 %v1341, %v1341
    %v1354 = vsel %vm246, %v1352, 0.0
    %1355 = vadd.xlane.f32.xlu0 %v1354
    %v1356 = vpop.xlane.xlu0 %1355
    %v1357 = vsel %vm246, %v1353, 0.0
    %1358 = vadd.xlane.f32.xlu0 %v1357
    %v1359 = vpop.xlane.xlu0 %1358
    %v1360 = vmul.f32 %v1356, %v259
    %v1361 = vmul.f32 %v1359, %v259
    %v1362 = vmul.f32 %v1350, %v1350
    %v1363 = vmul.f32 %v1351, %v1351
    %v1364 = vsub.f32 %v1360, %v1362
    %v1365 = vsub.f32 %v1361, %v1363
    %v1366 = vsub.f32 %v1340, %v1350
    %v1367 = vsub.f32 %v1341, %v1351
    %v1368 = vadd.f32 %v1364, 1e-05
    %v1369 = vadd.f32 %v1365, 1e-05
    %v1370 = vrsqrt.pop %v1368
    %v1371 = vmul.f32 %v1370, %v1368
    %v1372 = vmul.f32 %v1371, %v1370
    %v1373 = vmul.f32 0.5, %v1372
    %v1374 = vsub.f32 1.5, %v1373
    %v1375 = vmul.f32 %v1370, %v1374
    %vm1376 = vweird.f32 %v1368
    %vm1377 = vweird.f32 %v1370
    %vm1378 = vmor %vm1376, %vm1377
    %v1379 = vsel %vm1378, %v1370, %v1375
    %v1380 = vrsqrt.pop %v1369
    %v1381 = vmul.f32 %v1380, %v1369
    %v1382 = vmul.f32 %v1381, %v1380
    %v1383 = vmul.f32 0.5, %v1382
    %v1384 = vsub.f32 1.5, %v1383
    %v1385 = vmul.f32 %v1380, %v1384
    %vm1386 = vweird.f32 %v1369
    %vm1387 = vweird.f32 %v1380
    %vm1388 = vmor %vm1386, %vm1387
    %v1389 = vsel %vm1388, %v1380, %v1385
    %v1390 = vmul.f32 %v1366, %v1379
    %v1391 = vmul.f32 %v1367, %v1389
    %v1392 = vpack.c.bf16 %v1391, %v1390
    %s1393 = scalar_lea.vmem %s2, 32
    %v1394 = vld [vmem:[%s1393] sm:$0xf]
    %v1395 = vld [vmem:[%s1393 + $0x4] sm:$0xf]
    %v1396 = vld [vmem:[%s1393 + $0x8] sm:$0xf]
    %v1397 = vld [vmem:[%s1393 + $0xc] sm:$0xf]
    %s1398 = scalar_lea.vmem %s3, 2
    %v1399 = vld [vmem:[%s1398] sm:$0x1]
    %v1401 = vperm.slane %v1399, 0
    %v1407 = vunpack.c.l.b16 %v1394
    %v1408 = vunpack.c.l.b16 %v1395
    %v1409 = vunpack.c.l.b16 %v1396
    %v1410 = vunpack.c.l.b16 %v1397
    %v1411 = vpack.c.b16 %v1408, %v1407
    %v1412 = vpack.c.b16 %v1410, %v1409
    %v1416 = vsel %vm246, %v1392, 0
    %1418 = vmatpush.bf16.msra.mxu0 0
    %1419 = vmatpush.bf16.msra.mxu0 0
    %1420 = vmatpush.bf16.msra.mxu0 0
    %1421 = vmatpush.bf16.msra.mxu0 0
    %1422 = vmatpush.bf16.msra.mxu0 0
    %1423 = vmatpush.bf16.msra.mxu0 0
    %1424 = vmatpush.bf16.msra.mxu0 %v1412
    %1425 = vmatpush.bf16.msra.mxu0 %v1411
    %1426 = vmatmul.bf16.gmra.mxu0 %v1416
    %v1427 = vpop.f32.mrf.mxu0
    %v1428 = vadd.f32 %v1401, %v1427
    %v1429 = vpop.f32.mrf.mxu0
    %v1430 = vadd.f32 %v1401, %v1429
    %1431 = vdwg.mxu0
    %v1432 = vmul.f32 %v1428, %v227
    %v1433 = vmul.f32 %v1430, %v228
    %v1434 = vmul.f32 %v1428, %v229
    %v1435 = vmul.f32 %v1430, %v230
    %v1436 = vmul.f32 %v1428, %v231
    %v1437 = vmul.f32 %v1430, %v232
    %v1438 = vmul.f32 %v1428, %v233
    %v1439 = vmul.f32 %v1430, %v234
    %v1440 = vpack.c.bf16 %v1433, %v1432
    %v1441 = vpack.c.bf16 %v1435, %v1434
    %v1442 = vpack.c.bf16 %v1437, %v1436
    %v1443 = vpack.c.bf16 %v1439, %v1438
    %v1444 = vpack.c.bf16 %v1430, %v1428
    %1446 = vrot.lane.b32.xlu0 %v1444, 96
    %v1447 = vpop.permute.xlu0 %1446
    %v1449 = vsel %vm246, %v1440, 0
    %v1452 = vsel %vm246, %v1441, 0
    %v1455 = vsel %vm246, %v1442, 0
    %v1458 = vsel %vm246, %v1443, 0
    %v1461 = vsel %vm246, %v1447, 0
    %1463 = vmatpush.bf16.xpose.msra.mxu0 0
    %1464 = vmatpush.bf16.xpose.msra.mxu0 0
    %1465 = vmatpush.bf16.xpose.msra.mxu0 0
    %1466 = vmatpush.bf16.xpose.msra.mxu0 0
    %1467 = vmatpush.bf16.xpose.msra.mxu0 0
    %1468 = vmatpush.bf16.xpose.msra.mxu0 0
    %1469 = vmatpush.bf16.xpose.msra.mxu0 0
    %1470 = vmatpush.bf16.xpose.msra.mxu0 %v1461
    %1471 = vmatmul.bf16.gmra.mxu0 %v1449
    %v1472 = vpop.f32.mrf.mxu0
    %v1473 = vadd.f32 %v235, %v1472
    %v1474 = vpop.f32.mrf.mxu0
    %v1475 = vadd.f32 %v236, %v1474
    %1476 = vmatmul.bf16.gmra.mxu0 %v1452
    %v1477 = vpop.f32.mrf.mxu0
    %v1478 = vadd.f32 %v237, %v1477
    %v1479 = vpop.f32.mrf.mxu0
    %v1480 = vadd.f32 %v238, %v1479
    %1481 = vmatmul.bf16.gmra.mxu0 %v1455
    %v1482 = vpop.f32.mrf.mxu0
    %v1483 = vadd.f32 %v239, %v1482
    %v1484 = vpop.f32.mrf.mxu0
    %v1485 = vadd.f32 %v240, %v1484
    %1486 = vmatmul.bf16.gmra.mxu0 %v1458
    %v1487 = vpop.f32.mrf.mxu0
    %v1488 = vadd.f32 %v241, %v1487
    %v1489 = vpop.f32.mrf.mxu0
    %v1490 = vadd.f32 %v242, %v1489
    %1491 = vdwg.mxu0
    %v1492 = vsel %vm400, %v1473, -inf
    %1493 = vmax.xlane.f32.xlu0 %v1492
    %v1494 = vpop.xlane.xlu0 %1493
    %v1495 = vsel %vm400, %v1475, -inf
    %1496 = vmax.xlane.f32.xlu0 %v1495
    %v1497 = vpop.xlane.xlu0 %1496
    %v1498 = vsel %vm400, %v1478, -inf
    %1499 = vmax.xlane.f32.xlu0 %v1498
    %v1500 = vpop.xlane.xlu0 %1499
    %v1501 = vsel %vm400, %v1480, -inf
    %1502 = vmax.xlane.f32.xlu0 %v1501
    %v1503 = vpop.xlane.xlu0 %1502
    %v1504 = vsel %vm400, %v1483, -inf
    %1505 = vmax.xlane.f32.xlu0 %v1504
    %v1506 = vpop.xlane.xlu0 %1505
    %v1507 = vsel %vm400, %v1485, -inf
    %1508 = vmax.xlane.f32.xlu0 %v1507
    %v1509 = vpop.xlane.xlu0 %1508
    %v1510 = vsel %vm400, %v1488, -inf
    %1511 = vmax.xlane.f32.xlu0 %v1510
    %v1512 = vpop.xlane.xlu0 %1511
    %v1513 = vsel %vm400, %v1490, -inf
    %1514 = vmax.xlane.f32.xlu0 %v1513
    %v1515 = vpop.xlane.xlu0 %1514
    %v1516 = vsub.f32 %v1473, %v1494
    %v1517 = vsub.f32 %v1475, %v1497
    %v1518 = vsub.f32 %v1478, %v1500
    %v1519 = vsub.f32 %v1480, %v1503
    %v1520 = vsub.f32 %v1483, %v1506
    %v1521 = vsub.f32 %v1485, %v1509
    %v1522 = vsub.f32 %v1488, %v1512
    %v1523 = vsub.f32 %v1490, %v1515
    %v1524 = vmul.f32 %v1516, 1.442695
    %v1525 = vpow.pop %v1524
    %v1526 = vmul.f32 %v1517, 1.442695
    %v1527 = vpow.pop %v1526
    %v1528 = vmul.f32 %v1518, 1.442695
    %v1529 = vpow.pop %v1528
    %v1530 = vmul.f32 %v1519, 1.442695
    %v1531 = vpow.pop %v1530
    %v1532 = vmul.f32 %v1520, 1.442695
    %v1533 = vpow.pop %v1532
    %v1534 = vmul.f32 %v1521, 1.442695
    %v1535 = vpow.pop %v1534
    %v1536 = vmul.f32 %v1522, 1.442695
    %v1537 = vpow.pop %v1536
    %v1538 = vmul.f32 %v1523, 1.442695
    %v1539 = vpow.pop %v1538
    %v1540 = vsel %vm400, %v1525, 0.0
    %1541 = vadd.xlane.f32.xlu0 %v1540
    %v1542 = vpop.xlane.xlu0 %1541
    %v1543 = vsel %vm400, %v1527, 0.0
    %1544 = vadd.xlane.f32.xlu0 %v1543
    %v1545 = vpop.xlane.xlu0 %1544
    %v1546 = vsel %vm400, %v1529, 0.0
    %1547 = vadd.xlane.f32.xlu0 %v1546
    %v1548 = vpop.xlane.xlu0 %1547
    %v1549 = vsel %vm400, %v1531, 0.0
    %1550 = vadd.xlane.f32.xlu0 %v1549
    %v1551 = vpop.xlane.xlu0 %1550
    %v1552 = vsel %vm400, %v1533, 0.0
    %1553 = vadd.xlane.f32.xlu0 %v1552
    %v1554 = vpop.xlane.xlu0 %1553
    %v1555 = vsel %vm400, %v1535, 0.0
    %1556 = vadd.xlane.f32.xlu0 %v1555
    %v1557 = vpop.xlane.xlu0 %1556
    %v1558 = vsel %vm400, %v1537, 0.0
    %1559 = vadd.xlane.f32.xlu0 %v1558
    %v1560 = vpop.xlane.xlu0 %1559
    %v1561 = vsel %vm400, %v1539, 0.0
    %1562 = vadd.xlane.f32.xlu0 %v1561
    %v1563 = vpop.xlane.xlu0 %1562
    %v1564 = vrcp.pop %v1542
    %v1565 = vrcp.pop %v1545
    %v1566 = vrcp.pop %v1548
    %v1567 = vrcp.pop %v1551
    %v1568 = vrcp.pop %v1554
    %v1569 = vrcp.pop %v1557
    %v1570 = vrcp.pop %v1560
    %v1571 = vrcp.pop %v1563
    %v1572 = vmul.f32 %v1525, %v1564
    %v1573 = vmul.f32 %v1527, %v1565
    %v1574 = vmul.f32 %v1529, %v1566
    %v1575 = vmul.f32 %v1531, %v1567
    %v1576 = vmul.f32 %v1533, %v1568
    %v1577 = vmul.f32 %v1535, %v1569
    %v1578 = vmul.f32 %v1537, %v1570
    %v1579 = vmul.f32 %v1539, %v1571
    %v1580 = vpack.c.bf16 %v1573, %v1572
    %v1581 = vpack.c.bf16 %v1575, %v1574
    %v1582 = vpack.c.bf16 %v1577, %v1576
    %v1583 = vpack.c.bf16 %v1579, %v1578
    %1584 = vrot.lane.b32.xlu0 %v1444, 64
    %v1585 = vpop.permute.xlu0 %1584
    %v1588 = vsel %vm400, %v1580, 0
    %v1591 = vsel %vm400, %v1581, 0
    %v1594 = vsel %vm400, %v1582, 0
    %v1597 = vsel %vm400, %v1583, 0
    %1599 = vmatpush.bf16.msra.mxu0 0
    %1600 = vmatpush.bf16.msra.mxu0 0
    %1601 = vmatpush.bf16.msra.mxu0 0
    %1602 = vmatpush.bf16.msra.mxu0 0
    %1603 = vmatpush.bf16.msra.mxu0 0
    %1604 = vmatpush.bf16.msra.mxu0 0
    %1605 = vmatpush.bf16.msra.mxu0 0
    %1606 = vmatpush.bf16.msra.mxu0 %v1585
    %1607 = vmatmul.bf16.gmra.mxu0 %v1588
    %v1608 = vpop.f32.mrf.mxu0
    %v1609 = vadd.f32 0.0, %v1608
    %v1610 = vpop.f32.mrf.mxu0
    %v1611 = vadd.f32 0.0, %v1610
    %1612 = vmatmul.bf16.gmra.mxu0 %v1591
    %v1613 = vpop.f32.mrf.mxu0
    %v1614 = vadd.f32 0.0, %v1613
    %v1615 = vpop.f32.mrf.mxu0
    %v1616 = vadd.f32 0.0, %v1615
    %1617 = vmatmul.bf16.gmra.mxu0 %v1594
    %v1618 = vpop.f32.mrf.mxu0
    %v1619 = vadd.f32 0.0, %v1618
    %v1620 = vpop.f32.mrf.mxu0
    %v1621 = vadd.f32 0.0, %v1620
    %1622 = vmatmul.bf16.gmra.mxu0 %v1597
    %v1623 = vpop.f32.mrf.mxu0
    %v1624 = vadd.f32 0.0, %v1623
    %v1625 = vpop.f32.mrf.mxu0
    %v1626 = vadd.f32 0.0, %v1625
    %1627 = vdwg.mxu0
    %v1628 = vmul.f32 %v1609, %v227
    %v1629 = vmul.f32 %v1611, %v228
    %v1630 = vmul.f32 %v1614, %v229
    %v1631 = vmul.f32 %v1616, %v230
    %v1632 = vmul.f32 %v1619, %v231
    %v1633 = vmul.f32 %v1621, %v232
    %v1634 = vmul.f32 %v1624, %v233
    %v1635 = vmul.f32 %v1626, %v234
    %v1636 = vpack.c.bf16 %v1629, %v1628
    %v1637 = vpack.c.bf16 %v1631, %v1630
    %v1638 = vpack.c.bf16 %v1633, %v1632
    %v1639 = vpack.c.bf16 %v1635, %v1634
    %1640 = vmatpush.bf16.msra.mxu0 0
    %1641 = vmatpush.bf16.msra.mxu0 0
    %1642 = vmatpush.bf16.msra.mxu0 0
    %1643 = vmatpush.bf16.msra.mxu0 0
    %1644 = vmatpush.bf16.msra.mxu0 %v1639
    %1645 = vmatpush.bf16.msra.mxu0 %v1638
    %1646 = vmatpush.bf16.msra.mxu0 %v1637
    %1647 = vmatpush.bf16.msra.mxu0 %v1636
    %1648 = vmatmul.bf16.gmra.mxu0 %v556
    %v1649 = vpop.f32.mrf.mxu0
    %v1650 = vadd.f32 0.0, %v1649
    %v1651 = vpop.f32.mrf.mxu0
    %v1652 = vadd.f32 0.0, %v1651
    %1653 = vdwg.mxu0
    %v1654 = vpack.c.bf16 %v1652, %v1650
    %s1655 = scalar_lea.vmem %s4, 32
    %v1656 = vld [vmem:[%s1655] sm:$0xf]
    %v1657 = vld [vmem:[%s1655 + $0x4] sm:$0xf]
    %v1658 = vld [vmem:[%s1655 + $0x8] sm:$0xf]
    %v1659 = vld [vmem:[%s1655 + $0xc] sm:$0xf]
    %v1664 = vunpack.c.l.b16 %v1656
    %v1665 = vunpack.c.l.b16 %v1657
    %v1666 = vunpack.c.l.b16 %v1658
    %v1667 = vunpack.c.l.b16 %v1659
    %v1668 = vpack.c.b16 %v1665, %v1664
    %v1669 = vpack.c.b16 %v1667, %v1666
    %v1673 = vsel %vm246, %v1654, 0
    %1675 = vmatpush.bf16.msra.mxu0 0
    %1676 = vmatpush.bf16.msra.mxu0 0
    %1677 = vmatpush.bf16.msra.mxu0 0
    %1678 = vmatpush.bf16.msra.mxu0 0
    %1679 = vmatpush.bf16.msra.mxu0 0
    %1680 = vmatpush.bf16.msra.mxu0 0
    %1681 = vmatpush.bf16.msra.mxu0 %v1669
    %1682 = vmatpush.bf16.msra.mxu0 %v1668
    %1683 = vmatmul.bf16.gmra.mxu0 %v1673
    %v1684 = vpop.f32.mrf.mxu0
    %v1685 = vadd.f32 0.0, %v1684
    %v1686 = vpop.f32.mrf.mxu0
    %v1687 = vadd.f32 0.0, %v1686
    %1688 = vdwg.mxu0
    %v1689 = vadd.f32 %v1340, %v1685
    %v1690 = vadd.f32 %v1341, %v1687
    %v1691 = vperm.slane %v1343, 0
    %v1692 = vadd.f32 %v1689, %v1691
    %v1693 = vadd.f32 %v1690, %v1691
    %v1694 = vsel %vm246, %v1692, 0.0
    %1695 = vadd.xlane.f32.xlu0 %v1694
    %v1696 = vpop.xlane.xlu0 %1695
    %v1697 = vsel %vm246, %v1693, 0.0
    %1698 = vadd.xlane.f32.xlu0 %v1697
    %v1699 = vpop.xlane.xlu0 %1698
    %v1700 = vmul.f32 %v1696, %v259
    %v1701 = vmul.f32 %v1699, %v259
    %v1702 = vmul.f32 %v1692, %v1692
    %v1703 = vmul.f32 %v1693, %v1693
    %v1704 = vsel %vm246, %v1702, 0.0
    %1705 = vadd.xlane.f32.xlu0 %v1704
    %v1706 = vpop.xlane.xlu0 %1705
    %v1707 = vsel %vm246, %v1703, 0.0
    %1708 = vadd.xlane.f32.xlu0 %v1707
    %v1709 = vpop.xlane.xlu0 %1708
    %v1710 = vmul.f32 %v1706, %v259
    %v1711 = vmul.f32 %v1709, %v259
    %v1712 = vmul.f32 %v1700, %v1700
    %v1713 = vmul.f32 %v1701, %v1701
    %v1714 = vsub.f32 %v1710, %v1712
    %v1715 = vsub.f32 %v1711, %v1713
    %v1716 = vsub.f32 %v1692, %v1700
    %v1717 = vsub.f32 %v1693, %v1701
    %v1718 = vadd.f32 %v1714, 1e-05
    %v1719 = vadd.f32 %v1715, 1e-05
    %v1720 = vrsqrt.pop %v1718
    %v1721 = vmul.f32 %v1720, %v1718
    %v1722 = vmul.f32 %v1721, %v1720
    %v1723 = vmul.f32 0.5, %v1722
    %v1724 = vsub.f32 1.5, %v1723
    %v1725 = vmul.f32 %v1720, %v1724
    %vm1726 = vweird.f32 %v1718
    %vm1727 = vweird.f32 %v1720
    %vm1728 = vmor %vm1726, %vm1727
    %v1729 = vsel %vm1728, %v1720, %v1725
    %v1730 = vrsqrt.pop %v1719
    %v1731 = vmul.f32 %v1730, %v1719
    %v1732 = vmul.f32 %v1731, %v1730
    %v1733 = vmul.f32 0.5, %v1732
    %v1734 = vsub.f32 1.5, %v1733
    %v1735 = vmul.f32 %v1730, %v1734
    %vm1736 = vweird.f32 %v1719
    %vm1737 = vweird.f32 %v1730
    %vm1738 = vmor %vm1736, %vm1737
    %v1739 = vsel %vm1738, %v1730, %v1735
    %v1740 = vmul.f32 %v1716, %v1729
    %v1741 = vmul.f32 %v1717, %v1739
    %v1742 = vpack.c.bf16 %v1741, %v1740
    %s1743 = scalar_lea.vmem %s5, 32
    %v1744 = vld [vmem:[%s1743] sm:$0xf]
    %v1745 = vld [vmem:[%s1743 + $0x4] sm:$0xf]
    %v1746 = vld [vmem:[%s1743 + $0x8] sm:$0xf]
    %v1747 = vld [vmem:[%s1743 + $0xc] sm:$0xf]
    %s1748 = scalar_lea.vmem %s6, 2
    %v1749 = vld [vmem:[%s1748] sm:$0x1]
    %v1751 = vperm.slane %v1749, 0
    %v1757 = vunpack.c.l.b16 %v1744
    %v1758 = vunpack.c.l.b16 %v1745
    %v1759 = vunpack.c.l.b16 %v1746
    %v1760 = vunpack.c.l.b16 %v1747
    %v1761 = vpack.c.b16 %v1758, %v1757
    %v1762 = vpack.c.b16 %v1760, %v1759
    %v1766 = vsel %vm246, %v1742, 0
    %1768 = vmatpush.bf16.msra.mxu0 0
    %1769 = vmatpush.bf16.msra.mxu0 0
    %1770 = vmatpush.bf16.msra.mxu0 0
    %1771 = vmatpush.bf16.msra.mxu0 0
    %1772 = vmatpush.bf16.msra.mxu0 0
    %1773 = vmatpush.bf16.msra.mxu0 0
    %1774 = vmatpush.bf16.msra.mxu0 %v1762
    %1775 = vmatpush.bf16.msra.mxu0 %v1761
    %1776 = vmatmul.bf16.gmra.mxu0 %v1766
    %v1777 = vpop.f32.mrf.mxu0
    %v1778 = vadd.f32 %v1751, %v1777
    %v1779 = vpop.f32.mrf.mxu0
    %v1780 = vadd.f32 %v1751, %v1779
    %1781 = vdwg.mxu0
    %v1782 = vmul.f32 %v1778, %v1778
    %v1783 = vmul.f32 %v1780, %v1780
    %v1784 = vmul.f32 %v1778, %v1782
    %v1785 = vmul.f32 %v1780, %v1783
    %v1786 = vmul.f32 %v1784, 0.044715
    %v1787 = vmul.f32 %v1785, 0.044715
    %v1788 = vadd.f32 %v1778, %v1786
    %v1789 = vadd.f32 %v1780, %v1787
    %v1790 = vmul.f32 %v1788, 0.7978846
    %v1791 = vmul.f32 %v1789, 0.7978846
    %v1792 = vtanh.pop %v1790
    %v1793 = vtanh.pop %v1791
    %v1794 = vadd.f32 %v1792, 1.0
    %v1795 = vadd.f32 %v1793, 1.0
    %v1796 = vmul.f32 %v1794, 0.5
    %v1797 = vmul.f32 %v1795, 0.5
    %v1798 = vmul.f32 %v1778, %v1796
    %v1799 = vmul.f32 %v1780, %v1797
    %v1800 = vpack.c.bf16 %v1799, %v1798
    %s1801 = scalar_lea.vmem %s7, 128
    %v1802 = vld [vmem:[%s1801] sm:$0xf]
    %v1803 = vld [vmem:[%s1801 + $0x4] sm:$0xf]
    %v1804 = vld [vmem:[%s1801 + $0x8] sm:$0xf]
    %v1805 = vld [vmem:[%s1801 + $0xc] sm:$0xf]
    %v1806 = vld [vmem:[%s1801 + $0x10] sm:$0xf]
    %v1807 = vld [vmem:[%s1801 + $0x14] sm:$0xf]
    %v1808 = vld [vmem:[%s1801 + $0x18] sm:$0xf]
    %v1809 = vld [vmem:[%s1801 + $0x1c] sm:$0xf]
    %v1810 = vld [vmem:[%s1801 + $0x20] sm:$0xf]
    %v1811 = vld [vmem:[%s1801 + $0x24] sm:$0xf]
    %v1812 = vld [vmem:[%s1801 + $0x28] sm:$0xf]
    %v1813 = vld [vmem:[%s1801 + $0x2c] sm:$0xf]
    %v1814 = vld [vmem:[%s1801 + $0x30] sm:$0xf]
    %v1815 = vld [vmem:[%s1801 + $0x34] sm:$0xf]
    %v1816 = vld [vmem:[%s1801 + $0x38] sm:$0xf]
    %v1817 = vld [vmem:[%s1801 + $0x3c] sm:$0xf]
    %v1834 = vunpack.c.l.b16 %v1802
    %v1835 = vunpack.c.l.b16 %v1803
    %v1836 = vunpack.c.l.b16 %v1804
    %v1837 = vunpack.c.l.b16 %v1805
    %v1838 = vunpack.c.l.b16 %v1806
    %v1839 = vunpack.c.l.b16 %v1807
    %v1840 = vunpack.c.l.b16 %v1808
    %v1841 = vunpack.c.l.b16 %v1809
    %v1842 = vunpack.c.l.b16 %v1810
    %v1843 = vunpack.c.l.b16 %v1811
    %v1844 = vunpack.c.l.b16 %v1812
    %v1845 = vunpack.c.l.b16 %v1813
    %v1846 = vunpack.c.l.b16 %v1814
    %v1847 = vunpack.c.l.b16 %v1815
    %v1848 = vunpack.c.l.b16 %v1816
    %v1849 = vunpack.c.l.b16 %v1817
    %v1850 = vpack.c.b16 %v1835, %v1834
    %v1851 = vpack.c.b16 %v1837, %v1836
    %v1852 = vpack.c.b16 %v1839, %v1838
    %v1853 = vpack.c.b16 %v1841, %v1840
    %v1854 = vpack.c.b16 %v1843, %v1842
    %v1855 = vpack.c.b16 %v1845, %v1844
    %v1856 = vpack.c.b16 %v1847, %v1846
    %v1857 = vpack.c.b16 %v1849, %v1848
    %1866 = vmatpush.bf16.msra.mxu0 %v1857
    %1867 = vmatpush.bf16.msra.mxu0 %v1856
    %1868 = vmatpush.bf16.msra.mxu0 %v1855
    %1869 = vmatpush.bf16.msra.mxu0 %v1854
    %1870 = vmatpush.bf16.msra.mxu0 %v1853
    %1871 = vmatpush.bf16.msra.mxu0 %v1852
    %1872 = vmatpush.bf16.msra.mxu0 %v1851
    %1873 = vmatpush.bf16.msra.mxu0 %v1850
    %1874 = vmatmul.bf16.gmra.mxu0 %v1800
    %v1875 = vpop.f32.mrf.mxu0
    %v1876 = vadd.f32 0.0, %v1875
    %v1877 = vpop.f32.mrf.mxu0
    %v1878 = vadd.f32 0.0, %v1877
    %1879 = vdwg.mxu0
    %v1880 = vadd.f32 %v1692, %v1876
    %v1881 = vadd.f32 %v1693, %v1878
    %v1882 = vperm.slane %v1343, 1
    %v1883 = vadd.f32 %v1880, %v1882
    %v1884 = vadd.f32 %v1881, %v1882
    %s1885 = scalar_lea.vmem %s8, 6
    %v1886 = vld [vmem:[%s1885] sm:$0x3]
    %v1887 = vsel %vm246, %v1883, 0.0
    %1888 = vadd.xlane.f32.xlu0 %v1887
    %v1889 = vpop.xlane.xlu0 %1888
    %v1890 = vsel %vm246, %v1884, 0.0
    %1891 = vadd.xlane.f32.xlu0 %v1890
    %v1892 = vpop.xlane.xlu0 %1891
    %v1893 = vmul.f32 %v1889, %v259
    %v1894 = vmul.f32 %v1892, %v259
    %v1895 = vmul.f32 %v1883, %v1883
    %v1896 = vmul.f32 %v1884, %v1884
    %v1897 = vsel %vm246, %v1895, 0.0
    %1898 = vadd.xlane.f32.xlu0 %v1897
    %v1899 = vpop.xlane.xlu0 %1898
    %v1900 = vsel %vm246, %v1896, 0.0
    %1901 = vadd.xlane.f32.xlu0 %v1900
    %v1902 = vpop.xlane.xlu0 %1901
    %v1903 = vmul.f32 %v1899, %v259
    %v1904 = vmul.f32 %v1902, %v259
    %v1905 = vmul.f32 %v1893, %v1893
    %v1906 = vmul.f32 %v1894, %v1894
    %v1907 = vsub.f32 %v1903, %v1905
    %v1908 = vsub.f32 %v1904, %v1906
    %v1909 = vsub.f32 %v1883, %v1893
    %v1910 = vsub.f32 %v1884, %v1894
    %v1911 = vadd.f32 %v1907, 1e-05
    %v1912 = vadd.f32 %v1908, 1e-05
    %v1913 = vrsqrt.pop %v1911
    %v1914 = vmul.f32 %v1913, %v1911
    %v1915 = vmul.f32 %v1914, %v1913
    %v1916 = vmul.f32 0.5, %v1915
    %v1917 = vsub.f32 1.5, %v1916
    %v1918 = vmul.f32 %v1913, %v1917
    %vm1919 = vweird.f32 %v1911
    %vm1920 = vweird.f32 %v1913
    %vm1921 = vmor %vm1919, %vm1920
    %v1922 = vsel %vm1921, %v1913, %v1918
    %v1923 = vrsqrt.pop %v1912
    %v1924 = vmul.f32 %v1923, %v1912
    %v1925 = vmul.f32 %v1924, %v1923
    %v1926 = vmul.f32 0.5, %v1925
    %v1927 = vsub.f32 1.5, %v1926
    %v1928 = vmul.f32 %v1923, %v1927
    %vm1929 = vweird.f32 %v1912
    %vm1930 = vweird.f32 %v1923
    %vm1931 = vmor %vm1929, %vm1930
    %v1932 = vsel %vm1931, %v1923, %v1928
    %v1933 = vmul.f32 %v1909, %v1922
    %v1934 = vmul.f32 %v1910, %v1932
    %v1935 = vpack.c.bf16 %v1934, %v1933
    %s1936 = scalar_lea.vmem %s2, 48
    %v1937 = vld [vmem:[%s1936] sm:$0xf]
    %v1938 = vld [vmem:[%s1936 + $0x4] sm:$0xf]
    %v1939 = vld [vmem:[%s1936 + $0x8] sm:$0xf]
    %v1940 = vld [vmem:[%s1936 + $0xc] sm:$0xf]
    %s1941 = scalar_lea.vmem %s3, 3
    %v1942 = vld [vmem:[%s1941] sm:$0x1]
    %v1944 = vperm.slane %v1942, 0
    %v1950 = vunpack.c.l.b16 %v1937
    %v1951 = vunpack.c.l.b16 %v1938
    %v1952 = vunpack.c.l.b16 %v1939
    %v1953 = vunpack.c.l.b16 %v1940
    %v1954 = vpack.c.b16 %v1951, %v1950
    %v1955 = vpack.c.b16 %v1953, %v1952
    %v1959 = vsel %vm246, %v1935, 0
    %1961 = vmatpush.bf16.msra.mxu0 0
    %1962 = vmatpush.bf16.msra.mxu0 0
    %1963 = vmatpush.bf16.msra.mxu0 0
    %1964 = vmatpush.bf16.msra.mxu0 0
    %1965 = vmatpush.bf16.msra.mxu0 0
    %1966 = vmatpush.bf16.msra.mxu0 0
    %1967 = vmatpush.bf16.msra.mxu0 %v1955
    %1968 = vmatpush.bf16.msra.mxu0 %v1954
    %1969 = vmatmul.bf16.gmra.mxu0 %v1959
    %v1970 = vpop.f32.mrf.mxu0
    %v1971 = vadd.f32 %v1944, %v1970
    %v1972 = vpop.f32.mrf.mxu0
    %v1973 = vadd.f32 %v1944, %v1972
    %1974 = vdwg.mxu0
    %v1975 = vmul.f32 %v1971, %v227
    %v1976 = vmul.f32 %v1973, %v228
    %v1977 = vmul.f32 %v1971, %v229
    %v1978 = vmul.f32 %v1973, %v230
    %v1979 = vmul.f32 %v1971, %v231
    %v1980 = vmul.f32 %v1973, %v232
    %v1981 = vmul.f32 %v1971, %v233
    %v1982 = vmul.f32 %v1973, %v234
    %v1983 = vpack.c.bf16 %v1976, %v1975
    %v1984 = vpack.c.bf16 %v1978, %v1977
    %v1985 = vpack.c.bf16 %v1980, %v1979
    %v1986 = vpack.c.bf16 %v1982, %v1981
    %v1987 = vpack.c.bf16 %v1973, %v1971
    %1989 = vrot.lane.b32.xlu0 %v1987, 96
    %v1990 = vpop.permute.xlu0 %1989
    %v1992 = vsel %vm246, %v1983, 0
    %v1995 = vsel %vm246, %v1984, 0
    %v1998 = vsel %vm246, %v1985, 0
    %v2001 = vsel %vm246, %v1986, 0
    %v2004 = vsel %vm246, %v1990, 0
    %2006 = vmatpush.bf16.xpose.msra.mxu0 0
    %2007 = vmatpush.bf16.xpose.msra.mxu0 0
    %2008 = vmatpush.bf16.xpose.msra.mxu0 0
    %2009 = vmatpush.bf16.xpose.msra.mxu0 0
    %2010 = vmatpush.bf16.xpose.msra.mxu0 0
    %2011 = vmatpush.bf16.xpose.msra.mxu0 0
    %2012 = vmatpush.bf16.xpose.msra.mxu0 0
    %2013 = vmatpush.bf16.xpose.msra.mxu0 %v2004
    %2014 = vmatmul.bf16.gmra.mxu0 %v1992
    %v2015 = vpop.f32.mrf.mxu0
    %v2016 = vadd.f32 %v235, %v2015
    %v2017 = vpop.f32.mrf.mxu0
    %v2018 = vadd.f32 %v236, %v2017
    %2019 = vmatmul.bf16.gmra.mxu0 %v1995
    %v2020 = vpop.f32.mrf.mxu0
    %v2021 = vadd.f32 %v237, %v2020
    %v2022 = vpop.f32.mrf.mxu0
    %v2023 = vadd.f32 %v238, %v2022
    %2024 = vmatmul.bf16.gmra.mxu0 %v1998
    %v2025 = vpop.f32.mrf.mxu0
    %v2026 = vadd.f32 %v239, %v2025
    %v2027 = vpop.f32.mrf.mxu0
    %v2028 = vadd.f32 %v240, %v2027
    %2029 = vmatmul.bf16.gmra.mxu0 %v2001
    %v2030 = vpop.f32.mrf.mxu0
    %v2031 = vadd.f32 %v241, %v2030
    %v2032 = vpop.f32.mrf.mxu0
    %v2033 = vadd.f32 %v242, %v2032
    %2034 = vdwg.mxu0
    %v2035 = vsel %vm400, %v2016, -inf
    %2036 = vmax.xlane.f32.xlu0 %v2035
    %v2037 = vpop.xlane.xlu0 %2036
    %v2038 = vsel %vm400, %v2018, -inf
    %2039 = vmax.xlane.f32.xlu0 %v2038
    %v2040 = vpop.xlane.xlu0 %2039
    %v2041 = vsel %vm400, %v2021, -inf
    %2042 = vmax.xlane.f32.xlu0 %v2041
    %v2043 = vpop.xlane.xlu0 %2042
    %v2044 = vsel %vm400, %v2023, -inf
    %2045 = vmax.xlane.f32.xlu0 %v2044
    %v2046 = vpop.xlane.xlu0 %2045
    %v2047 = vsel %vm400, %v2026, -inf
    %2048 = vmax.xlane.f32.xlu0 %v2047
    %v2049 = vpop.xlane.xlu0 %2048
    %v2050 = vsel %vm400, %v2028, -inf
    %2051 = vmax.xlane.f32.xlu0 %v2050
    %v2052 = vpop.xlane.xlu0 %2051
    %v2053 = vsel %vm400, %v2031, -inf
    %2054 = vmax.xlane.f32.xlu0 %v2053
    %v2055 = vpop.xlane.xlu0 %2054
    %v2056 = vsel %vm400, %v2033, -inf
    %2057 = vmax.xlane.f32.xlu0 %v2056
    %v2058 = vpop.xlane.xlu0 %2057
    %v2059 = vsub.f32 %v2016, %v2037
    %v2060 = vsub.f32 %v2018, %v2040
    %v2061 = vsub.f32 %v2021, %v2043
    %v2062 = vsub.f32 %v2023, %v2046
    %v2063 = vsub.f32 %v2026, %v2049
    %v2064 = vsub.f32 %v2028, %v2052
    %v2065 = vsub.f32 %v2031, %v2055
    %v2066 = vsub.f32 %v2033, %v2058
    %v2067 = vmul.f32 %v2059, 1.442695
    %v2068 = vpow.pop %v2067
    %v2069 = vmul.f32 %v2060, 1.442695
    %v2070 = vpow.pop %v2069
    %v2071 = vmul.f32 %v2061, 1.442695
    %v2072 = vpow.pop %v2071
    %v2073 = vmul.f32 %v2062, 1.442695
    %v2074 = vpow.pop %v2073
    %v2075 = vmul.f32 %v2063, 1.442695
    %v2076 = vpow.pop %v2075
    %v2077 = vmul.f32 %v2064, 1.442695
    %v2078 = vpow.pop %v2077
    %v2079 = vmul.f32 %v2065, 1.442695
    %v2080 = vpow.pop %v2079
    %v2081 = vmul.f32 %v2066, 1.442695
    %v2082 = vpow.pop %v2081
    %v2083 = vsel %vm400, %v2068, 0.0
    %2084 = vadd.xlane.f32.xlu0 %v2083
    %v2085 = vpop.xlane.xlu0 %2084
    %v2086 = vsel %vm400, %v2070, 0.0
    %2087 = vadd.xlane.f32.xlu0 %v2086
    %v2088 = vpop.xlane.xlu0 %2087
    %v2089 = vsel %vm400, %v2072, 0.0
    %2090 = vadd.xlane.f32.xlu0 %v2089
    %v2091 = vpop.xlane.xlu0 %2090
    %v2092 = vsel %vm400, %v2074, 0.0
    %2093 = vadd.xlane.f32.xlu0 %v2092
    %v2094 = vpop.xlane.xlu0 %2093
    %v2095 = vsel %vm400, %v2076, 0.0
    %2096 = vadd.xlane.f32.xlu0 %v2095
    %v2097 = vpop.xlane.xlu0 %2096
    %v2098 = vsel %vm400, %v2078, 0.0
    %2099 = vadd.xlane.f32.xlu0 %v2098
    %v2100 = vpop.xlane.xlu0 %2099
    %v2101 = vsel %vm400, %v2080, 0.0
    %2102 = vadd.xlane.f32.xlu0 %v2101
    %v2103 = vpop.xlane.xlu0 %2102
    %v2104 = vsel %vm400, %v2082, 0.0
    %2105 = vadd.xlane.f32.xlu0 %v2104
    %v2106 = vpop.xlane.xlu0 %2105
    %v2107 = vrcp.pop %v2085
    %v2108 = vrcp.pop %v2088
    %v2109 = vrcp.pop %v2091
    %v2110 = vrcp.pop %v2094
    %v2111 = vrcp.pop %v2097
    %v2112 = vrcp.pop %v2100
    %v2113 = vrcp.pop %v2103
    %v2114 = vrcp.pop %v2106
    %v2115 = vmul.f32 %v2068, %v2107
    %v2116 = vmul.f32 %v2070, %v2108
    %v2117 = vmul.f32 %v2072, %v2109
    %v2118 = vmul.f32 %v2074, %v2110
    %v2119 = vmul.f32 %v2076, %v2111
    %v2120 = vmul.f32 %v2078, %v2112
    %v2121 = vmul.f32 %v2080, %v2113
    %v2122 = vmul.f32 %v2082, %v2114
    %v2123 = vpack.c.bf16 %v2116, %v2115
    %v2124 = vpack.c.bf16 %v2118, %v2117
    %v2125 = vpack.c.bf16 %v2120, %v2119
    %v2126 = vpack.c.bf16 %v2122, %v2121
    %2127 = vrot.lane.b32.xlu0 %v1987, 64
    %v2128 = vpop.permute.xlu0 %2127
    %v2131 = vsel %vm400, %v2123, 0
    %v2134 = vsel %vm400, %v2124, 0
    %v2137 = vsel %vm400, %v2125, 0
    %v2140 = vsel %vm400, %v2126, 0
    %2142 = vmatpush.bf16.msra.mxu0 0
    %2143 = vmatpush.bf16.msra.mxu0 0
    %2144 = vmatpush.bf16.msra.mxu0 0
    %2145 = vmatpush.bf16.msra.mxu0 0
    %2146 = vmatpush.bf16.msra.mxu0 0
    %2147 = vmatpush.bf16.msra.mxu0 0
    %2148 = vmatpush.bf16.msra.mxu0 0
    %2149 = vmatpush.bf16.msra.mxu0 %v2128
    %2150 = vmatmul.bf16.gmra.mxu0 %v2131
    %v2151 = vpop.f32.mrf.mxu0
    %v2152 = vadd.f32 0.0, %v2151
    %v2153 = vpop.f32.mrf.mxu0
    %v2154 = vadd.f32 0.0, %v2153
    %2155 = vmatmul.bf16.gmra.mxu0 %v2134
    %v2156 = vpop.f32.mrf.mxu0
    %v2157 = vadd.f32 0.0, %v2156
    %v2158 = vpop.f32.mrf.mxu0
    %v2159 = vadd.f32 0.0, %v2158
    %2160 = vmatmul.bf16.gmra.mxu0 %v2137
    %v2161 = vpop.f32.mrf.mxu0
    %v2162 = vadd.f32 0.0, %v2161
    %v2163 = vpop.f32.mrf.mxu0
    %v2164 = vadd.f32 0.0, %v2163
    %2165 = vmatmul.bf16.gmra.mxu0 %v2140
    %v2166 = vpop.f32.mrf.mxu0
    %v2167 = vadd.f32 0.0, %v2166
    %v2168 = vpop.f32.mrf.mxu0
    %v2169 = vadd.f32 0.0, %v2168
    %2170 = vdwg.mxu0
    %v2171 = vmul.f32 %v2152, %v227
    %v2172 = vmul.f32 %v2154, %v228
    %v2173 = vmul.f32 %v2157, %v229
    %v2174 = vmul.f32 %v2159, %v230
    %v2175 = vmul.f32 %v2162, %v231
    %v2176 = vmul.f32 %v2164, %v232
    %v2177 = vmul.f32 %v2167, %v233
    %v2178 = vmul.f32 %v2169, %v234
    %v2179 = vpack.c.bf16 %v2172, %v2171
    %v2180 = vpack.c.bf16 %v2174, %v2173
    %v2181 = vpack.c.bf16 %v2176, %v2175
    %v2182 = vpack.c.bf16 %v2178, %v2177
    %2183 = vmatpush.bf16.msra.mxu0 0
    %2184 = vmatpush.bf16.msra.mxu0 0
    %2185 = vmatpush.bf16.msra.mxu0 0
    %2186 = vmatpush.bf16.msra.mxu0 0
    %2187 = vmatpush.bf16.msra.mxu0 %v2182
    %2188 = vmatpush.bf16.msra.mxu0 %v2181
    %2189 = vmatpush.bf16.msra.mxu0 %v2180
    %2190 = vmatpush.bf16.msra.mxu0 %v2179
    %2191 = vmatmul.bf16.gmra.mxu0 %v556
    %v2192 = vpop.f32.mrf.mxu0
    %v2193 = vadd.f32 0.0, %v2192
    %v2194 = vpop.f32.mrf.mxu0
    %v2195 = vadd.f32 0.0, %v2194
    %2196 = vdwg.mxu0
    %v2197 = vpack.c.bf16 %v2195, %v2193
    %s2198 = scalar_lea.vmem %s4, 48
    %v2199 = vld [vmem:[%s2198] sm:$0xf]
    %v2200 = vld [vmem:[%s2198 + $0x4] sm:$0xf]
    %v2201 = vld [vmem:[%s2198 + $0x8] sm:$0xf]
    %v2202 = vld [vmem:[%s2198 + $0xc] sm:$0xf]
    %v2207 = vunpack.c.l.b16 %v2199
    %v2208 = vunpack.c.l.b16 %v2200
    %v2209 = vunpack.c.l.b16 %v2201
    %v2210 = vunpack.c.l.b16 %v2202
    %v2211 = vpack.c.b16 %v2208, %v2207
    %v2212 = vpack.c.b16 %v2210, %v2209
    %v2216 = vsel %vm246, %v2197, 0
    %2218 = vmatpush.bf16.msra.mxu0 0
    %2219 = vmatpush.bf16.msra.mxu0 0
    %2220 = vmatpush.bf16.msra.mxu0 0
    %2221 = vmatpush.bf16.msra.mxu0 0
    %2222 = vmatpush.bf16.msra.mxu0 0
    %2223 = vmatpush.bf16.msra.mxu0 0
    %2224 = vmatpush.bf16.msra.mxu0 %v2212
    %2225 = vmatpush.bf16.msra.mxu0 %v2211
    %2226 = vmatmul.bf16.gmra.mxu0 %v2216
    %v2227 = vpop.f32.mrf.mxu0
    %v2228 = vadd.f32 0.0, %v2227
    %v2229 = vpop.f32.mrf.mxu0
    %v2230 = vadd.f32 0.0, %v2229
    %2231 = vdwg.mxu0
    %v2232 = vadd.f32 %v1883, %v2228
    %v2233 = vadd.f32 %v1884, %v2230
    %v2234 = vperm.slane %v1886, 0
    %v2235 = vadd.f32 %v2232, %v2234
    %v2236 = vadd.f32 %v2233, %v2234
    %v2237 = vsel %vm246, %v2235, 0.0
    %2238 = vadd.xlane.f32.xlu0 %v2237
    %v2239 = vpop.xlane.xlu0 %2238
    %v2240 = vsel %vm246, %v2236, 0.0
    %2241 = vadd.xlane.f32.xlu0 %v2240
    %v2242 = vpop.xlane.xlu0 %2241
    %v2243 = vmul.f32 %v2239, %v259
    %v2244 = vmul.f32 %v2242, %v259
    %v2245 = vmul.f32 %v2235, %v2235
    %v2246 = vmul.f32 %v2236, %v2236
    %v2247 = vsel %vm246, %v2245, 0.0
    %2248 = vadd.xlane.f32.xlu0 %v2247
    %v2249 = vpop.xlane.xlu0 %2248
    %v2250 = vsel %vm246, %v2246, 0.0
    %2251 = vadd.xlane.f32.xlu0 %v2250
    %v2252 = vpop.xlane.xlu0 %2251
    %v2253 = vmul.f32 %v2249, %v259
    %v2254 = vmul.f32 %v2252, %v259
    %v2255 = vmul.f32 %v2243, %v2243
    %v2256 = vmul.f32 %v2244, %v2244
    %v2257 = vsub.f32 %v2253, %v2255
    %v2258 = vsub.f32 %v2254, %v2256
    %v2259 = vsub.f32 %v2235, %v2243
    %v2260 = vsub.f32 %v2236, %v2244
    %v2261 = vadd.f32 %v2257, 1e-05
    %v2262 = vadd.f32 %v2258, 1e-05
    %v2263 = vrsqrt.pop %v2261
    %v2264 = vmul.f32 %v2263, %v2261
    %v2265 = vmul.f32 %v2264, %v2263
    %v2266 = vmul.f32 0.5, %v2265
    %v2267 = vsub.f32 1.5, %v2266
    %v2268 = vmul.f32 %v2263, %v2267
    %vm2269 = vweird.f32 %v2261
    %vm2270 = vweird.f32 %v2263
    %vm2271 = vmor %vm2269, %vm2270
    %v2272 = vsel %vm2271, %v2263, %v2268
    %v2273 = vrsqrt.pop %v2262
    %v2274 = vmul.f32 %v2273, %v2262
    %v2275 = vmul.f32 %v2274, %v2273
    %v2276 = vmul.f32 0.5, %v2275
    %v2277 = vsub.f32 1.5, %v2276
    %v2278 = vmul.f32 %v2273, %v2277
    %vm2279 = vweird.f32 %v2262
    %vm2280 = vweird.f32 %v2273
    %vm2281 = vmor %vm2279, %vm2280
    %v2282 = vsel %vm2281, %v2273, %v2278
    %v2283 = vmul.f32 %v2259, %v2272
    %v2284 = vmul.f32 %v2260, %v2282
    %v2285 = vpack.c.bf16 %v2284, %v2283
    %s2286 = scalar_lea.vmem %s5, 48
    %v2287 = vld [vmem:[%s2286] sm:$0xf]
    %v2288 = vld [vmem:[%s2286 + $0x4] sm:$0xf]
    %v2289 = vld [vmem:[%s2286 + $0x8] sm:$0xf]
    %v2290 = vld [vmem:[%s2286 + $0xc] sm:$0xf]
    %s2291 = scalar_lea.vmem %s6, 3
    %v2292 = vld [vmem:[%s2291] sm:$0x1]
    %v2294 = vperm.slane %v2292, 0
    %v2300 = vunpack.c.l.b16 %v2287
    %v2301 = vunpack.c.l.b16 %v2288
    %v2302 = vunpack.c.l.b16 %v2289
    %v2303 = vunpack.c.l.b16 %v2290
    %v2304 = vpack.c.b16 %v2301, %v2300
    %v2305 = vpack.c.b16 %v2303, %v2302
    %v2309 = vsel %vm246, %v2285, 0
    %2311 = vmatpush.bf16.msra.mxu0 0
    %2312 = vmatpush.bf16.msra.mxu0 0
    %2313 = vmatpush.bf16.msra.mxu0 0
    %2314 = vmatpush.bf16.msra.mxu0 0
    %2315 = vmatpush.bf16.msra.mxu0 0
    %2316 = vmatpush.bf16.msra.mxu0 0
    %2317 = vmatpush.bf16.msra.mxu0 %v2305
    %2318 = vmatpush.bf16.msra.mxu0 %v2304
    %2319 = vmatmul.bf16.gmra.mxu0 %v2309
    %v2320 = vpop.f32.mrf.mxu0
    %v2321 = vadd.f32 %v2294, %v2320
    %v2322 = vpop.f32.mrf.mxu0
    %v2323 = vadd.f32 %v2294, %v2322
    %2324 = vdwg.mxu0
    %v2325 = vmul.f32 %v2321, %v2321
    %v2326 = vmul.f32 %v2323, %v2323
    %v2327 = vmul.f32 %v2321, %v2325
    %v2328 = vmul.f32 %v2323, %v2326
    %v2329 = vmul.f32 %v2327, 0.044715
    %v2330 = vmul.f32 %v2328, 0.044715
    %v2331 = vadd.f32 %v2321, %v2329
    %v2332 = vadd.f32 %v2323, %v2330
    %v2333 = vmul.f32 %v2331, 0.7978846
    %v2334 = vmul.f32 %v2332, 0.7978846
    %v2335 = vtanh.pop %v2333
    %v2336 = vtanh.pop %v2334
    %v2337 = vadd.f32 %v2335, 1.0
    %v2338 = vadd.f32 %v2336, 1.0
    %v2339 = vmul.f32 %v2337, 0.5
    %v2340 = vmul.f32 %v2338, 0.5
    %v2341 = vmul.f32 %v2321, %v2339
    %v2342 = vmul.f32 %v2323, %v2340
    %v2343 = vpack.c.bf16 %v2342, %v2341
    %s2344 = scalar_lea.vmem %s7, 192
    %v2345 = vld [vmem:[%s2344] sm:$0xf]
    %v2346 = vld [vmem:[%s2344 + $0x4] sm:$0xf]
    %v2347 = vld [vmem:[%s2344 + $0x8] sm:$0xf]
    %v2348 = vld [vmem:[%s2344 + $0xc] sm:$0xf]
    %v2349 = vld [vmem:[%s2344 + $0x10] sm:$0xf]
    %v2350 = vld [vmem:[%s2344 + $0x14] sm:$0xf]
    %v2351 = vld [vmem:[%s2344 + $0x18] sm:$0xf]
    %v2352 = vld [vmem:[%s2344 + $0x1c] sm:$0xf]
    %v2353 = vld [vmem:[%s2344 + $0x20] sm:$0xf]
    %v2354 = vld [vmem:[%s2344 + $0x24] sm:$0xf]
    %v2355 = vld [vmem:[%s2344 + $0x28] sm:$0xf]
    %v2356 = vld [vmem:[%s2344 + $0x2c] sm:$0xf]
    %v2357 = vld [vmem:[%s2344 + $0x30] sm:$0xf]
    %v2358 = vld [vmem:[%s2344 + $0x34] sm:$0xf]
    %v2359 = vld [vmem:[%s2344 + $0x38] sm:$0xf]
    %v2360 = vld [vmem:[%s2344 + $0x3c] sm:$0xf]
    %v2377 = vunpack.c.l.b16 %v2345
    %v2378 = vunpack.c.l.b16 %v2346
    %v2379 = vunpack.c.l.b16 %v2347
    %v2380 = vunpack.c.l.b16 %v2348
    %v2381 = vunpack.c.l.b16 %v2349
    %v2382 = vunpack.c.l.b16 %v2350
    %v2383 = vunpack.c.l.b16 %v2351
    %v2384 = vunpack.c.l.b16 %v2352
    %v2385 = vunpack.c.l.b16 %v2353
    %v2386 = vunpack.c.l.b16 %v2354
    %v2387 = vunpack.c.l.b16 %v2355
    %v2388 = vunpack.c.l.b16 %v2356
    %v2389 = vunpack.c.l.b16 %v2357
    %v2390 = vunpack.c.l.b16 %v2358
    %v2391 = vunpack.c.l.b16 %v2359
    %v2392 = vunpack.c.l.b16 %v2360
    %v2393 = vpack.c.b16 %v2378, %v2377
    %v2394 = vpack.c.b16 %v2380, %v2379
    %v2395 = vpack.c.b16 %v2382, %v2381
    %v2396 = vpack.c.b16 %v2384, %v2383
    %v2397 = vpack.c.b16 %v2386, %v2385
    %v2398 = vpack.c.b16 %v2388, %v2387
    %v2399 = vpack.c.b16 %v2390, %v2389
    %v2400 = vpack.c.b16 %v2392, %v2391
    %2409 = vmatpush.bf16.msra.mxu0 %v2400
    %2410 = vmatpush.bf16.msra.mxu0 %v2399
    %2411 = vmatpush.bf16.msra.mxu0 %v2398
    %2412 = vmatpush.bf16.msra.mxu0 %v2397
    %2413 = vmatpush.bf16.msra.mxu0 %v2396
    %2414 = vmatpush.bf16.msra.mxu0 %v2395
    %2415 = vmatpush.bf16.msra.mxu0 %v2394
    %2416 = vmatpush.bf16.msra.mxu0 %v2393
    %2417 = vmatmul.bf16.gmra.mxu0 %v2343
    %v2418 = vpop.f32.mrf.mxu0
    %v2419 = vadd.f32 0.0, %v2418
    %v2420 = vpop.f32.mrf.mxu0
    %v2421 = vadd.f32 0.0, %v2420
    %2422 = vdwg.mxu0
    %v2423 = vadd.f32 %v2235, %v2419
    %v2424 = vadd.f32 %v2236, %v2421
    %v2425 = vperm.slane %v1886, 1
    %v2426 = vadd.f32 %v2423, %v2425
    %v2427 = vadd.f32 %v2424, %v2425
    %v2428 = vsel %vm246, %v2426, 0.0
    %2429 = vadd.xlane.f32.xlu0 %v2428
    %v2430 = vpop.xlane.xlu0 %2429
    %v2431 = vsel %vm246, %v2427, 0.0
    %2432 = vadd.xlane.f32.xlu0 %v2431
    %v2433 = vpop.xlane.xlu0 %2432
    %v2434 = vmul.f32 %v2430, %v259
    %v2435 = vmul.f32 %v2433, %v259
    %v2436 = vmul.f32 %v2426, %v2426
    %v2437 = vmul.f32 %v2427, %v2427
    %v2438 = vsel %vm246, %v2436, 0.0
    %2439 = vadd.xlane.f32.xlu0 %v2438
    %v2440 = vpop.xlane.xlu0 %2439
    %v2441 = vsel %vm246, %v2437, 0.0
    %2442 = vadd.xlane.f32.xlu0 %v2441
    %v2443 = vpop.xlane.xlu0 %2442
    %v2444 = vmul.f32 %v2440, %v259
    %v2445 = vmul.f32 %v2443, %v259
    %v2446 = vmul.f32 %v2434, %v2434
    %v2447 = vmul.f32 %v2435, %v2435
    %v2448 = vsub.f32 %v2444, %v2446
    %v2449 = vsub.f32 %v2445, %v2447
    %v2450 = vsub.f32 %v2426, %v2434
    %v2451 = vsub.f32 %v2427, %v2435
    %v2452 = vadd.f32 %v2448, 1e-05
    %v2453 = vadd.f32 %v2449, 1e-05
    %v2454 = vrsqrt.pop %v2452
    %v2455 = vmul.f32 %v2454, %v2452
    %v2456 = vmul.f32 %v2455, %v2454
    %v2457 = vmul.f32 0.5, %v2456
    %v2458 = vsub.f32 1.5, %v2457
    %v2459 = vmul.f32 %v2454, %v2458
    %vm2460 = vweird.f32 %v2452
    %vm2461 = vweird.f32 %v2454
    %vm2462 = vmor %vm2460, %vm2461
    %v2463 = vsel %vm2462, %v2454, %v2459
    %v2464 = vrsqrt.pop %v2453
    %v2465 = vmul.f32 %v2464, %v2453
    %v2466 = vmul.f32 %v2465, %v2464
    %v2467 = vmul.f32 0.5, %v2466
    %v2468 = vsub.f32 1.5, %v2467
    %v2469 = vmul.f32 %v2464, %v2468
    %vm2470 = vweird.f32 %v2453
    %vm2471 = vweird.f32 %v2464
    %vm2472 = vmor %vm2470, %vm2471
    %v2473 = vsel %vm2472, %v2464, %v2469
    %v2474 = vmul.f32 %v2450, %v2463
    %v2475 = vmul.f32 %v2451, %v2473
    %v2476 = vpack.c.bf16 %v2475, %v2474
    %v2477 = vld [vmem:[%s9] sm:$0xf]
    %v2478 = vld [vmem:[%s9 + $0x4] sm:$0xf]
    %v2479 = vld [vmem:[%s9 + $0x8] sm:$0xf]
    %v2480 = vld [vmem:[%s9 + $0xc] sm:$0xf]
    %v2481 = vld [vmem:[%s10] sm:$0x1]
    %v2483 = vperm.slane %v2481, 0
    %v2489 = vunpack.c.l.b16 %v2477
    %v2490 = vunpack.c.l.b16 %v2478
    %v2491 = vunpack.c.l.b16 %v2479
    %v2492 = vunpack.c.l.b16 %v2480
    %v2493 = vpack.c.b16 %v2490, %v2489
    %v2494 = vpack.c.b16 %v2492, %v2491
    %v2498 = vsel %vm246, %v2476, 0
    %2500 = vmatpush.bf16.msra.mxu0 0
    %2501 = vmatpush.bf16.msra.mxu0 0
    %2502 = vmatpush.bf16.msra.mxu0 0
    %2503 = vmatpush.bf16.msra.mxu0 0
    %2504 = vmatpush.bf16.msra.mxu0 0
    %2505 = vmatpush.bf16.msra.mxu0 0
    %2506 = vmatpush.bf16.msra.mxu0 %v2494
    %2507 = vmatpush.bf16.msra.mxu0 %v2493
    %2508 = vmatmul.bf16.gmra.mxu0 %v2498
    %v2509 = vpop.f32.mrf.mxu0
    %v2510 = vadd.f32 %v2483, %v2509
    %v2511 = vpop.f32.mrf.mxu0
    %v2512 = vadd.f32 %v2483, %v2511
    %2513 = vdwg.mxu0
    %2514 = vst [vmem:[#allocation2] sm:$0xff] %v2510
    %2515 = vst [vmem:[#allocation2 + $0x8] sm:$0xff] %v2512
    // Predicated region
    $region58: #{tpu_custom_call.1} parent=1 // pred_check
      _
    $region59: #{tpu_custom_call.1} parent=1 // pred_check_branch
      %2517 = sbr.rel (0) target = $region61
    $region60: #{tpu_custom_call.1} parent=1 // pred_region
      %2519 = vsyncadd [#allocation3], 0
      %s2520 = sshll.u32 [#allocation2], 4
      %s2521 = int_to_ptr.vmem [resolvable:$true] %s2520
      %s2522 = sshll.u32 %s14, 4
      %s2523 = int_to_ptr.hbm [resolvable:$true] %s2522
      %2528 = dma.vmem_to_hbm [thread:$0]  %s2521, 256, %s2523, [#allocation3], 128, 128, 8
    $region61: #{tpu_custom_call.1} parent=1 // pred_fallthru
      _
    // Predicated region
    $region62: #{tpu_custom_call.1} parent=1 // pred_check
      _
    $region63: #{tpu_custom_call.1} parent=1 // pred_check_branch
      %2530 = sbr.rel (0) target = $region65
    $region64: #{tpu_custom_call.1} parent=1 // pred_region
      %2532 = dma.done [#allocation3], 256
    $region65: #{tpu_custom_call.1} parent=1 // pred_fallthru
      _
    %2533 = vsyncpa [#allocation3], 1

</llo_original>
